<compile_context>
chip_gen: v7x
topology: tpu7x:2x2x1
jax: 0.10.0
libtpu: 0.0.40
codegen_flags: <defaults>
</compile_context>

<pallas_src>
import numpy as np

import jax
import jax.numpy as jnp
from jax import lax
from jax.experimental import pallas as pl
from jax.experimental.pallas import tpu as pltpu


# -----------------------------------------------------------------------------
# Host-side operand preparation (pure numpy, done once).
# -----------------------------------------------------------------------------
def _banded_conv_mats(w_hwio, win, pool_w):
    """Per-tap banded matrices M_dh: (3, win*cin, win*cout).

    Row index   = w_in*cin + ci   (input layout (H, W*Cin), w-major, c-minor)
    Col index   = (j*(win//2) + wo)*cout + co  when pool_w == 2  (pool-pair-major)
                = w_out*cout + co              when pool_w == 1
    so that W max-pooling becomes max(cols[:half], cols[half:])."""
    w = np.asarray(w_hwio, dtype=np.float32)          # (3, 3, cin, cout)
    _, _, cin, cout = w.shape
    mats = np.zeros((3, win * cin, win * cout), np.float32)
    for dh in range(3):
        for w_out in range(win):
            if pool_w == 2:
                j, wo = w_out % 2, w_out // 2
                c0 = (j * (win // 2) + wo) * cout
            else:
                c0 = w_out * cout
            for dw in range(3):
                w_in = w_out + dw - 1
                if 0 <= w_in < win:
                    mats[dh, w_in * cin:(w_in + 1) * cin, c0:c0 + cout] = w[dh, dw]
    return mats


def _row_mats_maxpool(h):
    """L_dh = ParityPerm @ HShift_dh : (3, h, h).

    After summing the taps, rows [0, h/2) hold even conv rows and rows
    [h/2, h) hold odd conv rows, so the H max-pool is max(A[:h//2], A[h//2:])."""
    mats = np.zeros((3, h, h), np.float32)
    for dh in range(3):
        for i in range(h // 2):
            for r, h_out in ((i, 2 * i), (h // 2 + i, 2 * i + 1)):
                h_in = h_out + dh - 1
                if 0 <= h_in < h:
                    mats[dh, r, h_in] = 1.0
    return mats


def _row_mats_avgpool(h_in, bins, win_h):
    """L_dh = AvgPool @ HShift_dh : (3, bins, h_in) (avg pool folded pre-matmul)."""
    mats = np.zeros((3, bins, h_in), np.float32)
    inv = 1.0 / win_h
    for dh in range(3):
        for ho in range(bins):
            for h_conv in range(ho * win_h, (ho + 1) * win_h):
                h_src = h_conv + dh - 1
                if 0 <= h_src < h_in:
                    mats[dh, ho, h_src] += inv
    return mats


def pack_params(params):
    """Build the kernel operands from PyTorch-layout parameters."""
    w1, b1 = np.asarray(params["w1"]), np.asarray(params["b1"])
    w2, b2 = np.asarray(params["w2"]), np.asarray(params["b2"])
    w3, b3 = np.asarray(params["w3"]), np.asarray(params["b3"])
    fc1w, fc1b = np.asarray(params["fc1_w"]), np.asarray(params["fc1_b"])
    fc2w, fc2b = np.asarray(params["fc2_w"]), np.asarray(params["fc2_b"])

    # fc1 input index in PyTorch flatten order is c*16 + h*4 + w; re-split it by
    # pooled row h with column layout (w, c) matching the block-3 output lanes.
    fc1w_r = np.transpose(fc1w.reshape(64, 4, 4, 128), (1, 2, 0, 3)).reshape(4, 256, 128)

    kp = {
        "m1": _banded_conv_mats(w1, win=16, pool_w=2),   # (3, 16, 256)
        "l1": _row_mats_maxpool(128),                    # (3, 128, 128)
        "b1": np.tile(b1, 8).reshape(1, 128),            # lanes = (wo, co)
        "m2": _banded_conv_mats(w2, win=8, pool_w=2),    # (3, 128, 256)
        "l2": _row_mats_maxpool(64),                     # (3, 64, 64)
        "b2": np.tile(b2, 4).reshape(1, 128),
        "m3": _banded_conv_mats(w3, win=4, pool_w=1),    # (3, 128, 256)
        "l3": _row_mats_avgpool(32, 4, 8),               # (3, 4, 32) (avg folded in)
        "b3": np.tile(b3, 4).reshape(1, 256),
        "rsel": np.eye(4, dtype=np.float32).reshape(4, 1, 4),
        "fc1w": fc1w_r,                                  # (4, 256, 128)
        "fc1b": fc1b.reshape(1, 128),
        "fc2w": fc2w,                                    # (128, 16)
        "fc2b": fc2b.reshape(1, 16),
    }
    return {k: jnp.asarray(v, dtype=jnp.float32) for k, v in kp.items()}


# -----------------------------------------------------------------------------
# Fused Pallas kernel (one batch element per grid step).
# -----------------------------------------------------------------------------
def _fused_cnn_kernel(x_ref, m1_ref, l1_ref, b1_ref, m2_ref, l2_ref, b2_ref,
                      m3_ref, l3_ref, b3_ref, rsel_ref, fc1w_ref, fc1b_ref,
                      fc2w_ref, fc2b_ref, o_ref):
    f32 = jnp.float32

    def conv_pool_block(x, l_ref, m_ref, b_ref, maxpool):
        # 3x3 conv (pad 1) as 3 banded matmuls; pooling via aligned half-maxes.
        a = None
        for dh in range(3):                      # static unroll, 3 taps
            t = jnp.dot(l_ref[dh], x, preferred_element_type=f32)
            t = jnp.dot(t, m_ref[dh], preferred_element_type=f32)
            a = t if a is None else a + t
        if maxpool:
            half_l = a.shape[1] // 2             # W pool-pairs live in lane halves
            a = jnp.maximum(a[:, :half_l], a[:, half_l:])
            half_r = a.shape[0] // 2             # H pool-pairs live in row halves
            a = jnp.maximum(a[:half_r, :], a[half_r:, :])
        return jnp.maximum(a + b_ref[...], 0.0)  # bias after pool, then ReLU

    # block 1: conv1(1->16) -> maxpool(2,2) -> relu   (128,16)   -> (64, 8*16)
    y = conv_pool_block(x_ref[0], l1_ref, m1_ref, b1_ref, True)
    # block 2: conv2(16->32) -> maxpool(2,2) -> relu  (64,8*16)  -> (32, 4*32)
    y = conv_pool_block(y, l2_ref, m2_ref, b2_ref, True)
    # block 3: conv3(32->64) -> adaptive avgpool(4,4) -> relu -> (4, 4*64)
    #          (avg pool folded into l3: channel matmul runs on 4 rows, not 32)
    y = conv_pool_block(y, l3_ref, m3_ref, b3_ref, False)

    # dropout: identity at inference.
    # TODO(synk): nn.Dropout (p=0.3) training-mode masking not implemented.

    # fc1 (1024->128; flatten order pre-folded into fc1w) -> relu -> fc2 (128->16)
    hid = fc1b_ref[...]                                          # (1, 128)
    for h in range(4):                                           # pooled rows
        row = jnp.dot(rsel_ref[h], y, preferred_element_type=f32)      # (1, 256)
        hid = hid + jnp.dot(row, fc1w_ref[h], preferred_element_type=f32)
    hid = jnp.maximum(hid, 0.0)
    o_ref[0] = jnp.dot(hid, fc2w_ref[...], preferred_element_type=f32) + fc2b_ref[...]


def cnn_dropout_forward(x_nchw, kp):
    """Forward pass of CNNDropout (inference). x_nchw: (B, 1, 128, 16)."""
    B = x_nchw.shape[0]
    assert x_nchw.shape[1:] == (1, 128, 16), "kernel is specialized to (1,128,16)"
    x = x_nchw.reshape(B, 128, 16).astype(jnp.float32)   # C_in = 1 -> (B, H, W)

    def full(shape):
        return pl.BlockSpec(shape, lambda b, _n=len(shape): (0,) * _n)

    out = pl.pallas_call(
        _fused_cnn_kernel,
        out_shape=jax.ShapeDtypeStruct((B, 1, 16), jnp.float32),
        grid=(B,),
        in_specs=[
            pl.BlockSpec((1, 128, 16), lambda b: (b, 0, 0)),
            full(kp["m1"].shape), full(kp["l1"].shape), full(kp["b1"].shape),
            full(kp["m2"].shape), full(kp["l2"].shape), full(kp["b2"].shape),
            full(kp["m3"].shape), full(kp["l3"].shape), full(kp["b3"].shape),
            full(kp["rsel"].shape), full(kp["fc1w"].shape), full(kp["fc1b"].shape),
            full(kp["fc2w"].shape), full(kp["fc2b"].shape),
        ],
        out_specs=pl.BlockSpec((1, 1, 16), lambda b: (b, 0, 0)),
        compiler_params=pltpu.CompilerParams(dimension_semantics=("parallel",)),
    )(x, kp["m1"], kp["l1"], kp["b1"], kp["m2"], kp["l2"], kp["b2"],
      kp["m3"], kp["l3"], kp["b3"], kp["rsel"], kp["fc1w"], kp["fc1b"],
      kp["fc2w"], kp["fc2b"])
    return out.reshape(B, 16)


# -----------------------------------------------------------------------------
# Pure-JAX reference (validation only) — mirrors the PyTorch module exactly.
# -----------------------------------------------------------------------------
def reference_forward(x_nchw, params):
    x = jnp.transpose(x_nchw, (0, 2, 3, 1)).astype(jnp.float32)   # NCHW -> NHWC

    def conv(x, w, b):
        y = lax.conv_general_dilated(
            x, w, window_strides=(1, 1), padding=((1, 1), (1, 1)),
            dimension_numbers=("NHWC", "HWIO", "NHWC"),
            precision=lax.Precision.HIGHEST)
        return y + b

    def maxpool(x):
        return lax.reduce_window(x, -jnp.inf, lax.max,
                                 (1, 2, 2, 1), (1, 2, 2, 1), "VALID")

    def avgpool(x, wh, ww):
        s = lax.reduce_window(x, 0.0, lax.add,
                              (1, wh, ww, 1), (1, wh, ww, 1), "VALID")
        return s / (wh * ww)

    y = jax.nn.relu(maxpool(conv(x, params["w1"], params["b1"])))
    y = jax.nn.relu(maxpool(conv(y, params["w2"], params["b2"])))
    y = conv(y, params["w3"], params["b3"])
    y = jax.nn.relu(avgpool(y, y.shape[1] // 4, y.shape[2] // 4))
    flat = jnp.transpose(y, (0, 3, 1, 2)).reshape(y.shape[0], -1)  # NCHW flatten
    # dropout = identity at inference
    h = jax.nn.relu(jnp.dot(flat, params["fc1_w"],
                            precision=lax.Precision.HIGHEST) + params["fc1_b"])
    return (jnp.dot(h, params["fc2_w"], precision=lax.Precision.HIGHEST)
            + params["fc2_b"])


# -----------------------------------------------------------------------------
# Deterministic parameter init (shapes match the PyTorch module; HWIO convs).
# -----------------------------------------------------------------------------
def init_params(key):
    ks = jax.random.split(key, 10)

    def nrm(k, shape, scale=0.1):
        return scale * jax.random.normal(k, shape, dtype=jnp.float32)

    return {
        "w1": nrm(ks[0], (3, 3, 1, 16)),  "b1": nrm(ks[1], (16,)),
        "w2": nrm(ks[2], (3, 3, 16, 32)), "b2": nrm(ks[3], (32,)),
        "w3": nrm(ks[4], (3, 3, 32, 64)), "b3": nrm(ks[5], (64,)),
        "fc1_w": nrm(ks[6], (1024, 128), 0.05), "fc1_b": nrm(ks[7], (128,)),
        "fc2_w": nrm(ks[8], (128, 16), 0.05),   "fc2_b": nrm(ks[9], (16,)),
    }


if __name__ == "__main__":
    key = jax.random.PRNGKey(0)
    kx, kp_key = jax.random.split(key)
    # PyTorch-convention input: NCHW mel spectrogram (128, 16), batch=2
    x = jax.random.normal(kx, (2, 1, 128, 16), dtype=jnp.float32)
    params = init_params(kp_key)
    kparams = pack_params(params)

    out = jax.block_until_ready(cnn_dropout_forward(x, kparams))
    assert out.shape == (2, 16) and out.dtype == jnp.float32

    ref = jax.block_until_ready(reference_forward(x, params))
    max_diff = float(jnp.max(jnp.abs(out - ref)))
    assert jnp.allclose(out, ref, rtol=2e-2, atol=2e-2), f"max diff {max_diff}"

    print("KERNEL_OK")
</pallas_src>

<mosaic_0001>
module attributes {stable_mosaic.version = 11 : i64} {
  func.func @_fused_cnn_kernel(%arg0: i32, %arg1: memref<1x128x16xf32, #tpu.memory_space<vmem>>, %arg2: memref<3x16x256xf32, #tpu.memory_space<vmem>>, %arg3: memref<3x128x128xf32, #tpu.memory_space<vmem>>, %arg4: memref<1x128xf32, #tpu.memory_space<vmem>>, %arg5: memref<3x128x256xf32, #tpu.memory_space<vmem>>, %arg6: memref<3x64x64xf32, #tpu.memory_space<vmem>>, %arg7: memref<1x128xf32, #tpu.memory_space<vmem>>, %arg8: memref<3x128x256xf32, #tpu.memory_space<vmem>>, %arg9: memref<3x4x32xf32, #tpu.memory_space<vmem>>, %arg10: memref<1x256xf32, #tpu.memory_space<vmem>>, %arg11: memref<4x1x4xf32, #tpu.memory_space<vmem>>, %arg12: memref<4x256x128xf32, #tpu.memory_space<vmem>>, %arg13: memref<1x128xf32, #tpu.memory_space<vmem>>, %arg14: memref<128x16xf32, #tpu.memory_space<vmem>>, %arg15: memref<1x16xf32, #tpu.memory_space<vmem>>, %arg16: memref<1x1x16xf32, #tpu.memory_space<vmem>>) attributes {dimension_semantics = [#tpu.dimension_semantics<parallel>], iteration_bounds = array<i64: 2>, scalar_prefetch = 0 : i64, scratch_operands = 0 : i64, tpu.core_type = #tpu.core_type<tc>, window_params = [{transform_indices = @transform_0, window_bounds = array<i64: 1, 128, 16>}, {pipeline_mode = #tpu.pipeline_mode<synchronous>, transform_indices = @transform_1, window_bounds = array<i64: 3, 16, 256>}, {pipeline_mode = #tpu.pipeline_mode<synchronous>, transform_indices = @transform_2, window_bounds = array<i64: 3, 128, 128>}, {pipeline_mode = #tpu.pipeline_mode<synchronous>, transform_indices = @transform_3, window_bounds = array<i64: 1, 128>}, {pipeline_mode = #tpu.pipeline_mode<synchronous>, transform_indices = @transform_4, window_bounds = array<i64: 3, 128, 256>}, {pipeline_mode = #tpu.pipeline_mode<synchronous>, transform_indices = @transform_5, window_bounds = array<i64: 3, 64, 64>}, {pipeline_mode = #tpu.pipeline_mode<synchronous>, transform_indices = @transform_6, window_bounds = array<i64: 1, 128>}, {pipeline_mode = #tpu.pipeline_mode<synchronous>, transform_indices = @transform_7, window_bounds = array<i64: 3, 128, 256>}, {pipeline_mode = #tpu.pipeline_mode<synchronous>, transform_indices = @transform_8, window_bounds = array<i64: 3, 4, 32>}, {pipeline_mode = #tpu.pipeline_mode<synchronous>, transform_indices = @transform_9, window_bounds = array<i64: 1, 256>}, {pipeline_mode = #tpu.pipeline_mode<synchronous>, transform_indices = @transform_10, window_bounds = array<i64: 4, 1, 4>}, {pipeline_mode = #tpu.pipeline_mode<synchronous>, transform_indices = @transform_11, window_bounds = array<i64: 4, 256, 128>}, {pipeline_mode = #tpu.pipeline_mode<synchronous>, transform_indices = @transform_12, window_bounds = array<i64: 1, 128>}, {pipeline_mode = #tpu.pipeline_mode<synchronous>, transform_indices = @transform_13, window_bounds = array<i64: 128, 16>}, {pipeline_mode = #tpu.pipeline_mode<synchronous>, transform_indices = @transform_14, window_bounds = array<i64: 1, 16>}, {transform_indices = @transform_15, window_bounds = array<i64: 1, 1, 16>}]} {
    %c0 = arith.constant 0 : index
    %c0_0 = arith.constant 0 : index
    %c0_1 = arith.constant 0 : index
    %0 = vector.load %arg1[%c0, %c0_0, %c0_1] : memref<1x128x16xf32, #tpu.memory_space<vmem>>, vector<1x128x16xf32>
    %1 = vector.shape_cast %0 : vector<1x128x16xf32> to vector<128x16xf32>
    %c0_2 = arith.constant 0 : index
    %c0_3 = arith.constant 0 : index
    %c0_4 = arith.constant 0 : index
    %2 = vector.load %arg3[%c0_2, %c0_3, %c0_4] : memref<3x128x128xf32, #tpu.memory_space<vmem>>, vector<1x128x128xf32>
    %3 = vector.shape_cast %2 : vector<1x128x128xf32> to vector<128x128xf32>
    %cst = arith.constant dense<0.000000e+00> : vector<128x16xf32>
    %4 = tpu.matmul %3, %1, %cst {dimension_numbers = #tpu.dot_dimension_numbers<[1], [0], [0], [1], [0, 0, 1, 1], [], []>} : vector<128x128xf32>, vector<128x16xf32>, vector<128x16xf32> -> vector<128x16xf32>
    %c0_5 = arith.constant 0 : index
    %c0_6 = arith.constant 0 : index
    %c0_7 = arith.constant 0 : index
    %5 = vector.load %arg2[%c0_5, %c0_6, %c0_7] : memref<3x16x256xf32, #tpu.memory_space<vmem>>, vector<1x16x256xf32>
    %6 = vector.shape_cast %5 : vector<1x16x256xf32> to vector<16x256xf32>
    %cst_8 = arith.constant dense<0.000000e+00> : vector<128x256xf32>
    %7 = tpu.matmul %4, %6, %cst_8 {dimension_numbers = #tpu.dot_dimension_numbers<[1], [0], [0], [1], [0, 0, 1, 1], [], []>} : vector<128x16xf32>, vector<16x256xf32>, vector<128x256xf32> -> vector<128x256xf32>
    %c1 = arith.constant 1 : index
    %c0_9 = arith.constant 0 : index
    %c0_10 = arith.constant 0 : index
    %8 = vector.load %arg3[%c1, %c0_9, %c0_10] : memref<3x128x128xf32, #tpu.memory_space<vmem>>, vector<1x128x128xf32>
    %9 = vector.shape_cast %8 : vector<1x128x128xf32> to vector<128x128xf32>
    %cst_11 = arith.constant dense<0.000000e+00> : vector<128x16xf32>
    %10 = tpu.matmul %9, %1, %cst_11 {dimension_numbers = #tpu.dot_dimension_numbers<[1], [0], [0], [1], [0, 0, 1, 1], [], []>} : vector<128x128xf32>, vector<128x16xf32>, vector<128x16xf32> -> vector<128x16xf32>
    %c1_12 = arith.constant 1 : index
    %c0_13 = arith.constant 0 : index
    %c0_14 = arith.constant 0 : index
    %11 = vector.load %arg2[%c1_12, %c0_13, %c0_14] : memref<3x16x256xf32, #tpu.memory_space<vmem>>, vector<1x16x256xf32>
    %12 = vector.shape_cast %11 : vector<1x16x256xf32> to vector<16x256xf32>
    %cst_15 = arith.constant dense<0.000000e+00> : vector<128x256xf32>
    %13 = tpu.matmul %10, %12, %cst_15 {dimension_numbers = #tpu.dot_dimension_numbers<[1], [0], [0], [1], [0, 0, 1, 1], [], []>} : vector<128x16xf32>, vector<16x256xf32>, vector<128x256xf32> -> vector<128x256xf32>
    %14 = arith.addf %7, %13 : vector<128x256xf32>
    %c2 = arith.constant 2 : index
    %c0_16 = arith.constant 0 : index
    %c0_17 = arith.constant 0 : index
    %15 = vector.load %arg3[%c2, %c0_16, %c0_17] : memref<3x128x128xf32, #tpu.memory_space<vmem>>, vector<1x128x128xf32>
    %16 = vector.shape_cast %15 : vector<1x128x128xf32> to vector<128x128xf32>
    %cst_18 = arith.constant dense<0.000000e+00> : vector<128x16xf32>
    %17 = tpu.matmul %16, %1, %cst_18 {dimension_numbers = #tpu.dot_dimension_numbers<[1], [0], [0], [1], [0, 0, 1, 1], [], []>} : vector<128x128xf32>, vector<128x16xf32>, vector<128x16xf32> -> vector<128x16xf32>
    %c2_19 = arith.constant 2 : index
    %c0_20 = arith.constant 0 : index
    %c0_21 = arith.constant 0 : index
    %18 = vector.load %arg2[%c2_19, %c0_20, %c0_21] : memref<3x16x256xf32, #tpu.memory_space<vmem>>, vector<1x16x256xf32>
    %19 = vector.shape_cast %18 : vector<1x16x256xf32> to vector<16x256xf32>
    %cst_22 = arith.constant dense<0.000000e+00> : vector<128x256xf32>
    %20 = tpu.matmul %17, %19, %cst_22 {dimension_numbers = #tpu.dot_dimension_numbers<[1], [0], [0], [1], [0, 0, 1, 1], [], []>} : vector<128x16xf32>, vector<16x256xf32>, vector<128x256xf32> -> vector<128x256xf32>
    %21 = arith.addf %14, %20 : vector<128x256xf32>
    %22 = vector.extract_strided_slice %21 {offsets = [0, 0], sizes = [128, 128], strides = [1, 1]} : vector<128x256xf32> to vector<128x128xf32>
    %23 = vector.extract_strided_slice %21 {offsets = [0, 128], sizes = [128, 128], strides = [1, 1]} : vector<128x256xf32> to vector<128x128xf32>
    %24 = arith.maximumf %22, %23 : vector<128x128xf32>
    %25 = vector.extract_strided_slice %24 {offsets = [0, 0], sizes = [64, 128], strides = [1, 1]} : vector<128x128xf32> to vector<64x128xf32>
    %26 = vector.extract_strided_slice %24 {offsets = [64, 0], sizes = [64, 128], strides = [1, 1]} : vector<128x128xf32> to vector<64x128xf32>
    %27 = arith.maximumf %25, %26 : vector<64x128xf32>
    %c0_23 = arith.constant 0 : index
    %c0_24 = arith.constant 0 : index
    %28 = vector.load %arg4[%c0_23, %c0_24] : memref<1x128xf32, #tpu.memory_space<vmem>>, vector<1x128xf32>
    %29 = vector.broadcast %28 : vector<1x128xf32> to vector<64x128xf32>
    %30 = arith.addf %27, %29 : vector<64x128xf32>
    %cst_25 = arith.constant 0.000000e+00 : f32
    %31 = vector.broadcast %cst_25 : f32 to vector<64x128xf32>
    %32 = arith.maximumf %30, %31 : vector<64x128xf32>
    %c0_26 = arith.constant 0 : index
    %c0_27 = arith.constant 0 : index
    %c0_28 = arith.constant 0 : index
    %33 = vector.load %arg6[%c0_26, %c0_27, %c0_28] : memref<3x64x64xf32, #tpu.memory_space<vmem>>, vector<1x64x64xf32>
    %34 = vector.shape_cast %33 : vector<1x64x64xf32> to vector<64x64xf32>
    %cst_29 = arith.constant dense<0.000000e+00> : vector<64x128xf32>
    %35 = tpu.matmul %34, %32, %cst_29 {dimension_numbers = #tpu.dot_dimension_numbers<[1], [0], [0], [1], [0, 0, 1, 1], [], []>} : vector<64x64xf32>, vector<64x128xf32>, vector<64x128xf32> -> vector<64x128xf32>
    %c0_30 = arith.constant 0 : index
    %c0_31 = arith.constant 0 : index
    %c0_32 = arith.constant 0 : index
    %36 = vector.load %arg5[%c0_30, %c0_31, %c0_32] : memref<3x128x256xf32, #tpu.memory_space<vmem>>, vector<1x128x256xf32>
    %37 = vector.shape_cast %36 : vector<1x128x256xf32> to vector<128x256xf32>
    %cst_33 = arith.constant dense<0.000000e+00> : vector<64x256xf32>
    %38 = tpu.matmul %35, %37, %cst_33 {dimension_numbers = #tpu.dot_dimension_numbers<[1], [0], [0], [1], [0, 0, 1, 1], [], []>} : vector<64x128xf32>, vector<128x256xf32>, vector<64x256xf32> -> vector<64x256xf32>
    %c1_34 = arith.constant 1 : index
    %c0_35 = arith.constant 0 : index
    %c0_36 = arith.constant 0 : index
    %39 = vector.load %arg6[%c1_34, %c0_35, %c0_36] : memref<3x64x64xf32, #tpu.memory_space<vmem>>, vector<1x64x64xf32>
    %40 = vector.shape_cast %39 : vector<1x64x64xf32> to vector<64x64xf32>
    %cst_37 = arith.constant dense<0.000000e+00> : vector<64x128xf32>
    %41 = tpu.matmul %40, %32, %cst_37 {dimension_numbers = #tpu.dot_dimension_numbers<[1], [0], [0], [1], [0, 0, 1, 1], [], []>} : vector<64x64xf32>, vector<64x128xf32>, vector<64x128xf32> -> vector<64x128xf32>
    %c1_38 = arith.constant 1 : index
    %c0_39 = arith.constant 0 : index
    %c0_40 = arith.constant 0 : index
    %42 = vector.load %arg5[%c1_38, %c0_39, %c0_40] : memref<3x128x256xf32, #tpu.memory_space<vmem>>, vector<1x128x256xf32>
    %43 = vector.shape_cast %42 : vector<1x128x256xf32> to vector<128x256xf32>
    %cst_41 = arith.constant dense<0.000000e+00> : vector<64x256xf32>
    %44 = tpu.matmul %41, %43, %cst_41 {dimension_numbers = #tpu.dot_dimension_numbers<[1], [0], [0], [1], [0, 0, 1, 1], [], []>} : vector<64x128xf32>, vector<128x256xf32>, vector<64x256xf32> -> vector<64x256xf32>
    %45 = arith.addf %38, %44 : vector<64x256xf32>
    %c2_42 = arith.constant 2 : index
    %c0_43 = arith.constant 0 : index
    %c0_44 = arith.constant 0 : index
    %46 = vector.load %arg6[%c2_42, %c0_43, %c0_44] : memref<3x64x64xf32, #tpu.memory_space<vmem>>, vector<1x64x64xf32>
    %47 = vector.shape_cast %46 : vector<1x64x64xf32> to vector<64x64xf32>
    %cst_45 = arith.constant dense<0.000000e+00> : vector<64x128xf32>
    %48 = tpu.matmul %47, %32, %cst_45 {dimension_numbers = #tpu.dot_dimension_numbers<[1], [0], [0], [1], [0, 0, 1, 1], [], []>} : vector<64x64xf32>, vector<64x128xf32>, vector<64x128xf32> -> vector<64x128xf32>
    %c2_46 = arith.constant 2 : index
    %c0_47 = arith.constant 0 : index
    %c0_48 = arith.constant 0 : index
    %49 = vector.load %arg5[%c2_46, %c0_47, %c0_48] : memref<3x128x256xf32, #tpu.memory_space<vmem>>, vector<1x128x256xf32>
    %50 = vector.shape_cast %49 : vector<1x128x256xf32> to vector<128x256xf32>
    %cst_49 = arith.constant dense<0.000000e+00> : vector<64x256xf32>
    %51 = tpu.matmul %48, %50, %cst_49 {dimension_numbers = #tpu.dot_dimension_numbers<[1], [0], [0], [1], [0, 0, 1, 1], [], []>} : vector<64x128xf32>, vector<128x256xf32>, vector<64x256xf32> -> vector<64x256xf32>
    %52 = arith.addf %45, %51 : vector<64x256xf32>
    %53 = vector.extract_strided_slice %52 {offsets = [0, 0], sizes = [64, 128], strides = [1, 1]} : vector<64x256xf32> to vector<64x128xf32>
    %54 = vector.extract_strided_slice %52 {offsets = [0, 128], sizes = [64, 128], strides = [1, 1]} : vector<64x256xf32> to vector<64x128xf32>
    %55 = arith.maximumf %53, %54 : vector<64x128xf32>
    %56 = vector.extract_strided_slice %55 {offsets = [0, 0], sizes = [32, 128], strides = [1, 1]} : vector<64x128xf32> to vector<32x128xf32>
    %57 = vector.extract_strided_slice %55 {offsets = [32, 0], sizes = [32, 128], strides = [1, 1]} : vector<64x128xf32> to vector<32x128xf32>
    %58 = arith.maximumf %56, %57 : vector<32x128xf32>
    %c0_50 = arith.constant 0 : index
    %c0_51 = arith.constant 0 : index
    %59 = vector.load %arg7[%c0_50, %c0_51] : memref<1x128xf32, #tpu.memory_space<vmem>>, vector<1x128xf32>
    %60 = vector.broadcast %59 : vector<1x128xf32> to vector<32x128xf32>
    %61 = arith.addf %58, %60 : vector<32x128xf32>
    %cst_52 = arith.constant 0.000000e+00 : f32
    %62 = vector.broadcast %cst_52 : f32 to vector<32x128xf32>
    %63 = arith.maximumf %61, %62 : vector<32x128xf32>
    %c0_53 = arith.constant 0 : index
    %c0_54 = arith.constant 0 : index
    %c0_55 = arith.constant 0 : index
    %64 = vector.load %arg9[%c0_53, %c0_54, %c0_55] : memref<3x4x32xf32, #tpu.memory_space<vmem>>, vector<1x4x32xf32>
    %65 = vector.shape_cast %64 : vector<1x4x32xf32> to vector<4x32xf32>
    %cst_56 = arith.constant dense<0.000000e+00> : vector<4x128xf32>
    %66 = tpu.matmul %65, %63, %cst_56 {dimension_numbers = #tpu.dot_dimension_numbers<[1], [0], [0], [1], [0, 0, 1, 1], [], []>} : vector<4x32xf32>, vector<32x128xf32>, vector<4x128xf32> -> vector<4x128xf32>
    %c0_57 = arith.constant 0 : index
    %c0_58 = arith.constant 0 : index
    %c0_59 = arith.constant 0 : index
    %67 = vector.load %arg8[%c0_57, %c0_58, %c0_59] : memref<3x128x256xf32, #tpu.memory_space<vmem>>, vector<1x128x256xf32>
    %68 = vector.shape_cast %67 : vector<1x128x256xf32> to vector<128x256xf32>
    %cst_60 = arith.constant dense<0.000000e+00> : vector<4x256xf32>
    %69 = tpu.matmul %66, %68, %cst_60 {dimension_numbers = #tpu.dot_dimension_numbers<[1], [0], [0], [1], [0, 0, 1, 1], [], []>} : vector<4x128xf32>, vector<128x256xf32>, vector<4x256xf32> -> vector<4x256xf32>
    %c1_61 = arith.constant 1 : index
    %c0_62 = arith.constant 0 : index
    %c0_63 = arith.constant 0 : index
    %70 = vector.load %arg9[%c1_61, %c0_62, %c0_63] : memref<3x4x32xf32, #tpu.memory_space<vmem>>, vector<1x4x32xf32>
    %71 = vector.shape_cast %70 : vector<1x4x32xf32> to vector<4x32xf32>
    %cst_64 = arith.constant dense<0.000000e+00> : vector<4x128xf32>
    %72 = tpu.matmul %71, %63, %cst_64 {dimension_numbers = #tpu.dot_dimension_numbers<[1], [0], [0], [1], [0, 0, 1, 1], [], []>} : vector<4x32xf32>, vector<32x128xf32>, vector<4x128xf32> -> vector<4x128xf32>
    %c1_65 = arith.constant 1 : index
    %c0_66 = arith.constant 0 : index
    %c0_67 = arith.constant 0 : index
    %73 = vector.load %arg8[%c1_65, %c0_66, %c0_67] : memref<3x128x256xf32, #tpu.memory_space<vmem>>, vector<1x128x256xf32>
    %74 = vector.shape_cast %73 : vector<1x128x256xf32> to vector<128x256xf32>
    %cst_68 = arith.constant dense<0.000000e+00> : vector<4x256xf32>
    %75 = tpu.matmul %72, %74, %cst_68 {dimension_numbers = #tpu.dot_dimension_numbers<[1], [0], [0], [1], [0, 0, 1, 1], [], []>} : vector<4x128xf32>, vector<128x256xf32>, vector<4x256xf32> -> vector<4x256xf32>
    %76 = arith.addf %69, %75 : vector<4x256xf32>
    %c2_69 = arith.constant 2 : index
    %c0_70 = arith.constant 0 : index
    %c0_71 = arith.constant 0 : index
    %77 = vector.load %arg9[%c2_69, %c0_70, %c0_71] : memref<3x4x32xf32, #tpu.memory_space<vmem>>, vector<1x4x32xf32>
    %78 = vector.shape_cast %77 : vector<1x4x32xf32> to vector<4x32xf32>
    %cst_72 = arith.constant dense<0.000000e+00> : vector<4x128xf32>
    %79 = tpu.matmul %78, %63, %cst_72 {dimension_numbers = #tpu.dot_dimension_numbers<[1], [0], [0], [1], [0, 0, 1, 1], [], []>} : vector<4x32xf32>, vector<32x128xf32>, vector<4x128xf32> -> vector<4x128xf32>
    %c2_73 = arith.constant 2 : index
    %c0_74 = arith.constant 0 : index
    %c0_75 = arith.constant 0 : index
    %80 = vector.load %arg8[%c2_73, %c0_74, %c0_75] : memref<3x128x256xf32, #tpu.memory_space<vmem>>, vector<1x128x256xf32>
    %81 = vector.shape_cast %80 : vector<1x128x256xf32> to vector<128x256xf32>
    %cst_76 = arith.constant dense<0.000000e+00> : vector<4x256xf32>
    %82 = tpu.matmul %79, %81, %cst_76 {dimension_numbers = #tpu.dot_dimension_numbers<[1], [0], [0], [1], [0, 0, 1, 1], [], []>} : vector<4x128xf32>, vector<128x256xf32>, vector<4x256xf32> -> vector<4x256xf32>
    %83 = arith.addf %76, %82 : vector<4x256xf32>
    %c0_77 = arith.constant 0 : index
    %c0_78 = arith.constant 0 : index
    %84 = vector.load %arg10[%c0_77, %c0_78] : memref<1x256xf32, #tpu.memory_space<vmem>>, vector<1x256xf32>
    %85 = vector.broadcast %84 : vector<1x256xf32> to vector<4x256xf32>
    %86 = arith.addf %83, %85 : vector<4x256xf32>
    %cst_79 = arith.constant 0.000000e+00 : f32
    %87 = vector.broadcast %cst_79 : f32 to vector<4x256xf32>
    %88 = arith.maximumf %86, %87 : vector<4x256xf32>
    %c0_80 = arith.constant 0 : index
    %c0_81 = arith.constant 0 : index
    %89 = vector.load %arg13[%c0_80, %c0_81] : memref<1x128xf32, #tpu.memory_space<vmem>>, vector<1x128xf32>
    %c0_82 = arith.constant 0 : index
    %c0_83 = arith.constant 0 : index
    %c0_84 = arith.constant 0 : index
    %90 = vector.load %arg11[%c0_82, %c0_83, %c0_84] : memref<4x1x4xf32, #tpu.memory_space<vmem>>, vector<1x1x4xf32>
    %91 = vector.shape_cast %90 : vector<1x1x4xf32> to vector<1x4xf32>
    %cst_85 = arith.constant dense<0.000000e+00> : vector<1x256xf32>
    %92 = tpu.matmul %91, %88, %cst_85 {dimension_numbers = #tpu.dot_dimension_numbers<[1], [0], [0], [1], [0, 0, 1, 1], [], []>} : vector<1x4xf32>, vector<4x256xf32>, vector<1x256xf32> -> vector<1x256xf32>
    %c0_86 = arith.constant 0 : index
    %c0_87 = arith.constant 0 : index
    %c0_88 = arith.constant 0 : index
    %93 = vector.load %arg12[%c0_86, %c0_87, %c0_88] : memref<4x256x128xf32, #tpu.memory_space<vmem>>, vector<1x256x128xf32>
    %94 = vector.shape_cast %93 : vector<1x256x128xf32> to vector<256x128xf32>
    %cst_89 = arith.constant dense<0.000000e+00> : vector<1x128xf32>
    %95 = tpu.matmul %92, %94, %cst_89 {dimension_numbers = #tpu.dot_dimension_numbers<[1], [0], [0], [1], [0, 0, 1, 1], [], []>} : vector<1x256xf32>, vector<256x128xf32>, vector<1x128xf32> -> vector<1x128xf32>
    %96 = arith.addf %89, %95 : vector<1x128xf32>
    %c1_90 = arith.constant 1 : index
    %c0_91 = arith.constant 0 : index
    %c0_92 = arith.constant 0 : index
    %97 = vector.load %arg11[%c1_90, %c0_91, %c0_92] : memref<4x1x4xf32, #tpu.memory_space<vmem>>, vector<1x1x4xf32>
    %98 = vector.shape_cast %97 : vector<1x1x4xf32> to vector<1x4xf32>
    %cst_93 = arith.constant dense<0.000000e+00> : vector<1x256xf32>
    %99 = tpu.matmul %98, %88, %cst_93 {dimension_numbers = #tpu.dot_dimension_numbers<[1], [0], [0], [1], [0, 0, 1, 1], [], []>} : vector<1x4xf32>, vector<4x256xf32>, vector<1x256xf32> -> vector<1x256xf32>
    %c1_94 = arith.constant 1 : index
    %c0_95 = arith.constant 0 : index
    %c0_96 = arith.constant 0 : index
    %100 = vector.load %arg12[%c1_94, %c0_95, %c0_96] : memref<4x256x128xf32, #tpu.memory_space<vmem>>, vector<1x256x128xf32>
    %101 = vector.shape_cast %100 : vector<1x256x128xf32> to vector<256x128xf32>
    %cst_97 = arith.constant dense<0.000000e+00> : vector<1x128xf32>
    %102 = tpu.matmul %99, %101, %cst_97 {dimension_numbers = #tpu.dot_dimension_numbers<[1], [0], [0], [1], [0, 0, 1, 1], [], []>} : vector<1x256xf32>, vector<256x128xf32>, vector<1x128xf32> -> vector<1x128xf32>
    %103 = arith.addf %96, %102 : vector<1x128xf32>
    %c2_98 = arith.constant 2 : index
    %c0_99 = arith.constant 0 : index
    %c0_100 = arith.constant 0 : index
    %104 = vector.load %arg11[%c2_98, %c0_99, %c0_100] : memref<4x1x4xf32, #tpu.memory_space<vmem>>, vector<1x1x4xf32>
    %105 = vector.shape_cast %104 : vector<1x1x4xf32> to vector<1x4xf32>
    %cst_101 = arith.constant dense<0.000000e+00> : vector<1x256xf32>
    %106 = tpu.matmul %105, %88, %cst_101 {dimension_numbers = #tpu.dot_dimension_numbers<[1], [0], [0], [1], [0, 0, 1, 1], [], []>} : vector<1x4xf32>, vector<4x256xf32>, vector<1x256xf32> -> vector<1x256xf32>
    %c2_102 = arith.constant 2 : index
    %c0_103 = arith.constant 0 : index
    %c0_104 = arith.constant 0 : index
    %107 = vector.load %arg12[%c2_102, %c0_103, %c0_104] : memref<4x256x128xf32, #tpu.memory_space<vmem>>, vector<1x256x128xf32>
    %108 = vector.shape_cast %107 : vector<1x256x128xf32> to vector<256x128xf32>
    %cst_105 = arith.constant dense<0.000000e+00> : vector<1x128xf32>
    %109 = tpu.matmul %106, %108, %cst_105 {dimension_numbers = #tpu.dot_dimension_numbers<[1], [0], [0], [1], [0, 0, 1, 1], [], []>} : vector<1x256xf32>, vector<256x128xf32>, vector<1x128xf32> -> vector<1x128xf32>
    %110 = arith.addf %103, %109 : vector<1x128xf32>
    %c3 = arith.constant 3 : index
    %c0_106 = arith.constant 0 : index
    %c0_107 = arith.constant 0 : index
    %111 = vector.load %arg11[%c3, %c0_106, %c0_107] : memref<4x1x4xf32, #tpu.memory_space<vmem>>, vector<1x1x4xf32>
    %112 = vector.shape_cast %111 : vector<1x1x4xf32> to vector<1x4xf32>
    %cst_108 = arith.constant dense<0.000000e+00> : vector<1x256xf32>
    %113 = tpu.matmul %112, %88, %cst_108 {dimension_numbers = #tpu.dot_dimension_numbers<[1], [0], [0], [1], [0, 0, 1, 1], [], []>} : vector<1x4xf32>, vector<4x256xf32>, vector<1x256xf32> -> vector<1x256xf32>
    %c3_109 = arith.constant 3 : index
    %c0_110 = arith.constant 0 : index
    %c0_111 = arith.constant 0 : index
    %114 = vector.load %arg12[%c3_109, %c0_110, %c0_111] : memref<4x256x128xf32, #tpu.memory_space<vmem>>, vector<1x256x128xf32>
    %115 = vector.shape_cast %114 : vector<1x256x128xf32> to vector<256x128xf32>
    %cst_112 = arith.constant dense<0.000000e+00> : vector<1x128xf32>
    %116 = tpu.matmul %113, %115, %cst_112 {dimension_numbers = #tpu.dot_dimension_numbers<[1], [0], [0], [1], [0, 0, 1, 1], [], []>} : vector<1x256xf32>, vector<256x128xf32>, vector<1x128xf32> -> vector<1x128xf32>
    %117 = arith.addf %110, %116 : vector<1x128xf32>
    %cst_113 = arith.constant 0.000000e+00 : f32
    %118 = vector.broadcast %cst_113 : f32 to vector<1x128xf32>
    %119 = arith.maximumf %117, %118 : vector<1x128xf32>
    %c0_114 = arith.constant 0 : index
    %c0_115 = arith.constant 0 : index
    %120 = vector.load %arg14[%c0_114, %c0_115] : memref<128x16xf32, #tpu.memory_space<vmem>>, vector<128x16xf32>
    %cst_116 = arith.constant dense<0.000000e+00> : vector<1x16xf32>
    %121 = tpu.matmul %119, %120, %cst_116 {dimension_numbers = #tpu.dot_dimension_numbers<[1], [0], [0], [1], [0, 0, 1, 1], [], []>} : vector<1x128xf32>, vector<128x16xf32>, vector<1x16xf32> -> vector<1x16xf32>
    %c0_117 = arith.constant 0 : index
    %c0_118 = arith.constant 0 : index
    %122 = vector.load %arg15[%c0_117, %c0_118] : memref<1x16xf32, #tpu.memory_space<vmem>>, vector<1x16xf32>
    %123 = arith.addf %121, %122 : vector<1x16xf32>
    %c0_119 = arith.constant 0 : index
    %c0_120 = arith.constant 0 : index
    %c0_121 = arith.constant 0 : index
    %124 = vector.load %arg16[%c0_119, %c0_120, %c0_121] : memref<1x1x16xf32, #tpu.memory_space<vmem>>, vector<1x1x16xf32>
    %125 = vector.shape_cast %124 : vector<1x1x16xf32> to vector<1x16xf32>
    %126 = vector.shape_cast %123 : vector<1x16xf32> to vector<1x1x16xf32>
    tpu.vector_store %arg16[%c0_119, %c0_120, %c0_121], %126 {strides = array<i32>} : memref<1x1x16xf32, #tpu.memory_space<vmem>>, vector<1x1x16xf32>,
    return
  }
  func.func @transform_0(%arg0: i32) -> (i32, i32, i32) {
    %c0_i32 = arith.constant 0 : i32
    %c0_i32_0 = arith.constant 0 : i32
    %c0_i32_1 = arith.constant 0 : i32
    return %arg0, %c0_i32, %c0_i32_0 : i32, i32, i32
  }
  func.func @transform_1(%arg0: i32) -> (i32, i32, i32) {
    %c0_i32 = arith.constant 0 : i32
    %c0_i32_0 = arith.constant 0 : i32
    %c0_i32_1 = arith.constant 0 : i32
    %c0_i32_2 = arith.constant 0 : i32
    return %c0_i32, %c0_i32_0, %c0_i32_1 : i32, i32, i32
  }
  func.func @transform_2(%arg0: i32) -> (i32, i32, i32) {
    %c0_i32 = arith.constant 0 : i32
    %c0_i32_0 = arith.constant 0 : i32
    %c0_i32_1 = arith.constant 0 : i32
    %c0_i32_2 = arith.constant 0 : i32
    return %c0_i32, %c0_i32_0, %c0_i32_1 : i32, i32, i32
  }
  func.func @transform_3(%arg0: i32) -> (i32, i32) {
    %c0_i32 = arith.constant 0 : i32
    %c0_i32_0 = arith.constant 0 : i32
    %c0_i32_1 = arith.constant 0 : i32
    return %c0_i32, %c0_i32_0 : i32, i32
  }
  func.func @transform_4(%arg0: i32) -> (i32, i32, i32) {
    %c0_i32 = arith.constant 0 : i32
    %c0_i32_0 = arith.constant 0 : i32
    %c0_i32_1 = arith.constant 0 : i32
    %c0_i32_2 = arith.constant 0 : i32
    return %c0_i32, %c0_i32_0, %c0_i32_1 : i32, i32, i32
  }
  func.func @transform_5(%arg0: i32) -> (i32, i32, i32) {
    %c0_i32 = arith.constant 0 : i32
    %c0_i32_0 = arith.constant 0 : i32
    %c0_i32_1 = arith.constant 0 : i32
    %c0_i32_2 = arith.constant 0 : i32
    return %c0_i32, %c0_i32_0, %c0_i32_1 : i32, i32, i32
  }
  func.func @transform_6(%arg0: i32) -> (i32, i32) {
    %c0_i32 = arith.constant 0 : i32
    %c0_i32_0 = arith.constant 0 : i32
    %c0_i32_1 = arith.constant 0 : i32
    return %c0_i32, %c0_i32_0 : i32, i32
  }
  func.func @transform_7(%arg0: i32) -> (i32, i32, i32) {
    %c0_i32 = arith.constant 0 : i32
    %c0_i32_0 = arith.constant 0 : i32
    %c0_i32_1 = arith.constant 0 : i32
    %c0_i32_2 = arith.constant 0 : i32
    return %c0_i32, %c0_i32_0, %c0_i32_1 : i32, i32, i32
  }
  func.func @transform_8(%arg0: i32) -> (i32, i32, i32) {
    %c0_i32 = arith.constant 0 : i32
    %c0_i32_0 = arith.constant 0 : i32
    %c0_i32_1 = arith.constant 0 : i32
    %c0_i32_2 = arith.constant 0 : i32
    return %c0_i32, %c0_i32_0, %c0_i32_1 : i32, i32, i32
  }
  func.func @transform_9(%arg0: i32) -> (i32, i32) {
    %c0_i32 = arith.constant 0 : i32
    %c0_i32_0 = arith.constant 0 : i32
    %c0_i32_1 = arith.constant 0 : i32
    return %c0_i32, %c0_i32_0 : i32, i32
  }
  func.func @transform_10(%arg0: i32) -> (i32, i32, i32) {
    %c0_i32 = arith.constant 0 : i32
    %c0_i32_0 = arith.constant 0 : i32
    %c0_i32_1 = arith.constant 0 : i32
    %c0_i32_2 = arith.constant 0 : i32
    return %c0_i32, %c0_i32_0, %c0_i32_1 : i32, i32, i32
  }
  func.func @transform_11(%arg0: i32) -> (i32, i32, i32) {
    %c0_i32 = arith.constant 0 : i32
    %c0_i32_0 = arith.constant 0 : i32
    %c0_i32_1 = arith.constant 0 : i32
    %c0_i32_2 = arith.constant 0 : i32
    return %c0_i32, %c0_i32_0, %c0_i32_1 : i32, i32, i32
  }
  func.func @transform_12(%arg0: i32) -> (i32, i32) {
    %c0_i32 = arith.constant 0 : i32
    %c0_i32_0 = arith.constant 0 : i32
    %c0_i32_1 = arith.constant 0 : i32
    return %c0_i32, %c0_i32_0 : i32, i32
  }
  func.func @transform_13(%arg0: i32) -> (i32, i32) {
    %c0_i32 = arith.constant 0 : i32
    %c0_i32_0 = arith.constant 0 : i32
    %c0_i32_1 = arith.constant 0 : i32
    return %c0_i32, %c0_i32_0 : i32, i32
  }
  func.func @transform_14(%arg0: i32) -> (i32, i32) {
    %c0_i32 = arith.constant 0 : i32
    %c0_i32_0 = arith.constant 0 : i32
    %c0_i32_1 = arith.constant 0 : i32
    return %c0_i32, %c0_i32_0 : i32, i32
  }
  func.func @transform_15(%arg0: i32) -> (i32, i32, i32) {
    %c0_i32 = arith.constant 0 : i32
    %c0_i32_0 = arith.constant 0 : i32
    %c0_i32_1 = arith.constant 0 : i32
    return %arg0, %c0_i32, %c0_i32_0 : i32, i32, i32
  }
}

</mosaic_0001>

<llo_original>
// kernel: tpu_custom_call.1
$region0: #{tpu_custom_call.1}
  #allocation0 [shape = 'u32[]', space=smem, size = 0x4, offset = 0x4, fixed_abs, tag = 'smem constant byte address 0x4 - core index']
  #allocation1 [shape = 'u32[144,128]{1,0:T(1,128)}', space=vmem, size = 0x12000, scoped, tag = 'internal scratch']
  %s0 = inlined_call_operand.vmem [shape: f32[2,128,16], index: 0, kind: input, shape index: {}]
  %s1 = inlined_call_operand.hbm [shape: f32[3,16,256], index: 1, kind: input, shape index: {}]
  %s2 = inlined_call_operand.vmem [shape: f32[3,128,128], index: 2, kind: input, shape index: {}]
  %s3 = inlined_call_operand.vmem [shape: f32[1,128], index: 3, kind: input, shape index: {}]
  %s4 = inlined_call_operand.hbm [shape: f32[3,128,256], index: 4, kind: input, shape index: {}]
  %s5 = inlined_call_operand.hbm [shape: f32[3,64,64], index: 5, kind: input, shape index: {}]
  %s6 = inlined_call_operand.vmem [shape: f32[1,128], index: 6, kind: input, shape index: {}]
  %s7 = inlined_call_operand.hbm [shape: f32[3,128,256], index: 7, kind: input, shape index: {}]
  %s8 = inlined_call_operand.vmem [shape: f32[3,4,32], index: 8, kind: input, shape index: {}]
  %s9 = inlined_call_operand.vmem [shape: f32[1,256], index: 9, kind: input, shape index: {}]
  %s10 = inlined_call_operand.vmem [shape: f32[4,1,4], index: 10, kind: input, shape index: {}]
  %s11 = inlined_call_operand.hbm [shape: f32[4,256,128], index: 11, kind: input, shape index: {}]
  %s12 = inlined_call_operand.vmem [shape: f32[1,128], index: 12, kind: input, shape index: {}]
  %s13 = inlined_call_operand.vmem [shape: f32[128,16], index: 13, kind: input, shape index: {}]
  %s14 = inlined_call_operand.vmem [shape: f32[1,16], index: 14, kind: input, shape index: {}]
  %s15 = inlined_call_operand.hbm [shape: f32[2,1,16], index: 15, kind: output, shape index: {}]
  %s16 = sld [smem:[#allocation0]]
  $region113: #{tpu_custom_call.1} parent=0
    _
  %s18 = ssub.s32 1, %s16
  %s19 = scalar_select 0, %s18, %s16
  $region1: #{tpu_custom_call.1} parent=0
    #allocation2 [shape = 'u8[49152]{0}', space=vmem, size = 0xc000, scoped, tag = 'input window, operand 1, single buffered']
    #allocation3 [shape = 's32[2]{0}', space=sflag, size = 0x8, scoped, tag = 'scoped memory for tpu_custom_call.1']
    #allocation4 [shape = 's32[2]{0}', space=sflag, size = 0x8, scoped, tag = 'scoped memory for tpu_custom_call.1']
    #allocation5 [shape = 'u8[393216]{0}', space=vmem, size = 0x60000, scoped, tag = 'input window, operand 4, single buffered']
    #allocation6 [shape = 's32[1]{0}', space=sflag, size = 0x4, scoped, tag = 'scoped memory for tpu_custom_call.1']
    #allocation7 [shape = 'u8[98304]{0}', space=vmem, size = 0x18000, scoped, tag = 'input window, operand 5, single buffered']
    #allocation8 [shape = 'u8[393216]{0}', space=vmem, size = 0x60000, scoped, tag = 'input window, operand 7, single buffered']
    #allocation9 [shape = 's32[1]{0}', space=sflag, size = 0x4, scoped, tag = 'scoped memory for tpu_custom_call.1']
    #allocation10 [shape = 'u8[524288]{0}', space=vmem, size = 0x80000, scoped, tag = 'input window, operand 11, single buffered']
    #allocation11 [shape = 'u8[1024]{0}', space=vmem, size = 0x400, scoped, tag = 'output window, operand 0']
    %20 = vsyncpa [#allocation3], 0
    %21 = vsyncpa [#allocation6], 0
    %22 = vsyncpa [#allocation9], 0
    %23 = vsyncpa [#allocation4], 0
    %s24 = scalar_lea.sflag [#allocation4], 1
    %25 = vsyncpa %s24, 0
    loop: start=0, step=1, limit=4
    $region2: #{tpu_custom_call.1} parent=1 // loop_pre_header
      _
    $region3: #{tpu_custom_call.1} parent=1 // loop_header
      %s27 = sphi 0, %s31
      %p28 = scmp.ge.s32.totalorder %s27, 4
      %s37 = sphi 0, %s39
      %s40 = sphi 0, %s37
      %s41 = sphi 0, %s40
      %s57 = sphi 0, %s41
      %s61 = sphi 0, %s61
      %s63 = sphi 0, %s61
      %s64 = sphi 0, %s63
      %s78 = sphi 0, %s64
      %s82 = sphi 0, %s82
      %s84 = sphi 0, %s82
      %s85 = sphi 0, %s84
      %s99 = sphi 0, %s85
      %s103 = sphi 0, %s103
      %s105 = sphi 0, %s103
      %s106 = sphi 0, %s105
      %s120 = sphi 0, %s106
      %s124 = sphi 0, %s124
      %s126 = sphi 0, %s124
      %s127 = sphi 0, %s126
      %s141 = sphi 0, %s127
      %s145 = sphi 0, %s145
      %s147 = sphi 0, %s145
      %s148 = sphi 0, %s147
      %s162 = sphi 0, %s148
      %s166 = sphi 0, %s166
      %s168 = sphi 0, %s166
      %s169 = sphi 0, %s168
      %s183 = sphi 0, %s169
      %s187 = sphi 0, %s187
      %s189 = sphi 0, %s187
      %s190 = sphi 0, %s189
      %s204 = sphi 0, %s190
      %s208 = sphi 0, %s208
      %s210 = sphi 0, %s208
      %s211 = sphi 0, %s210
      %s225 = sphi 0, %s211
      %s229 = sphi 0, %s229
      %s231 = sphi 0, %s229
      %s232 = sphi 0, %s231
      %s246 = sphi 0, %s232
      %s250 = sphi 0, %s250
      %s252 = sphi 0, %s250
      %s253 = sphi 0, %s252
      %s267 = sphi 0, %s253
      %s271 = sphi 0, %s271
      %s273 = sphi 0, %s271
      %s274 = sphi 0, %s273
      %s288 = sphi 0, %s274
      %s292 = sphi 0, %s292
      %s294 = sphi 0, %s292
      %s295 = sphi 0, %s294
      %s309 = sphi 0, %s295
      %s313 = sphi 0, %s313
      %s315 = sphi 0, %s313
      %s316 = sphi 0, %s315
      %s330 = sphi 0, %s316
      %s334 = sphi 0, %s334
      %s336 = sphi 0, %s334
      %s337 = sphi 0, %s336
      %s351 = sphi 0, %s337
      %s357 = sphi 0, %s359
      %s360 = sphi 0, %s357
      %s361 = sphi 0, %s360
      %s377 = sphi 0, %s361
    $region4: #{tpu_custom_call.1} parent=1 // loop_header_branch
      %30 = sbr.rel (%p28) target = $region8
    $region5: #{tpu_custom_call.1} parent=1 // loop_body
      %s32 = ssub.s32 %s27, 1
      %s33 = ssub.s32 %s27, 2
      %s34 = sadd.s32 %s27, 1
      %s35 = ssub.s32 %s27, %s34
      %p36 = scmp.eq.s32.totalorder %s35, 0
      %s38 = sadd.s32 %s37, 1
      %s39 = scalar_select %p36, %s37, %s38
      %p42 = pneg %p36
      %p43 = scmp.eq.s32.totalorder %s27, 1
      %p44 = por %p42, %p43
      %p45 = scmp.ne.s32.totalorder %s37, %s40
      %p46 = scmp.eq.s32.totalorder %s27, 0
      %p47 = por %p45, %p46
      %p48 = scmp.ne.s32.totalorder %s37, %s40
      %p49 = scmp.eq.s32.totalorder %s32, 1
      %p50 = por %p48, %p49
      %p51 = scmp.ne.s32.totalorder %s40, %s41
      %p52 = scmp.eq.s32.totalorder %s32, 0
      %p53 = por %p51, %p52
      %p54 = scmp.ne.s32.totalorder %s40, %s41
      %p55 = scmp.eq.s32.totalorder %s33, 1
      %p56 = por %p54, %p55
      %p58 = scmp.ne.s32.totalorder %s41, %s57
      %p59 = scmp.eq.s32.totalorder %s33, 0
      %p60 = por %p58, %p59
      %s62 = sadd.s32 %s61, 1
      %p65 = scmp.eq.s32.totalorder %s27, 1
      %p66 = scmp.ne.s32.totalorder %s61, %s63
      %p67 = scmp.eq.s32.totalorder %s27, 0
      %p68 = por %p66, %p67
      %p69 = scmp.ne.s32.totalorder %s61, %s63
      %p70 = scmp.eq.s32.totalorder %s32, 1
      %p71 = por %p69, %p70
      %p72 = scmp.ne.s32.totalorder %s63, %s64
      %p73 = scmp.eq.s32.totalorder %s32, 0
      %p74 = por %p72, %p73
      %p75 = scmp.ne.s32.totalorder %s63, %s64
      %p76 = scmp.eq.s32.totalorder %s33, 1
      %p77 = por %p75, %p76
      %p79 = scmp.ne.s32.totalorder %s64, %s78
      %p80 = scmp.eq.s32.totalorder %s33, 0
      %p81 = por %p79, %p80
      %s83 = sadd.s32 %s82, 1
      %p86 = scmp.eq.s32.totalorder %s27, 1
      %p87 = scmp.ne.s32.totalorder %s82, %s84
      %p88 = scmp.eq.s32.totalorder %s27, 0
      %p89 = por %p87, %p88
      %p90 = scmp.ne.s32.totalorder %s82, %s84
      %p91 = scmp.eq.s32.totalorder %s32, 1
      %p92 = por %p90, %p91
      %p93 = scmp.ne.s32.totalorder %s84, %s85
      %p94 = scmp.eq.s32.totalorder %s32, 0
      %p95 = por %p93, %p94
      %p96 = scmp.ne.s32.totalorder %s84, %s85
      %p97 = scmp.eq.s32.totalorder %s33, 1
      %p98 = por %p96, %p97
      %p100 = scmp.ne.s32.totalorder %s85, %s99
      %p101 = scmp.eq.s32.totalorder %s33, 0
      %p102 = por %p100, %p101
      %s104 = sadd.s32 %s103, 1
      %p107 = scmp.eq.s32.totalorder %s27, 1
      %p108 = scmp.ne.s32.totalorder %s103, %s105
      %p109 = scmp.eq.s32.totalorder %s27, 0
      %p110 = por %p108, %p109
      %p111 = scmp.ne.s32.totalorder %s103, %s105
      %p112 = scmp.eq.s32.totalorder %s32, 1
      %p113 = por %p111, %p112
      %p114 = scmp.ne.s32.totalorder %s105, %s106
      %p115 = scmp.eq.s32.totalorder %s32, 0
      %p116 = por %p114, %p115
      %p117 = scmp.ne.s32.totalorder %s105, %s106
      %p118 = scmp.eq.s32.totalorder %s33, 1
      %p119 = por %p117, %p118
      %p121 = scmp.ne.s32.totalorder %s106, %s120
      %p122 = scmp.eq.s32.totalorder %s33, 0
      %p123 = por %p121, %p122
      %s125 = sadd.s32 %s124, 1
      %p128 = scmp.eq.s32.totalorder %s27, 1
      %p129 = scmp.ne.s32.totalorder %s124, %s126
      %p130 = scmp.eq.s32.totalorder %s27, 0
      %p131 = por %p129, %p130
      %p132 = scmp.ne.s32.totalorder %s124, %s126
      %p133 = scmp.eq.s32.totalorder %s32, 1
      %p134 = por %p132, %p133
      %p135 = scmp.ne.s32.totalorder %s126, %s127
      %p136 = scmp.eq.s32.totalorder %s32, 0
      %p137 = por %p135, %p136
      %p138 = scmp.ne.s32.totalorder %s126, %s127
      %p139 = scmp.eq.s32.totalorder %s33, 1
      %p140 = por %p138, %p139
      %p142 = scmp.ne.s32.totalorder %s127, %s141
      %p143 = scmp.eq.s32.totalorder %s33, 0
      %p144 = por %p142, %p143
      %s146 = sadd.s32 %s145, 1
      %p149 = scmp.eq.s32.totalorder %s27, 1
      %p150 = scmp.ne.s32.totalorder %s145, %s147
      %p151 = scmp.eq.s32.totalorder %s27, 0
      %p152 = por %p150, %p151
      %p153 = scmp.ne.s32.totalorder %s145, %s147
      %p154 = scmp.eq.s32.totalorder %s32, 1
      %p155 = por %p153, %p154
      %p156 = scmp.ne.s32.totalorder %s147, %s148
      %p157 = scmp.eq.s32.totalorder %s32, 0
      %p158 = por %p156, %p157
      %p159 = scmp.ne.s32.totalorder %s147, %s148
      %p160 = scmp.eq.s32.totalorder %s33, 1
      %p161 = por %p159, %p160
      %p163 = scmp.ne.s32.totalorder %s148, %s162
      %p164 = scmp.eq.s32.totalorder %s33, 0
      %p165 = por %p163, %p164
      %s167 = sadd.s32 %s166, 1
      %p170 = scmp.eq.s32.totalorder %s27, 1
      %p171 = scmp.ne.s32.totalorder %s166, %s168
      %p172 = scmp.eq.s32.totalorder %s27, 0
      %p173 = por %p171, %p172
      %p174 = scmp.ne.s32.totalorder %s166, %s168
      %p175 = scmp.eq.s32.totalorder %s32, 1
      %p176 = por %p174, %p175
      %p177 = scmp.ne.s32.totalorder %s168, %s169
      %p178 = scmp.eq.s32.totalorder %s32, 0
      %p179 = por %p177, %p178
      %p180 = scmp.ne.s32.totalorder %s168, %s169
      %p181 = scmp.eq.s32.totalorder %s33, 1
      %p182 = por %p180, %p181
      %p184 = scmp.ne.s32.totalorder %s169, %s183
      %p185 = scmp.eq.s32.totalorder %s33, 0
      %p186 = por %p184, %p185
      %s188 = sadd.s32 %s187, 1
      %p191 = scmp.eq.s32.totalorder %s27, 1
      %p192 = scmp.ne.s32.totalorder %s187, %s189
      %p193 = scmp.eq.s32.totalorder %s27, 0
      %p194 = por %p192, %p193
      %p195 = scmp.ne.s32.totalorder %s187, %s189
      %p196 = scmp.eq.s32.totalorder %s32, 1
      %p197 = por %p195, %p196
      %p198 = scmp.ne.s32.totalorder %s189, %s190
      %p199 = scmp.eq.s32.totalorder %s32, 0
      %p200 = por %p198, %p199
      %p201 = scmp.ne.s32.totalorder %s189, %s190
      %p202 = scmp.eq.s32.totalorder %s33, 1
      %p203 = por %p201, %p202
      %p205 = scmp.ne.s32.totalorder %s190, %s204
      %p206 = scmp.eq.s32.totalorder %s33, 0
      %p207 = por %p205, %p206
      %s209 = sadd.s32 %s208, 1
      %p212 = scmp.eq.s32.totalorder %s27, 1
      %p213 = scmp.ne.s32.totalorder %s208, %s210
      %p214 = scmp.eq.s32.totalorder %s27, 0
      %p215 = por %p213, %p214
      %p216 = scmp.ne.s32.totalorder %s208, %s210
      %p217 = scmp.eq.s32.totalorder %s32, 1
      %p218 = por %p216, %p217
      %p219 = scmp.ne.s32.totalorder %s210, %s211
      %p220 = scmp.eq.s32.totalorder %s32, 0
      %p221 = por %p219, %p220
      %p222 = scmp.ne.s32.totalorder %s210, %s211
      %p223 = scmp.eq.s32.totalorder %s33, 1
      %p224 = por %p222, %p223
      %p226 = scmp.ne.s32.totalorder %s211, %s225
      %p227 = scmp.eq.s32.totalorder %s33, 0
      %p228 = por %p226, %p227
      %s230 = sadd.s32 %s229, 1
      %p233 = scmp.eq.s32.totalorder %s27, 1
      %p234 = scmp.ne.s32.totalorder %s229, %s231
      %p235 = scmp.eq.s32.totalorder %s27, 0
      %p236 = por %p234, %p235
      %p237 = scmp.ne.s32.totalorder %s229, %s231
      %p238 = scmp.eq.s32.totalorder %s32, 1
      %p239 = por %p237, %p238
      %p240 = scmp.ne.s32.totalorder %s231, %s232
      %p241 = scmp.eq.s32.totalorder %s32, 0
      %p242 = por %p240, %p241
      %p243 = scmp.ne.s32.totalorder %s231, %s232
      %p244 = scmp.eq.s32.totalorder %s33, 1
      %p245 = por %p243, %p244
      %p247 = scmp.ne.s32.totalorder %s232, %s246
      %p248 = scmp.eq.s32.totalorder %s33, 0
      %p249 = por %p247, %p248
      %s251 = sadd.s32 %s250, 1
      %p254 = scmp.eq.s32.totalorder %s27, 1
      %p255 = scmp.ne.s32.totalorder %s250, %s252
      %p256 = scmp.eq.s32.totalorder %s27, 0
      %p257 = por %p255, %p256
      %p258 = scmp.ne.s32.totalorder %s250, %s252
      %p259 = scmp.eq.s32.totalorder %s32, 1
      %p260 = por %p258, %p259
      %p261 = scmp.ne.s32.totalorder %s252, %s253
      %p262 = scmp.eq.s32.totalorder %s32, 0
      %p263 = por %p261, %p262
      %p264 = scmp.ne.s32.totalorder %s252, %s253
      %p265 = scmp.eq.s32.totalorder %s33, 1
      %p266 = por %p264, %p265
      %p268 = scmp.ne.s32.totalorder %s253, %s267
      %p269 = scmp.eq.s32.totalorder %s33, 0
      %p270 = por %p268, %p269
      %s272 = sadd.s32 %s271, 1
      %p275 = scmp.eq.s32.totalorder %s27, 1
      %p276 = scmp.ne.s32.totalorder %s271, %s273
      %p277 = scmp.eq.s32.totalorder %s27, 0
      %p278 = por %p276, %p277
      %p279 = scmp.ne.s32.totalorder %s271, %s273
      %p280 = scmp.eq.s32.totalorder %s32, 1
      %p281 = por %p279, %p280
      %p282 = scmp.ne.s32.totalorder %s273, %s274
      %p283 = scmp.eq.s32.totalorder %s32, 0
      %p284 = por %p282, %p283
      %p285 = scmp.ne.s32.totalorder %s273, %s274
      %p286 = scmp.eq.s32.totalorder %s33, 1
      %p287 = por %p285, %p286
      %p289 = scmp.ne.s32.totalorder %s274, %s288
      %p290 = scmp.eq.s32.totalorder %s33, 0
      %p291 = por %p289, %p290
      %s293 = sadd.s32 %s292, 1
      %p296 = scmp.eq.s32.totalorder %s27, 1
      %p297 = scmp.ne.s32.totalorder %s292, %s294
      %p298 = scmp.eq.s32.totalorder %s27, 0
      %p299 = por %p297, %p298
      %p300 = scmp.ne.s32.totalorder %s292, %s294
      %p301 = scmp.eq.s32.totalorder %s32, 1
      %p302 = por %p300, %p301
      %p303 = scmp.ne.s32.totalorder %s294, %s295
      %p304 = scmp.eq.s32.totalorder %s32, 0
      %p305 = por %p303, %p304
      %p306 = scmp.ne.s32.totalorder %s294, %s295
      %p307 = scmp.eq.s32.totalorder %s33, 1
      %p308 = por %p306, %p307
      %p310 = scmp.ne.s32.totalorder %s295, %s309
      %p311 = scmp.eq.s32.totalorder %s33, 0
      %p312 = por %p310, %p311
      %s314 = sadd.s32 %s313, 1
      %p317 = scmp.eq.s32.totalorder %s27, 1
      %p318 = scmp.ne.s32.totalorder %s313, %s315
      %p319 = scmp.eq.s32.totalorder %s27, 0
      %p320 = por %p318, %p319
      %p321 = scmp.ne.s32.totalorder %s313, %s315
      %p322 = scmp.eq.s32.totalorder %s32, 1
      %p323 = por %p321, %p322
      %p324 = scmp.ne.s32.totalorder %s315, %s316
      %p325 = scmp.eq.s32.totalorder %s32, 0
      %p326 = por %p324, %p325
      %p327 = scmp.ne.s32.totalorder %s315, %s316
      %p328 = scmp.eq.s32.totalorder %s33, 1
      %p329 = por %p327, %p328
      %p331 = scmp.ne.s32.totalorder %s316, %s330
      %p332 = scmp.eq.s32.totalorder %s33, 0
      %p333 = por %p331, %p332
      %s335 = sadd.s32 %s334, 1
      %p338 = scmp.eq.s32.totalorder %s27, 1
      %p339 = scmp.ne.s32.totalorder %s334, %s336
      %p340 = scmp.eq.s32.totalorder %s27, 0
      %p341 = por %p339, %p340
      %p342 = scmp.ne.s32.totalorder %s334, %s336
      %p343 = scmp.eq.s32.totalorder %s32, 1
      %p344 = por %p342, %p343
      %p345 = scmp.ne.s32.totalorder %s336, %s337
      %p346 = scmp.eq.s32.totalorder %s32, 0
      %p347 = por %p345, %p346
      %p348 = scmp.ne.s32.totalorder %s336, %s337
      %p349 = scmp.eq.s32.totalorder %s33, 1
      %p350 = por %p348, %p349
      %p352 = scmp.ne.s32.totalorder %s337, %s351
      %p353 = scmp.eq.s32.totalorder %s33, 0
      %p354 = por %p352, %p353
      %s355 = ssub.s32 %s27, %s34
      %p356 = scmp.eq.s32.totalorder %s355, 0
      %s358 = sadd.s32 %s357, 1
      %s359 = scalar_select %p356, %s357, %s358
      %p362 = pneg %p356
      %p363 = scmp.eq.s32.totalorder %s27, 1
      %p364 = por %p362, %p363
      %p365 = scmp.ne.s32.totalorder %s357, %s360
      %p366 = scmp.eq.s32.totalorder %s27, 0
      %p367 = por %p365, %p366
      %p368 = scmp.ne.s32.totalorder %s357, %s360
      %p369 = scmp.eq.s32.totalorder %s32, 1
      %p370 = por %p368, %p369
      %p371 = scmp.ne.s32.totalorder %s360, %s361
      %p372 = scmp.eq.s32.totalorder %s32, 0
      %p373 = por %p371, %p372
      %p374 = scmp.ne.s32.totalorder %s360, %s361
      %p375 = scmp.eq.s32.totalorder %s33, 1
      %p376 = por %p374, %p375
      %p378 = scmp.ne.s32.totalorder %s361, %s377
      %p379 = scmp.eq.s32.totalorder %s33, 0
      %p380 = por %p378, %p379
      %p381 = scmp.le.s32.totalorder 1, %s27
      %p382 = scmp.lt.s32.totalorder %s27, 3
      %p383 = pnand %p381, %p382
      %p384 = pneg %p383
      // Predicated region
      $region9: #{tpu_custom_call.1} parent=5 // pred_check
        _
      $region10: #{tpu_custom_call.1} parent=5 // pred_check_branch
        %386 = sbr.rel (%p383) target = $region12
      $region11: #{tpu_custom_call.1} parent=5 // pred_region
        %s387 = ssub.s32 %s27, 1
        // Predicated region
        $region13: #{tpu_custom_call.1} parent=11 // pred_check
          %p388 = pneg %p74
        $region14: #{tpu_custom_call.1} parent=11 // pred_check_branch
          %390 = sbr.rel (%p388) target = $region16
        $region15: #{tpu_custom_call.1} parent=11 // pred_region
          %s392 = ssub.s32 1536, 1536
          %393 = vsyncadd [#allocation3], %s392
          %s394 = sshll.u32 [#allocation2], 4
          %s395 = int_to_ptr.vmem [resolvable:$true] %s394
          %400 = dma.hbm_to_vmem [thread:$0]  %s1, 1536, %s395, [#allocation3], 256, 256, 16
        $region16: #{tpu_custom_call.1} parent=11 // pred_fallthru
          _
        // Predicated region
        $region17: #{tpu_custom_call.1} parent=11 // pred_check
          %p401 = pneg %p95
        $region18: #{tpu_custom_call.1} parent=11 // pred_check_branch
          %403 = sbr.rel (%p401) target = $region20
        $region19: #{tpu_custom_call.1} parent=11 // pred_region
          _
        $region20: #{tpu_custom_call.1} parent=11 // pred_fallthru
          _
        // Predicated region
        $region21: #{tpu_custom_call.1} parent=11 // pred_check
          %p404 = pneg %p116
        $region22: #{tpu_custom_call.1} parent=11 // pred_check_branch
          %406 = sbr.rel (%p404) target = $region24
        $region23: #{tpu_custom_call.1} parent=11 // pred_region
          _
        $region24: #{tpu_custom_call.1} parent=11 // pred_fallthru
          _
        // Predicated region
        $region25: #{tpu_custom_call.1} parent=11 // pred_check
          %p407 = pneg %p137
        $region26: #{tpu_custom_call.1} parent=11 // pred_check_branch
          %409 = sbr.rel (%p407) target = $region28
        $region27: #{tpu_custom_call.1} parent=11 // pred_region
          %s411 = ssub.s32 12288, 12288
          %412 = vsyncadd [#allocation6], %s411
          %s413 = sshll.u32 [#allocation5], 4
          %s414 = int_to_ptr.vmem [resolvable:$true] %s413
          %419 = dma.hbm_to_vmem [thread:$0]  %s4, 12288, %s414, [#allocation6], 256, 256, 16
        $region28: #{tpu_custom_call.1} parent=11 // pred_fallthru
          _
        // Predicated region
        $region29: #{tpu_custom_call.1} parent=11 // pred_check
          %p420 = pneg %p158
        $region30: #{tpu_custom_call.1} parent=11 // pred_check_branch
          %422 = sbr.rel (%p420) target = $region32
        $region31: #{tpu_custom_call.1} parent=11 // pred_region
          %s424 = ssub.s32 3072, 3072
          %425 = vsyncadd [#allocation6], %s424
          %s426 = sshll.u32 [#allocation7], 4
          %s427 = int_to_ptr.vmem [resolvable:$true] %s426
          %432 = dma.hbm_to_vmem [thread:$0]  %s5, 3072, %s427, [#allocation6], 128, 128, 8
        $region32: #{tpu_custom_call.1} parent=11 // pred_fallthru
          _
        // Predicated region
        $region33: #{tpu_custom_call.1} parent=11 // pred_check
          %p433 = pneg %p179
        $region34: #{tpu_custom_call.1} parent=11 // pred_check_branch
          %435 = sbr.rel (%p433) target = $region36
        $region35: #{tpu_custom_call.1} parent=11 // pred_region
          _
        $region36: #{tpu_custom_call.1} parent=11 // pred_fallthru
          _
        // Predicated region
        $region37: #{tpu_custom_call.1} parent=11 // pred_check
          %p436 = pneg %p200
        $region38: #{tpu_custom_call.1} parent=11 // pred_check_branch
          %438 = sbr.rel (%p436) target = $region40
        $region39: #{tpu_custom_call.1} parent=11 // pred_region
          %s440 = ssub.s32 12288, 12288
          %441 = vsyncadd [#allocation9], %s440
          %s442 = sshll.u32 [#allocation8], 4
          %s443 = int_to_ptr.vmem [resolvable:$true] %s442
          %448 = dma.hbm_to_vmem [thread:$0]  %s7, 12288, %s443, [#allocation9], 256, 256, 16
        $region40: #{tpu_custom_call.1} parent=11 // pred_fallthru
          _
        // Predicated region
        $region41: #{tpu_custom_call.1} parent=11 // pred_check
          %p449 = pneg %p221
        $region42: #{tpu_custom_call.1} parent=11 // pred_check_branch
          %451 = sbr.rel (%p449) target = $region44
        $region43: #{tpu_custom_call.1} parent=11 // pred_region
          _
        $region44: #{tpu_custom_call.1} parent=11 // pred_fallthru
          _
        // Predicated region
        $region45: #{tpu_custom_call.1} parent=11 // pred_check
          %p452 = pneg %p242
        $region46: #{tpu_custom_call.1} parent=11 // pred_check_branch
          %454 = sbr.rel (%p452) target = $region48
        $region47: #{tpu_custom_call.1} parent=11 // pred_region
          _
        $region48: #{tpu_custom_call.1} parent=11 // pred_fallthru
          _
        // Predicated region
        $region49: #{tpu_custom_call.1} parent=11 // pred_check
          %p455 = pneg %p263
        $region50: #{tpu_custom_call.1} parent=11 // pred_check_branch
          %457 = sbr.rel (%p455) target = $region52
        $region51: #{tpu_custom_call.1} parent=11 // pred_region
          _
        $region52: #{tpu_custom_call.1} parent=11 // pred_fallthru
          _
        // Predicated region
        $region53: #{tpu_custom_call.1} parent=11 // pred_check
          %p458 = pneg %p284
        $region54: #{tpu_custom_call.1} parent=11 // pred_check_branch
          %460 = sbr.rel (%p458) target = $region56
        $region55: #{tpu_custom_call.1} parent=11 // pred_region
          %s462 = ssub.s32 16384, 16384
          %463 = vsyncadd [#allocation9], %s462
          %s464 = sshll.u32 [#allocation10], 4
          %s465 = int_to_ptr.vmem [resolvable:$true] %s464
          %470 = dma.hbm_to_vmem [thread:$0]  %s11, 16384, %s465, [#allocation9], 128, 128, 8
        $region56: #{tpu_custom_call.1} parent=11 // pred_fallthru
          _
        // Predicated region
        $region57: #{tpu_custom_call.1} parent=11 // pred_check
          %p471 = pneg %p305
        $region58: #{tpu_custom_call.1} parent=11 // pred_check_branch
          %473 = sbr.rel (%p471) target = $region60
        $region59: #{tpu_custom_call.1} parent=11 // pred_region
          _
        $region60: #{tpu_custom_call.1} parent=11 // pred_fallthru
          _
        // Predicated region
        $region61: #{tpu_custom_call.1} parent=11 // pred_check
          %p474 = pneg %p326
        $region62: #{tpu_custom_call.1} parent=11 // pred_check_branch
          %476 = sbr.rel (%p474) target = $region64
        $region63: #{tpu_custom_call.1} parent=11 // pred_region
          _
        $region64: #{tpu_custom_call.1} parent=11 // pred_fallthru
          _
        // Predicated region
        $region65: #{tpu_custom_call.1} parent=11 // pred_check
          %p477 = pneg %p347
        $region66: #{tpu_custom_call.1} parent=11 // pred_check_branch
          %479 = sbr.rel (%p477) target = $region68
        $region67: #{tpu_custom_call.1} parent=11 // pred_region
          _
        $region68: #{tpu_custom_call.1} parent=11 // pred_fallthru
          _
      $region12: #{tpu_custom_call.1} parent=5 // pred_fallthru
        _
      %p480 = scmp.lt.s32.totalorder %s27, 2
      // Predicated region
      $region69: #{tpu_custom_call.1} parent=5 // pred_check
        %p481 = pneg %p480
      $region70: #{tpu_custom_call.1} parent=5 // pred_check_branch
        %483 = sbr.rel (%p481) target = $region72
      $region71: #{tpu_custom_call.1} parent=5 // pred_region
        // Predicated region
        $region73: #{tpu_custom_call.1} parent=71 // pred_check
          %p484 = pneg %p47
        $region74: #{tpu_custom_call.1} parent=71 // pred_check_branch
          %486 = sbr.rel (%p484) target = $region76
        $region75: #{tpu_custom_call.1} parent=71 // pred_region
          %p487 = scmp.lt.s32.totalorder %s27, 1
          %s488 = scalar_select %p487, %s27, 1
          %s489 = smul.addr %s488, 16
          %s490 = smul.addr %s489, 8
          %s491 = scalar_lea.vmem %s0, %s490
        $region76: #{tpu_custom_call.1} parent=71 // pred_fallthru
          _
      $region72: #{tpu_custom_call.1} parent=5 // pred_fallthru
        _
      %p492 = scmp.le.s32.totalorder 1, %s27
      %p493 = scmp.lt.s32.totalorder %s27, 3
      %p494 = pnand %p492, %p493
      %p495 = pneg %p494
      // Predicated region
      $region77: #{tpu_custom_call.1} parent=5 // pred_check
        _
      $region78: #{tpu_custom_call.1} parent=5 // pred_check_branch
        %497 = sbr.rel (%p494) target = $region80
      $region79: #{tpu_custom_call.1} parent=5 // pred_region
        %s498 = ssub.s32 %s27, 1
        // Predicated region
        $region81: #{tpu_custom_call.1} parent=79 // pred_check
          %p499 = pneg %p74
        $region82: #{tpu_custom_call.1} parent=79 // pred_check_branch
          %501 = sbr.rel (%p499) target = $region84
        $region83: #{tpu_custom_call.1} parent=79 // pred_region
          %502 = dma.done [#allocation3], 1536
        $region84: #{tpu_custom_call.1} parent=79 // pred_fallthru
          _
        // Predicated region
        $region85: #{tpu_custom_call.1} parent=79 // pred_check
          %p503 = pneg %p137
        $region86: #{tpu_custom_call.1} parent=79 // pred_check_branch
          %505 = sbr.rel (%p503) target = $region88
        $region87: #{tpu_custom_call.1} parent=79 // pred_region
          %506 = dma.done [#allocation6], 12288
        $region88: #{tpu_custom_call.1} parent=79 // pred_fallthru
          _
        // Predicated region
        $region89: #{tpu_custom_call.1} parent=79 // pred_check
          %p507 = pneg %p158
        $region90: #{tpu_custom_call.1} parent=79 // pred_check_branch
          %509 = sbr.rel (%p507) target = $region92
        $region91: #{tpu_custom_call.1} parent=79 // pred_region
          %510 = dma.done [#allocation6], 3072
        $region92: #{tpu_custom_call.1} parent=79 // pred_fallthru
          _
        // Predicated region
        $region93: #{tpu_custom_call.1} parent=79 // pred_check
          %p511 = pneg %p200
        $region94: #{tpu_custom_call.1} parent=79 // pred_check_branch
          %513 = sbr.rel (%p511) target = $region96
        $region95: #{tpu_custom_call.1} parent=79 // pred_region
          %514 = dma.done [#allocation9], 12288
        $region96: #{tpu_custom_call.1} parent=79 // pred_fallthru
          _
        // Predicated region
        $region97: #{tpu_custom_call.1} parent=79 // pred_check
          %p515 = pneg %p284
        $region98: #{tpu_custom_call.1} parent=79 // pred_check_branch
          %517 = sbr.rel (%p515) target = $region100
        $region99: #{tpu_custom_call.1} parent=79 // pred_region
          %518 = dma.done [#allocation9], 16384
        $region100: #{tpu_custom_call.1} parent=79 // pred_fallthru
          _
        %p519 = scmp.lt.s32.totalorder %s32, 1
        %s520 = scalar_select %p519, %s32, 1
        %s521 = smul.addr %s520, 16
        %s522 = smul.addr %s521, 8
        %s523 = scalar_lea.vmem %s0, %s522
        %p524 = pneg %p53
        %p525 = pneg %p50
        %p526 = pneg %p74
        %p527 = pneg %p71
        %p528 = pneg %p95
        %p529 = pneg %p92
        %p530 = pneg %p116
        %p531 = pneg %p113
        %p532 = pneg %p137
        %p533 = pneg %p134
        %p534 = pneg %p158
        %p535 = pneg %p155
        %p536 = pneg %p179
        %p537 = pneg %p176
        %p538 = pneg %p200
        %p539 = pneg %p197
        %p540 = pneg %p221
        %p541 = pneg %p218
        %p542 = pneg %p242
        %p543 = pneg %p239
        %p544 = pneg %p263
        %p545 = pneg %p260
        %p546 = pneg %p284
        %p547 = pneg %p281
        %p548 = pneg %p305
        %p549 = pneg %p302
        %p550 = pneg %p326
        %p551 = pneg %p323
        %p552 = pneg %p347
        %p553 = pneg %p344
        %p554 = pneg %p373
        %p555 = pneg %p370
        %s556 = sand.u32 %s360, 1
        %s557 = scalar_lea.sflag [#allocation4], %s556
        %s558 = sand.u32 %s360, 1
        %s559 = scalar_lea.vmem [#allocation11], %s558
        %p560 = scmp.lt.s32.totalorder %s32, 1
        %s561 = scalar_select %p560, %s32, 1
        %s562 = smul.addr %s561, 16
        %s563 = smul.addr %s562, 8
        %s564 = scalar_lea.vmem %s0, %s563
        %v565 = vld [vmem:[%s564] sm:$0xff]
        %v566 = vld [vmem:[%s564 + $0x8] sm:$0xff]
        %v567 = vld [vmem:[%s564 + $0x10] sm:$0xff]
        %v568 = vld [vmem:[%s564 + $0x18] sm:$0xff]
        %v569 = vld [vmem:[%s564 + $0x20] sm:$0xff]
        %v570 = vld [vmem:[%s564 + $0x28] sm:$0xff]
        %v571 = vld [vmem:[%s564 + $0x30] sm:$0xff]
        %v572 = vld [vmem:[%s564 + $0x38] sm:$0xff]
        %v573 = vld [vmem:[%s564 + $0x40] sm:$0xff]
        %v574 = vld [vmem:[%s564 + $0x48] sm:$0xff]
        %v575 = vld [vmem:[%s564 + $0x50] sm:$0xff]
        %v576 = vld [vmem:[%s564 + $0x58] sm:$0xff]
        %v577 = vld [vmem:[%s564 + $0x60] sm:$0xff]
        %v578 = vld [vmem:[%s564 + $0x68] sm:$0xff]
        %v579 = vld [vmem:[%s564 + $0x70] sm:$0xff]
        %v580 = vld [vmem:[%s564 + $0x78] sm:$0xff]
        %v581 = vld [vmem:[%s2] sm:$0xff]
        %v582 = vld [vmem:[%s2 + $0x8] sm:$0xff]
        %v583 = vld [vmem:[%s2 + $0x10] sm:$0xff]
        %v584 = vld [vmem:[%s2 + $0x18] sm:$0xff]
        %v585 = vld [vmem:[%s2 + $0x20] sm:$0xff]
        %v586 = vld [vmem:[%s2 + $0x28] sm:$0xff]
        %v587 = vld [vmem:[%s2 + $0x30] sm:$0xff]
        %v588 = vld [vmem:[%s2 + $0x38] sm:$0xff]
        %v589 = vld [vmem:[%s2 + $0x40] sm:$0xff]
        %v590 = vld [vmem:[%s2 + $0x48] sm:$0xff]
        %v591 = vld [vmem:[%s2 + $0x50] sm:$0xff]
        %v592 = vld [vmem:[%s2 + $0x58] sm:$0xff]
        %v593 = vld [vmem:[%s2 + $0x60] sm:$0xff]
        %v594 = vld [vmem:[%s2 + $0x68] sm:$0xff]
        %v595 = vld [vmem:[%s2 + $0x70] sm:$0xff]
        %v596 = vld [vmem:[%s2 + $0x78] sm:$0xff]
        %597 = vmatprep.subr.mxu0 0.0
        %598 = vmatpush1.msra.mxu0 %v565
        %599 = vmatprep.subr.mxu0 0.0
        %600 = vmatpush1.msra.mxu0 %v566
        %601 = vmatprep.subr.mxu0 0.0
        %602 = vmatpush1.msra.mxu0 %v567
        %603 = vmatprep.subr.mxu0 0.0
        %604 = vmatpush1.msra.mxu0 %v568
        %605 = vmatprep.subr.mxu0 0.0
        %606 = vmatpush1.msra.mxu0 %v569
        %607 = vmatprep.subr.mxu0 0.0
        %608 = vmatpush1.msra.mxu0 %v570
        %609 = vmatprep.subr.mxu0 0.0
        %610 = vmatpush1.msra.mxu0 %v571
        %611 = vmatprep.subr.mxu0 0.0
        %612 = vmatpush1.msra.mxu0 %v572
        %613 = vmatprep.subr.mxu0 0.0
        %614 = vmatpush1.msra.mxu0 %v573
        %615 = vmatprep.subr.mxu0 0.0
        %616 = vmatpush1.msra.mxu0 %v574
        %617 = vmatprep.subr.mxu0 0.0
        %618 = vmatpush1.msra.mxu0 %v575
        %619 = vmatprep.subr.mxu0 0.0
        %620 = vmatpush1.msra.mxu0 %v576
        %621 = vmatprep.subr.mxu0 0.0
        %622 = vmatpush1.msra.mxu0 %v577
        %623 = vmatprep.subr.mxu0 0.0
        %624 = vmatpush1.msra.mxu0 %v578
        %625 = vmatprep.subr.mxu0 0.0
        %626 = vmatpush1.msra.mxu0 %v579
        %627 = vmatprep.subr.mxu0 0.0
        %628 = vmatpush1.msra.mxu0 %v580
        %629 = vmatprep.subr.mxu0 0.0
        %630 = vmatpush1.msra.mxu0 0.0
        %631 = vmatprep.subr.mxu0 0.0
        %632 = vmatpush1.msra.mxu0 0.0
        %633 = vmatprep.subr.mxu0 0.0
        %634 = vmatpush1.msra.mxu0 0.0
        %635 = vmatprep.subr.mxu0 0.0
        %636 = vmatpush1.msra.mxu0 0.0
        %637 = vmatprep.subr.mxu0 0.0
        %638 = vmatpush1.msra.mxu0 0.0
        %639 = vmatprep.subr.mxu0 0.0
        %640 = vmatpush1.msra.mxu0 0.0
        %641 = vmatprep.subr.mxu0 0.0
        %642 = vmatpush1.msra.mxu0 0.0
        %643 = vmatprep.subr.mxu0 0.0
        %644 = vmatpush1.msra.mxu0 0.0
        %645 = vmatprep.subr.mxu0 0.0
        %646 = vmatpush1.msra.mxu0 0.0
        %647 = vmatprep.subr.mxu0 0.0
        %648 = vmatpush1.msra.mxu0 0.0
        %649 = vmatprep.subr.mxu0 0.0
        %650 = vmatpush1.msra.mxu0 0.0
        %651 = vmatprep.subr.mxu0 0.0
        %652 = vmatpush1.msra.mxu0 0.0
        %653 = vmatprep.subr.mxu0 0.0
        %654 = vmatpush1.msra.mxu0 0.0
        %655 = vmatprep.subr.mxu0 0.0
        %656 = vmatpush1.msra.mxu0 0.0
        %657 = vmatprep.subr.mxu0 0.0
        %658 = vmatpush1.msra.mxu0 0.0
        %659 = vmatprep.subr.mxu0 0.0
        %660 = vmatpush1.msra.mxu0 0.0
        %661 = vmatprep.mubr.f32.mxu0 0.0
        %662 = vmatmul.mubr.f32.gmra.mrb[0].mxu0 %v581
        %v663 = vpop.f32.mrb[0].mxu0
        %v664 = vadd.f32 0.0, %v663
        %v665 = vpop.f32.mrb[0].mxu0
        %666 = vmatprep.mubr.f32.mxu0 0.0
        %667 = vmatmul.mubr.f32.gmra.mrb[0].mxu0 %v582
        %v668 = vpop.f32.mrb[0].mxu0
        %v669 = vadd.f32 0.0, %v668
        %v670 = vpop.f32.mrb[0].mxu0
        %671 = vmatprep.mubr.f32.mxu0 0.0
        %672 = vmatmul.mubr.f32.gmra.mrb[0].mxu0 %v583
        %v673 = vpop.f32.mrb[0].mxu0
        %v674 = vadd.f32 0.0, %v673
        %v675 = vpop.f32.mrb[0].mxu0
        %676 = vmatprep.mubr.f32.mxu0 0.0
        %677 = vmatmul.mubr.f32.gmra.mrb[0].mxu0 %v584
        %v678 = vpop.f32.mrb[0].mxu0
        %v679 = vadd.f32 0.0, %v678
        %v680 = vpop.f32.mrb[0].mxu0
        %681 = vmatprep.mubr.f32.mxu0 0.0
        %682 = vmatmul.mubr.f32.gmra.mrb[0].mxu0 %v585
        %v683 = vpop.f32.mrb[0].mxu0
        %v684 = vadd.f32 0.0, %v683
        %v685 = vpop.f32.mrb[0].mxu0
        %686 = vmatprep.mubr.f32.mxu0 0.0
        %687 = vmatmul.mubr.f32.gmra.mrb[0].mxu0 %v586
        %v688 = vpop.f32.mrb[0].mxu0
        %v689 = vadd.f32 0.0, %v688
        %v690 = vpop.f32.mrb[0].mxu0
        %691 = vmatprep.mubr.f32.mxu0 0.0
        %692 = vmatmul.mubr.f32.gmra.mrb[0].mxu0 %v587
        %v693 = vpop.f32.mrb[0].mxu0
        %v694 = vadd.f32 0.0, %v693
        %v695 = vpop.f32.mrb[0].mxu0
        %696 = vmatprep.mubr.f32.mxu0 0.0
        %697 = vmatmul.mubr.f32.gmra.mrb[0].mxu0 %v588
        %v698 = vpop.f32.mrb[0].mxu0
        %v699 = vadd.f32 0.0, %v698
        %v700 = vpop.f32.mrb[0].mxu0
        %701 = vmatprep.mubr.f32.mxu0 0.0
        %702 = vmatmul.mubr.f32.gmra.mrb[0].mxu0 %v589
        %v703 = vpop.f32.mrb[0].mxu0
        %v704 = vadd.f32 0.0, %v703
        %v705 = vpop.f32.mrb[0].mxu0
        %706 = vmatprep.mubr.f32.mxu0 0.0
        %707 = vmatmul.mubr.f32.gmra.mrb[0].mxu0 %v590
        %v708 = vpop.f32.mrb[0].mxu0
        %v709 = vadd.f32 0.0, %v708
        %v710 = vpop.f32.mrb[0].mxu0
        %711 = vmatprep.mubr.f32.mxu0 0.0
        %712 = vmatmul.mubr.f32.gmra.mrb[0].mxu0 %v591
        %v713 = vpop.f32.mrb[0].mxu0
        %v714 = vadd.f32 0.0, %v713
        %v715 = vpop.f32.mrb[0].mxu0
        %716 = vmatprep.mubr.f32.mxu0 0.0
        %717 = vmatmul.mubr.f32.gmra.mrb[0].mxu0 %v592
        %v718 = vpop.f32.mrb[0].mxu0
        %v719 = vadd.f32 0.0, %v718
        %v720 = vpop.f32.mrb[0].mxu0
        %721 = vmatprep.mubr.f32.mxu0 0.0
        %722 = vmatmul.mubr.f32.gmra.mrb[0].mxu0 %v593
        %v723 = vpop.f32.mrb[0].mxu0
        %v724 = vadd.f32 0.0, %v723
        %v725 = vpop.f32.mrb[0].mxu0
        %726 = vmatprep.mubr.f32.mxu0 0.0
        %727 = vmatmul.mubr.f32.gmra.mrb[0].mxu0 %v594
        %v728 = vpop.f32.mrb[0].mxu0
        %v729 = vadd.f32 0.0, %v728
        %v730 = vpop.f32.mrb[0].mxu0
        %731 = vmatprep.mubr.f32.mxu0 0.0
        %732 = vmatmul.mubr.f32.gmra.mrb[0].mxu0 %v595
        %v733 = vpop.f32.mrb[0].mxu0
        %v734 = vadd.f32 0.0, %v733
        %v735 = vpop.f32.mrb[0].mxu0
        %736 = vmatprep.mubr.f32.mxu0 0.0
        %737 = vmatmul.mubr.f32.gmra.mrb[0].mxu0 %v596
        %v738 = vpop.f32.mrb[0].mxu0
        %v739 = vadd.f32 0.0, %v738
        %v740 = vpop.f32.mrb[0].mxu0
        %741 = vdwg.mxu0
        %v742 = vld [vmem:[#allocation2] sm:$0xff]
        %v743 = vld [vmem:[#allocation2 + $0x8] sm:$0xff]
        %v744 = vld [vmem:[#allocation2 + $0x10] sm:$0xff]
        %v745 = vld [vmem:[#allocation2 + $0x18] sm:$0xff]
        %s746 = scalar_lea.vmem %s2, 128
        %v747 = vld [vmem:[%s746] sm:$0xff]
        %v748 = vld [vmem:[%s746 + $0x8] sm:$0xff]
        %v749 = vld [vmem:[%s746 + $0x10] sm:$0xff]
        %v750 = vld [vmem:[%s746 + $0x18] sm:$0xff]
        %v751 = vld [vmem:[%s746 + $0x20] sm:$0xff]
        %v752 = vld [vmem:[%s746 + $0x28] sm:$0xff]
        %v753 = vld [vmem:[%s746 + $0x30] sm:$0xff]
        %v754 = vld [vmem:[%s746 + $0x38] sm:$0xff]
        %v755 = vld [vmem:[%s746 + $0x40] sm:$0xff]
        %v756 = vld [vmem:[%s746 + $0x48] sm:$0xff]
        %v757 = vld [vmem:[%s746 + $0x50] sm:$0xff]
        %v758 = vld [vmem:[%s746 + $0x58] sm:$0xff]
        %v759 = vld [vmem:[%s746 + $0x60] sm:$0xff]
        %v760 = vld [vmem:[%s746 + $0x68] sm:$0xff]
        %v761 = vld [vmem:[%s746 + $0x70] sm:$0xff]
        %v762 = vld [vmem:[%s746 + $0x78] sm:$0xff]
        %763 = vmatprep.subr.mxu0 0.0
        %764 = vmatpush1.msra.mxu0 %v565
        %765 = vmatprep.subr.mxu0 0.0
        %766 = vmatpush1.msra.mxu0 %v566
        %767 = vmatprep.subr.mxu0 0.0
        %768 = vmatpush1.msra.mxu0 %v567
        %769 = vmatprep.subr.mxu0 0.0
        %770 = vmatpush1.msra.mxu0 %v568
        %771 = vmatprep.subr.mxu0 0.0
        %772 = vmatpush1.msra.mxu0 %v569
        %773 = vmatprep.subr.mxu0 0.0
        %774 = vmatpush1.msra.mxu0 %v570
        %775 = vmatprep.subr.mxu0 0.0
        %776 = vmatpush1.msra.mxu0 %v571
        %777 = vmatprep.subr.mxu0 0.0
        %778 = vmatpush1.msra.mxu0 %v572
        %779 = vmatprep.subr.mxu0 0.0
        %780 = vmatpush1.msra.mxu0 %v573
        %781 = vmatprep.subr.mxu0 0.0
        %782 = vmatpush1.msra.mxu0 %v574
        %783 = vmatprep.subr.mxu0 0.0
        %784 = vmatpush1.msra.mxu0 %v575
        %785 = vmatprep.subr.mxu0 0.0
        %786 = vmatpush1.msra.mxu0 %v576
        %787 = vmatprep.subr.mxu0 0.0
        %788 = vmatpush1.msra.mxu0 %v577
        %789 = vmatprep.subr.mxu0 0.0
        %790 = vmatpush1.msra.mxu0 %v578
        %791 = vmatprep.subr.mxu0 0.0
        %792 = vmatpush1.msra.mxu0 %v579
        %793 = vmatprep.subr.mxu0 0.0
        %794 = vmatpush1.msra.mxu0 %v580
        %795 = vmatprep.subr.mxu0 0.0
        %796 = vmatpush1.msra.mxu0 0.0
        %797 = vmatprep.subr.mxu0 0.0
        %798 = vmatpush1.msra.mxu0 0.0
        %799 = vmatprep.subr.mxu0 0.0
        %800 = vmatpush1.msra.mxu0 0.0
        %801 = vmatprep.subr.mxu0 0.0
        %802 = vmatpush1.msra.mxu0 0.0
        %803 = vmatprep.subr.mxu0 0.0
        %804 = vmatpush1.msra.mxu0 0.0
        %805 = vmatprep.subr.mxu0 0.0
        %806 = vmatpush1.msra.mxu0 0.0
        %807 = vmatprep.subr.mxu0 0.0
        %808 = vmatpush1.msra.mxu0 0.0
        %809 = vmatprep.subr.mxu0 0.0
        %810 = vmatpush1.msra.mxu0 0.0
        %811 = vmatprep.subr.mxu0 0.0
        %812 = vmatpush1.msra.mxu0 0.0
        %813 = vmatprep.subr.mxu0 0.0
        %814 = vmatpush1.msra.mxu0 0.0
        %815 = vmatprep.subr.mxu0 0.0
        %816 = vmatpush1.msra.mxu0 0.0
        %817 = vmatprep.subr.mxu0 0.0
        %818 = vmatpush1.msra.mxu0 0.0
        %819 = vmatprep.subr.mxu0 0.0
        %820 = vmatpush1.msra.mxu0 0.0
        %821 = vmatprep.subr.mxu0 0.0
        %822 = vmatpush1.msra.mxu0 0.0
        %823 = vmatprep.subr.mxu0 0.0
        %824 = vmatpush1.msra.mxu0 0.0
        %825 = vmatprep.subr.mxu0 0.0
        %826 = vmatpush1.msra.mxu0 0.0
        %827 = vmatprep.mubr.f32.mxu0 0.0
        %828 = vmatmul.mubr.f32.gmra.mrb[0].mxu0 %v747
        %v829 = vpop.f32.mrb[0].mxu0
        %v830 = vadd.f32 0.0, %v829
        %v831 = vpop.f32.mrb[0].mxu0
        %832 = vmatprep.mubr.f32.mxu0 0.0
        %833 = vmatmul.mubr.f32.gmra.mrb[0].mxu0 %v748
        %v834 = vpop.f32.mrb[0].mxu0
        %v835 = vadd.f32 0.0, %v834
        %v836 = vpop.f32.mrb[0].mxu0
        %837 = vmatprep.mubr.f32.mxu0 0.0
        %838 = vmatmul.mubr.f32.gmra.mrb[0].mxu0 %v749
        %v839 = vpop.f32.mrb[0].mxu0
        %v840 = vadd.f32 0.0, %v839
        %v841 = vpop.f32.mrb[0].mxu0
        %842 = vmatprep.mubr.f32.mxu0 0.0
        %843 = vmatmul.mubr.f32.gmra.mrb[0].mxu0 %v750
        %v844 = vpop.f32.mrb[0].mxu0
        %v845 = vadd.f32 0.0, %v844
        %v846 = vpop.f32.mrb[0].mxu0
        %847 = vmatprep.mubr.f32.mxu0 0.0
        %848 = vmatmul.mubr.f32.gmra.mrb[0].mxu0 %v751
        %v849 = vpop.f32.mrb[0].mxu0
        %v850 = vadd.f32 0.0, %v849
        %v851 = vpop.f32.mrb[0].mxu0
        %852 = vmatprep.mubr.f32.mxu0 0.0
        %853 = vmatmul.mubr.f32.gmra.mrb[0].mxu0 %v752
        %v854 = vpop.f32.mrb[0].mxu0
        %v855 = vadd.f32 0.0, %v854
        %v856 = vpop.f32.mrb[0].mxu0
        %857 = vmatprep.mubr.f32.mxu0 0.0
        %858 = vmatmul.mubr.f32.gmra.mrb[0].mxu0 %v753
        %v859 = vpop.f32.mrb[0].mxu0
        %v860 = vadd.f32 0.0, %v859
        %v861 = vpop.f32.mrb[0].mxu0
        %862 = vmatprep.mubr.f32.mxu0 0.0
        %863 = vmatmul.mubr.f32.gmra.mrb[0].mxu0 %v754
        %v864 = vpop.f32.mrb[0].mxu0
        %v865 = vadd.f32 0.0, %v864
        %v866 = vpop.f32.mrb[0].mxu0
        %867 = vmatprep.mubr.f32.mxu0 0.0
        %868 = vmatmul.mubr.f32.gmra.mrb[0].mxu0 %v755
        %v869 = vpop.f32.mrb[0].mxu0
        %v870 = vadd.f32 0.0, %v869
        %v871 = vpop.f32.mrb[0].mxu0
        %872 = vmatprep.mubr.f32.mxu0 0.0
        %873 = vmatmul.mubr.f32.gmra.mrb[0].mxu0 %v756
        %v874 = vpop.f32.mrb[0].mxu0
        %v875 = vadd.f32 0.0, %v874
        %v876 = vpop.f32.mrb[0].mxu0
        %877 = vmatprep.mubr.f32.mxu0 0.0
        %878 = vmatmul.mubr.f32.gmra.mrb[0].mxu0 %v757
        %v879 = vpop.f32.mrb[0].mxu0
        %v880 = vadd.f32 0.0, %v879
        %v881 = vpop.f32.mrb[0].mxu0
        %882 = vmatprep.mubr.f32.mxu0 0.0
        %883 = vmatmul.mubr.f32.gmra.mrb[0].mxu0 %v758
        %v884 = vpop.f32.mrb[0].mxu0
        %v885 = vadd.f32 0.0, %v884
        %v886 = vpop.f32.mrb[0].mxu0
        %887 = vmatprep.mubr.f32.mxu0 0.0
        %888 = vmatmul.mubr.f32.gmra.mrb[0].mxu0 %v759
        %v889 = vpop.f32.mrb[0].mxu0
        %v890 = vadd.f32 0.0, %v889
        %v891 = vpop.f32.mrb[0].mxu0
        %892 = vmatprep.mubr.f32.mxu0 0.0
        %893 = vmatmul.mubr.f32.gmra.mrb[0].mxu0 %v760
        %v894 = vpop.f32.mrb[0].mxu0
        %v895 = vadd.f32 0.0, %v894
        %v896 = vpop.f32.mrb[0].mxu0
        %897 = vmatprep.mubr.f32.mxu0 0.0
        %898 = vmatmul.mubr.f32.gmra.mrb[0].mxu0 %v761
        %v899 = vpop.f32.mrb[0].mxu0
        %v900 = vadd.f32 0.0, %v899
        %v901 = vpop.f32.mrb[0].mxu0
        %902 = vmatprep.mubr.f32.mxu0 0.0
        %903 = vmatmul.mubr.f32.gmra.mrb[0].mxu0 %v762
        %v904 = vpop.f32.mrb[0].mxu0
        %v905 = vadd.f32 0.0, %v904
        %v906 = vpop.f32.mrb[0].mxu0
        %907 = vdwg.mxu0
        %s908 = scalar_lea.vmem [#allocation2], 32
        %v909 = vld [vmem:[%s908] sm:$0xff]
        %v910 = vld [vmem:[%s908 + $0x8] sm:$0xff]
        %v911 = vld [vmem:[%s908 + $0x10] sm:$0xff]
        %v912 = vld [vmem:[%s908 + $0x18] sm:$0xff]
        %vm913 = vcmask 130048
        %v915 = vsel %vm913, %v830, 0
        %v918 = vsel %vm913, %v835, 0
        %v921 = vsel %vm913, %v840, 0
        %v924 = vsel %vm913, %v845, 0
        %v927 = vsel %vm913, %v850, 0
        %v930 = vsel %vm913, %v855, 0
        %v933 = vsel %vm913, %v860, 0
        %v936 = vsel %vm913, %v865, 0
        %v939 = vsel %vm913, %v870, 0
        %v942 = vsel %vm913, %v875, 0
        %v945 = vsel %vm913, %v880, 0
        %v948 = vsel %vm913, %v885, 0
        %v951 = vsel %vm913, %v890, 0
        %v954 = vsel %vm913, %v895, 0
        %v957 = vsel %vm913, %v900, 0
        %v960 = vsel %vm913, %v905, 0
        %962 = vmatprep.subr.mxu0 %v910
        %963 = vmatpush1.msra.mxu0 %v909
        %964 = vmatprep.subr.mxu0 %v912
        %965 = vmatpush1.msra.mxu0 %v911
        %966 = vmatprep.subr.mxu0 0.0
        %967 = vmatpush1.msra.mxu0 0.0
        %968 = vmatprep.subr.mxu0 0.0
        %969 = vmatpush1.msra.mxu0 0.0
        %970 = vmatprep.subr.mxu0 0.0
        %971 = vmatpush1.msra.mxu0 0.0
        %972 = vmatprep.subr.mxu0 0.0
        %973 = vmatpush1.msra.mxu0 0.0
        %974 = vmatprep.subr.mxu0 0.0
        %975 = vmatpush1.msra.mxu0 0.0
        %976 = vmatprep.subr.mxu0 0.0
        %977 = vmatpush1.msra.mxu0 0.0
        %978 = vmatprep.subr.mxu0 0.0
        %979 = vmatpush1.msra.mxu0 0.0
        %980 = vmatprep.subr.mxu0 0.0
        %981 = vmatpush1.msra.mxu0 0.0
        %982 = vmatprep.subr.mxu0 0.0
        %983 = vmatpush1.msra.mxu0 0.0
        %984 = vmatprep.subr.mxu0 0.0
        %985 = vmatpush1.msra.mxu0 0.0
        %986 = vmatprep.subr.mxu0 0.0
        %987 = vmatpush1.msra.mxu0 0.0
        %988 = vmatprep.subr.mxu0 0.0
        %989 = vmatpush1.msra.mxu0 0.0
        %990 = vmatprep.subr.mxu0 0.0
        %991 = vmatpush1.msra.mxu0 0.0
        %992 = vmatprep.subr.mxu0 0.0
        %993 = vmatpush1.msra.mxu0 0.0
        %994 = vmatprep.subr.mxu0 0.0
        %995 = vmatpush1.msra.mxu0 0.0
        %996 = vmatprep.subr.mxu0 0.0
        %997 = vmatpush1.msra.mxu0 0.0
        %998 = vmatprep.subr.mxu0 0.0
        %999 = vmatpush1.msra.mxu0 0.0
        %1000 = vmatprep.subr.mxu0 0.0
        %1001 = vmatpush1.msra.mxu0 0.0
        %1002 = vmatprep.subr.mxu0 0.0
        %1003 = vmatpush1.msra.mxu0 0.0
        %1004 = vmatprep.subr.mxu0 0.0
        %1005 = vmatpush1.msra.mxu0 0.0
        %1006 = vmatprep.subr.mxu0 0.0
        %1007 = vmatpush1.msra.mxu0 0.0
        %1008 = vmatprep.subr.mxu0 0.0
        %1009 = vmatpush1.msra.mxu0 0.0
        %1010 = vmatprep.subr.mxu0 0.0
        %1011 = vmatpush1.msra.mxu0 0.0
        %1012 = vmatprep.subr.mxu0 0.0
        %1013 = vmatpush1.msra.mxu0 0.0
        %1014 = vmatprep.subr.mxu0 0.0
        %1015 = vmatpush1.msra.mxu0 0.0
        %1016 = vmatprep.subr.mxu0 0.0
        %1017 = vmatpush1.msra.mxu0 0.0
        %1018 = vmatprep.subr.mxu0 0.0
        %1019 = vmatpush1.msra.mxu0 0.0
        %1020 = vmatprep.subr.mxu0 0.0
        %1021 = vmatpush1.msra.mxu0 0.0
        %1022 = vmatprep.subr.mxu0 0.0
        %1023 = vmatpush1.msra.mxu0 0.0
        %1024 = vmatprep.subr.mxu0 0.0
        %1025 = vmatpush1.msra.mxu0 0.0
        %1026 = vmatprep.mubr.f32.mxu0 0.0
        %1027 = vmatmul.mubr.f32.gmra.mrb[0].mxu0 %v915
        %v1028 = vpop.f32.mrb[0].mxu0
        %v1029 = vadd.f32 0.0, %v1028
        %v1030 = vpop.f32.mrb[0].mxu0
        %v1031 = vadd.f32 0.0, %v1030
        %1032 = vmatprep.mubr.f32.mxu0 0.0
        %1033 = vmatmul.mubr.f32.gmra.mrb[0].mxu0 %v918
        %v1034 = vpop.f32.mrb[0].mxu0
        %v1035 = vadd.f32 0.0, %v1034
        %v1036 = vpop.f32.mrb[0].mxu0
        %v1037 = vadd.f32 0.0, %v1036
        %1038 = vmatprep.mubr.f32.mxu0 0.0
        %1039 = vmatmul.mubr.f32.gmra.mrb[0].mxu0 %v921
        %v1040 = vpop.f32.mrb[0].mxu0
        %v1041 = vadd.f32 0.0, %v1040
        %v1042 = vpop.f32.mrb[0].mxu0
        %v1043 = vadd.f32 0.0, %v1042
        %1044 = vmatprep.mubr.f32.mxu0 0.0
        %1045 = vmatmul.mubr.f32.gmra.mrb[0].mxu0 %v924
        %v1046 = vpop.f32.mrb[0].mxu0
        %v1047 = vadd.f32 0.0, %v1046
        %v1048 = vpop.f32.mrb[0].mxu0
        %v1049 = vadd.f32 0.0, %v1048
        %1050 = vmatprep.mubr.f32.mxu0 0.0
        %1051 = vmatmul.mubr.f32.gmra.mrb[0].mxu0 %v927
        %v1052 = vpop.f32.mrb[0].mxu0
        %v1053 = vadd.f32 0.0, %v1052
        %v1054 = vpop.f32.mrb[0].mxu0
        %v1055 = vadd.f32 0.0, %v1054
        %1056 = vmatprep.mubr.f32.mxu0 0.0
        %1057 = vmatmul.mubr.f32.gmra.mrb[0].mxu0 %v930
        %v1058 = vpop.f32.mrb[0].mxu0
        %v1059 = vadd.f32 0.0, %v1058
        %v1060 = vpop.f32.mrb[0].mxu0
        %v1061 = vadd.f32 0.0, %v1060
        %1062 = vmatprep.mubr.f32.mxu0 0.0
        %1063 = vmatmul.mubr.f32.gmra.mrb[0].mxu0 %v933
        %v1064 = vpop.f32.mrb[0].mxu0
        %v1065 = vadd.f32 0.0, %v1064
        %v1066 = vpop.f32.mrb[0].mxu0
        %v1067 = vadd.f32 0.0, %v1066
        %1068 = vmatprep.mubr.f32.mxu0 0.0
        %1069 = vmatmul.mubr.f32.gmra.mrb[0].mxu0 %v936
        %v1070 = vpop.f32.mrb[0].mxu0
        %v1071 = vadd.f32 0.0, %v1070
        %v1072 = vpop.f32.mrb[0].mxu0
        %v1073 = vadd.f32 0.0, %v1072
        %1074 = vmatprep.mubr.f32.mxu0 0.0
        %1075 = vmatmul.mubr.f32.gmra.mrb[0].mxu0 %v939
        %v1076 = vpop.f32.mrb[0].mxu0
        %v1077 = vadd.f32 0.0, %v1076
        %v1078 = vpop.f32.mrb[0].mxu0
        %v1079 = vadd.f32 0.0, %v1078
        %1080 = vmatprep.mubr.f32.mxu0 0.0
        %1081 = vmatmul.mubr.f32.gmra.mrb[0].mxu0 %v942
        %v1082 = vpop.f32.mrb[0].mxu0
        %v1083 = vadd.f32 0.0, %v1082
        %v1084 = vpop.f32.mrb[0].mxu0
        %v1085 = vadd.f32 0.0, %v1084
        %1086 = vmatprep.mubr.f32.mxu0 0.0
        %1087 = vmatmul.mubr.f32.gmra.mrb[0].mxu0 %v945
        %v1088 = vpop.f32.mrb[0].mxu0
        %v1089 = vadd.f32 0.0, %v1088
        %v1090 = vpop.f32.mrb[0].mxu0
        %v1091 = vadd.f32 0.0, %v1090
        %1092 = vmatprep.mubr.f32.mxu0 0.0
        %1093 = vmatmul.mubr.f32.gmra.mrb[0].mxu0 %v948
        %v1094 = vpop.f32.mrb[0].mxu0
        %v1095 = vadd.f32 0.0, %v1094
        %v1096 = vpop.f32.mrb[0].mxu0
        %v1097 = vadd.f32 0.0, %v1096
        %1098 = vmatprep.mubr.f32.mxu0 0.0
        %1099 = vmatmul.mubr.f32.gmra.mrb[0].mxu0 %v951
        %v1100 = vpop.f32.mrb[0].mxu0
        %v1101 = vadd.f32 0.0, %v1100
        %v1102 = vpop.f32.mrb[0].mxu0
        %v1103 = vadd.f32 0.0, %v1102
        %1104 = vmatprep.mubr.f32.mxu0 0.0
        %1105 = vmatmul.mubr.f32.gmra.mrb[0].mxu0 %v954
        %v1106 = vpop.f32.mrb[0].mxu0
        %v1107 = vadd.f32 0.0, %v1106
        %v1108 = vpop.f32.mrb[0].mxu0
        %v1109 = vadd.f32 0.0, %v1108
        %1110 = vmatprep.mubr.f32.mxu0 0.0
        %1111 = vmatmul.mubr.f32.gmra.mrb[0].mxu0 %v957
        %v1112 = vpop.f32.mrb[0].mxu0
        %v1113 = vadd.f32 0.0, %v1112
        %v1114 = vpop.f32.mrb[0].mxu0
        %v1115 = vadd.f32 0.0, %v1114
        %1116 = vmatprep.mubr.f32.mxu0 0.0
        %1117 = vmatmul.mubr.f32.gmra.mrb[0].mxu0 %v960
        %v1118 = vpop.f32.mrb[0].mxu0
        %v1119 = vadd.f32 0.0, %v1118
        %v1120 = vpop.f32.mrb[0].mxu0
        %v1121 = vadd.f32 0.0, %v1120
        %1122 = vdwg.mxu0
        %v1124 = vsel %vm913, %v664, 0
        %v1127 = vsel %vm913, %v669, 0
        %v1130 = vsel %vm913, %v674, 0
        %v1133 = vsel %vm913, %v679, 0
        %v1136 = vsel %vm913, %v684, 0
        %v1139 = vsel %vm913, %v689, 0
        %v1142 = vsel %vm913, %v694, 0
        %v1145 = vsel %vm913, %v699, 0
        %v1148 = vsel %vm913, %v704, 0
        %v1151 = vsel %vm913, %v709, 0
        %v1154 = vsel %vm913, %v714, 0
        %v1157 = vsel %vm913, %v719, 0
        %v1160 = vsel %vm913, %v724, 0
        %v1163 = vsel %vm913, %v729, 0
        %v1166 = vsel %vm913, %v734, 0
        %v1169 = vsel %vm913, %v739, 0
        %1171 = vmatprep.subr.mxu0 %v743
        %1172 = vmatpush1.msra.mxu0 %v742
        %1173 = vmatprep.subr.mxu0 %v745
        %1174 = vmatpush1.msra.mxu0 %v744
        %1175 = vmatprep.subr.mxu0 0.0
        %1176 = vmatpush1.msra.mxu0 0.0
        %1177 = vmatprep.subr.mxu0 0.0
        %1178 = vmatpush1.msra.mxu0 0.0
        %1179 = vmatprep.subr.mxu0 0.0
        %1180 = vmatpush1.msra.mxu0 0.0
        %1181 = vmatprep.subr.mxu0 0.0
        %1182 = vmatpush1.msra.mxu0 0.0
        %1183 = vmatprep.subr.mxu0 0.0
        %1184 = vmatpush1.msra.mxu0 0.0
        %1185 = vmatprep.subr.mxu0 0.0
        %1186 = vmatpush1.msra.mxu0 0.0
        %1187 = vmatprep.subr.mxu0 0.0
        %1188 = vmatpush1.msra.mxu0 0.0
        %1189 = vmatprep.subr.mxu0 0.0
        %1190 = vmatpush1.msra.mxu0 0.0
        %1191 = vmatprep.subr.mxu0 0.0
        %1192 = vmatpush1.msra.mxu0 0.0
        %1193 = vmatprep.subr.mxu0 0.0
        %1194 = vmatpush1.msra.mxu0 0.0
        %1195 = vmatprep.subr.mxu0 0.0
        %1196 = vmatpush1.msra.mxu0 0.0
        %1197 = vmatprep.subr.mxu0 0.0
        %1198 = vmatpush1.msra.mxu0 0.0
        %1199 = vmatprep.subr.mxu0 0.0
        %1200 = vmatpush1.msra.mxu0 0.0
        %1201 = vmatprep.subr.mxu0 0.0
        %1202 = vmatpush1.msra.mxu0 0.0
        %1203 = vmatprep.subr.mxu0 0.0
        %1204 = vmatpush1.msra.mxu0 0.0
        %1205 = vmatprep.subr.mxu0 0.0
        %1206 = vmatpush1.msra.mxu0 0.0
        %1207 = vmatprep.subr.mxu0 0.0
        %1208 = vmatpush1.msra.mxu0 0.0
        %1209 = vmatprep.subr.mxu0 0.0
        %1210 = vmatpush1.msra.mxu0 0.0
        %1211 = vmatprep.subr.mxu0 0.0
        %1212 = vmatpush1.msra.mxu0 0.0
        %1213 = vmatprep.subr.mxu0 0.0
        %1214 = vmatpush1.msra.mxu0 0.0
        %1215 = vmatprep.subr.mxu0 0.0
        %1216 = vmatpush1.msra.mxu0 0.0
        %1217 = vmatprep.subr.mxu0 0.0
        %1218 = vmatpush1.msra.mxu0 0.0
        %1219 = vmatprep.subr.mxu0 0.0
        %1220 = vmatpush1.msra.mxu0 0.0
        %1221 = vmatprep.subr.mxu0 0.0
        %1222 = vmatpush1.msra.mxu0 0.0
        %1223 = vmatprep.subr.mxu0 0.0
        %1224 = vmatpush1.msra.mxu0 0.0
        %1225 = vmatprep.subr.mxu0 0.0
        %1226 = vmatpush1.msra.mxu0 0.0
        %1227 = vmatprep.subr.mxu0 0.0
        %1228 = vmatpush1.msra.mxu0 0.0
        %1229 = vmatprep.subr.mxu0 0.0
        %1230 = vmatpush1.msra.mxu0 0.0
        %1231 = vmatprep.subr.mxu0 0.0
        %1232 = vmatpush1.msra.mxu0 0.0
        %1233 = vmatprep.subr.mxu0 0.0
        %1234 = vmatpush1.msra.mxu0 0.0
        %1235 = vmatprep.mubr.f32.mxu0 0.0
        %1236 = vmatmul.mubr.f32.gmra.mrb[0].mxu0 %v1124
        %v1237 = vpop.f32.mrb[0].mxu0
        %v1238 = vadd.f32 %v1029, %v1237
        %v1239 = vpop.f32.mrb[0].mxu0
        %v1240 = vadd.f32 %v1031, %v1239
        %1241 = vmatprep.mubr.f32.mxu0 0.0
        %1242 = vmatmul.mubr.f32.gmra.mrb[0].mxu0 %v1127
        %v1243 = vpop.f32.mrb[0].mxu0
        %v1244 = vadd.f32 %v1035, %v1243
        %v1245 = vpop.f32.mrb[0].mxu0
        %v1246 = vadd.f32 %v1037, %v1245
        %1247 = vmatprep.mubr.f32.mxu0 0.0
        %1248 = vmatmul.mubr.f32.gmra.mrb[0].mxu0 %v1130
        %v1249 = vpop.f32.mrb[0].mxu0
        %v1250 = vadd.f32 %v1041, %v1249
        %v1251 = vpop.f32.mrb[0].mxu0
        %v1252 = vadd.f32 %v1043, %v1251
        %1253 = vmatprep.mubr.f32.mxu0 0.0
        %1254 = vmatmul.mubr.f32.gmra.mrb[0].mxu0 %v1133
        %v1255 = vpop.f32.mrb[0].mxu0
        %v1256 = vadd.f32 %v1047, %v1255
        %v1257 = vpop.f32.mrb[0].mxu0
        %v1258 = vadd.f32 %v1049, %v1257
        %1259 = vmatprep.mubr.f32.mxu0 0.0
        %1260 = vmatmul.mubr.f32.gmra.mrb[0].mxu0 %v1136
        %v1261 = vpop.f32.mrb[0].mxu0
        %v1262 = vadd.f32 %v1053, %v1261
        %v1263 = vpop.f32.mrb[0].mxu0
        %v1264 = vadd.f32 %v1055, %v1263
        %1265 = vmatprep.mubr.f32.mxu0 0.0
        %1266 = vmatmul.mubr.f32.gmra.mrb[0].mxu0 %v1139
        %v1267 = vpop.f32.mrb[0].mxu0
        %v1268 = vadd.f32 %v1059, %v1267
        %v1269 = vpop.f32.mrb[0].mxu0
        %v1270 = vadd.f32 %v1061, %v1269
        %1271 = vmatprep.mubr.f32.mxu0 0.0
        %1272 = vmatmul.mubr.f32.gmra.mrb[0].mxu0 %v1142
        %v1273 = vpop.f32.mrb[0].mxu0
        %v1274 = vadd.f32 %v1065, %v1273
        %v1275 = vpop.f32.mrb[0].mxu0
        %v1276 = vadd.f32 %v1067, %v1275
        %1277 = vmatprep.mubr.f32.mxu0 0.0
        %1278 = vmatmul.mubr.f32.gmra.mrb[0].mxu0 %v1145
        %v1279 = vpop.f32.mrb[0].mxu0
        %v1280 = vadd.f32 %v1071, %v1279
        %v1281 = vpop.f32.mrb[0].mxu0
        %v1282 = vadd.f32 %v1073, %v1281
        %1283 = vmatprep.mubr.f32.mxu0 0.0
        %1284 = vmatmul.mubr.f32.gmra.mrb[0].mxu0 %v1148
        %v1285 = vpop.f32.mrb[0].mxu0
        %v1286 = vadd.f32 %v1077, %v1285
        %v1287 = vpop.f32.mrb[0].mxu0
        %v1288 = vadd.f32 %v1079, %v1287
        %1289 = vmatprep.mubr.f32.mxu0 0.0
        %1290 = vmatmul.mubr.f32.gmra.mrb[0].mxu0 %v1151
        %v1291 = vpop.f32.mrb[0].mxu0
        %v1292 = vadd.f32 %v1083, %v1291
        %v1293 = vpop.f32.mrb[0].mxu0
        %v1294 = vadd.f32 %v1085, %v1293
        %1295 = vmatprep.mubr.f32.mxu0 0.0
        %1296 = vmatmul.mubr.f32.gmra.mrb[0].mxu0 %v1154
        %v1297 = vpop.f32.mrb[0].mxu0
        %v1298 = vadd.f32 %v1089, %v1297
        %v1299 = vpop.f32.mrb[0].mxu0
        %v1300 = vadd.f32 %v1091, %v1299
        %1301 = vmatprep.mubr.f32.mxu0 0.0
        %1302 = vmatmul.mubr.f32.gmra.mrb[0].mxu0 %v1157
        %v1303 = vpop.f32.mrb[0].mxu0
        %v1304 = vadd.f32 %v1095, %v1303
        %v1305 = vpop.f32.mrb[0].mxu0
        %v1306 = vadd.f32 %v1097, %v1305
        %1307 = vmatprep.mubr.f32.mxu0 0.0
        %1308 = vmatmul.mubr.f32.gmra.mrb[0].mxu0 %v1160
        %v1309 = vpop.f32.mrb[0].mxu0
        %v1310 = vadd.f32 %v1101, %v1309
        %v1311 = vpop.f32.mrb[0].mxu0
        %v1312 = vadd.f32 %v1103, %v1311
        %1313 = vmatprep.mubr.f32.mxu0 0.0
        %1314 = vmatmul.mubr.f32.gmra.mrb[0].mxu0 %v1163
        %v1315 = vpop.f32.mrb[0].mxu0
        %v1316 = vadd.f32 %v1107, %v1315
        %v1317 = vpop.f32.mrb[0].mxu0
        %v1318 = vadd.f32 %v1109, %v1317
        %1319 = vmatprep.mubr.f32.mxu0 0.0
        %1320 = vmatmul.mubr.f32.gmra.mrb[0].mxu0 %v1166
        %v1321 = vpop.f32.mrb[0].mxu0
        %v1322 = vadd.f32 %v1113, %v1321
        %v1323 = vpop.f32.mrb[0].mxu0
        %v1324 = vadd.f32 %v1115, %v1323
        %1325 = vmatprep.mubr.f32.mxu0 0.0
        %1326 = vmatmul.mubr.f32.gmra.mrb[0].mxu0 %v1169
        %v1327 = vpop.f32.mrb[0].mxu0
        %v1328 = vadd.f32 %v1119, %v1327
        %v1329 = vpop.f32.mrb[0].mxu0
        %v1330 = vadd.f32 %v1121, %v1329
        %1331 = vdwg.mxu0
        %s1332 = scalar_lea.vmem %s2, 256
        %v1333 = vld [vmem:[%s1332] sm:$0xff]
        %v1334 = vld [vmem:[%s1332 + $0x8] sm:$0xff]
        %v1335 = vld [vmem:[%s1332 + $0x10] sm:$0xff]
        %v1336 = vld [vmem:[%s1332 + $0x18] sm:$0xff]
        %v1337 = vld [vmem:[%s1332 + $0x20] sm:$0xff]
        %v1338 = vld [vmem:[%s1332 + $0x28] sm:$0xff]
        %v1339 = vld [vmem:[%s1332 + $0x30] sm:$0xff]
        %v1340 = vld [vmem:[%s1332 + $0x38] sm:$0xff]
        %v1341 = vld [vmem:[%s1332 + $0x40] sm:$0xff]
        %v1342 = vld [vmem:[%s1332 + $0x48] sm:$0xff]
        %v1343 = vld [vmem:[%s1332 + $0x50] sm:$0xff]
        %v1344 = vld [vmem:[%s1332 + $0x58] sm:$0xff]
        %v1345 = vld [vmem:[%s1332 + $0x60] sm:$0xff]
        %v1346 = vld [vmem:[%s1332 + $0x68] sm:$0xff]
        %v1347 = vld [vmem:[%s1332 + $0x70] sm:$0xff]
        %v1348 = vld [vmem:[%s1332 + $0x78] sm:$0xff]
        %1349 = vmatprep.subr.mxu0 0.0
        %1350 = vmatpush1.msra.mxu0 %v565
        %1351 = vmatprep.subr.mxu0 0.0
        %1352 = vmatpush1.msra.mxu0 %v566
        %1353 = vmatprep.subr.mxu0 0.0
        %1354 = vmatpush1.msra.mxu0 %v567
        %1355 = vmatprep.subr.mxu0 0.0
        %1356 = vmatpush1.msra.mxu0 %v568
        %1357 = vmatprep.subr.mxu0 0.0
        %1358 = vmatpush1.msra.mxu0 %v569
        %1359 = vmatprep.subr.mxu0 0.0
        %1360 = vmatpush1.msra.mxu0 %v570
        %1361 = vmatprep.subr.mxu0 0.0
        %1362 = vmatpush1.msra.mxu0 %v571
        %1363 = vmatprep.subr.mxu0 0.0
        %1364 = vmatpush1.msra.mxu0 %v572
        %1365 = vmatprep.subr.mxu0 0.0
        %1366 = vmatpush1.msra.mxu0 %v573
        %1367 = vmatprep.subr.mxu0 0.0
        %1368 = vmatpush1.msra.mxu0 %v574
        %1369 = vmatprep.subr.mxu0 0.0
        %1370 = vmatpush1.msra.mxu0 %v575
        %1371 = vmatprep.subr.mxu0 0.0
        %1372 = vmatpush1.msra.mxu0 %v576
        %1373 = vmatprep.subr.mxu0 0.0
        %1374 = vmatpush1.msra.mxu0 %v577
        %1375 = vmatprep.subr.mxu0 0.0
        %1376 = vmatpush1.msra.mxu0 %v578
        %1377 = vmatprep.subr.mxu0 0.0
        %1378 = vmatpush1.msra.mxu0 %v579
        %1379 = vmatprep.subr.mxu0 0.0
        %1380 = vmatpush1.msra.mxu0 %v580
        %1381 = vmatprep.subr.mxu0 0.0
        %1382 = vmatpush1.msra.mxu0 0.0
        %1383 = vmatprep.subr.mxu0 0.0
        %1384 = vmatpush1.msra.mxu0 0.0
        %1385 = vmatprep.subr.mxu0 0.0
        %1386 = vmatpush1.msra.mxu0 0.0
        %1387 = vmatprep.subr.mxu0 0.0
        %1388 = vmatpush1.msra.mxu0 0.0
        %1389 = vmatprep.subr.mxu0 0.0
        %1390 = vmatpush1.msra.mxu0 0.0
        %1391 = vmatprep.subr.mxu0 0.0
        %1392 = vmatpush1.msra.mxu0 0.0
        %1393 = vmatprep.subr.mxu0 0.0
        %1394 = vmatpush1.msra.mxu0 0.0
        %1395 = vmatprep.subr.mxu0 0.0
        %1396 = vmatpush1.msra.mxu0 0.0
        %1397 = vmatprep.subr.mxu0 0.0
        %1398 = vmatpush1.msra.mxu0 0.0
        %1399 = vmatprep.subr.mxu0 0.0
        %1400 = vmatpush1.msra.mxu0 0.0
        %1401 = vmatprep.subr.mxu0 0.0
        %1402 = vmatpush1.msra.mxu0 0.0
        %1403 = vmatprep.subr.mxu0 0.0
        %1404 = vmatpush1.msra.mxu0 0.0
        %1405 = vmatprep.subr.mxu0 0.0
        %1406 = vmatpush1.msra.mxu0 0.0
        %1407 = vmatprep.subr.mxu0 0.0
        %1408 = vmatpush1.msra.mxu0 0.0
        %1409 = vmatprep.subr.mxu0 0.0
        %1410 = vmatpush1.msra.mxu0 0.0
        %1411 = vmatprep.subr.mxu0 0.0
        %1412 = vmatpush1.msra.mxu0 0.0
        %1413 = vmatprep.mubr.f32.mxu0 0.0
        %1414 = vmatmul.mubr.f32.gmra.mrb[0].mxu0 %v1333
        %v1415 = vpop.f32.mrb[0].mxu0
        %v1416 = vadd.f32 0.0, %v1415
        %v1417 = vpop.f32.mrb[0].mxu0
        %1418 = vmatprep.mubr.f32.mxu0 0.0
        %1419 = vmatmul.mubr.f32.gmra.mrb[0].mxu0 %v1334
        %v1420 = vpop.f32.mrb[0].mxu0
        %v1421 = vadd.f32 0.0, %v1420
        %v1422 = vpop.f32.mrb[0].mxu0
        %1423 = vmatprep.mubr.f32.mxu0 0.0
        %1424 = vmatmul.mubr.f32.gmra.mrb[0].mxu0 %v1335
        %v1425 = vpop.f32.mrb[0].mxu0
        %v1426 = vadd.f32 0.0, %v1425
        %v1427 = vpop.f32.mrb[0].mxu0
        %1428 = vmatprep.mubr.f32.mxu0 0.0
        %1429 = vmatmul.mubr.f32.gmra.mrb[0].mxu0 %v1336
        %v1430 = vpop.f32.mrb[0].mxu0
        %v1431 = vadd.f32 0.0, %v1430
        %v1432 = vpop.f32.mrb[0].mxu0
        %1433 = vmatprep.mubr.f32.mxu0 0.0
        %1434 = vmatmul.mubr.f32.gmra.mrb[0].mxu0 %v1337
        %v1435 = vpop.f32.mrb[0].mxu0
        %v1436 = vadd.f32 0.0, %v1435
        %v1437 = vpop.f32.mrb[0].mxu0
        %1438 = vmatprep.mubr.f32.mxu0 0.0
        %1439 = vmatmul.mubr.f32.gmra.mrb[0].mxu0 %v1338
        %v1440 = vpop.f32.mrb[0].mxu0
        %v1441 = vadd.f32 0.0, %v1440
        %v1442 = vpop.f32.mrb[0].mxu0
        %1443 = vmatprep.mubr.f32.mxu0 0.0
        %1444 = vmatmul.mubr.f32.gmra.mrb[0].mxu0 %v1339
        %v1445 = vpop.f32.mrb[0].mxu0
        %v1446 = vadd.f32 0.0, %v1445
        %v1447 = vpop.f32.mrb[0].mxu0
        %1448 = vmatprep.mubr.f32.mxu0 0.0
        %1449 = vmatmul.mubr.f32.gmra.mrb[0].mxu0 %v1340
        %v1450 = vpop.f32.mrb[0].mxu0
        %v1451 = vadd.f32 0.0, %v1450
        %v1452 = vpop.f32.mrb[0].mxu0
        %1453 = vmatprep.mubr.f32.mxu0 0.0
        %1454 = vmatmul.mubr.f32.gmra.mrb[0].mxu0 %v1341
        %v1455 = vpop.f32.mrb[0].mxu0
        %v1456 = vadd.f32 0.0, %v1455
        %v1457 = vpop.f32.mrb[0].mxu0
        %1458 = vmatprep.mubr.f32.mxu0 0.0
        %1459 = vmatmul.mubr.f32.gmra.mrb[0].mxu0 %v1342
        %v1460 = vpop.f32.mrb[0].mxu0
        %v1461 = vadd.f32 0.0, %v1460
        %v1462 = vpop.f32.mrb[0].mxu0
        %1463 = vmatprep.mubr.f32.mxu0 0.0
        %1464 = vmatmul.mubr.f32.gmra.mrb[0].mxu0 %v1343
        %v1465 = vpop.f32.mrb[0].mxu0
        %v1466 = vadd.f32 0.0, %v1465
        %v1467 = vpop.f32.mrb[0].mxu0
        %1468 = vmatprep.mubr.f32.mxu0 0.0
        %1469 = vmatmul.mubr.f32.gmra.mrb[0].mxu0 %v1344
        %v1470 = vpop.f32.mrb[0].mxu0
        %v1471 = vadd.f32 0.0, %v1470
        %v1472 = vpop.f32.mrb[0].mxu0
        %1473 = vmatprep.mubr.f32.mxu0 0.0
        %1474 = vmatmul.mubr.f32.gmra.mrb[0].mxu0 %v1345
        %v1475 = vpop.f32.mrb[0].mxu0
        %v1476 = vadd.f32 0.0, %v1475
        %v1477 = vpop.f32.mrb[0].mxu0
        %1478 = vmatprep.mubr.f32.mxu0 0.0
        %1479 = vmatmul.mubr.f32.gmra.mrb[0].mxu0 %v1346
        %v1480 = vpop.f32.mrb[0].mxu0
        %v1481 = vadd.f32 0.0, %v1480
        %v1482 = vpop.f32.mrb[0].mxu0
        %1483 = vmatprep.mubr.f32.mxu0 0.0
        %1484 = vmatmul.mubr.f32.gmra.mrb[0].mxu0 %v1347
        %v1485 = vpop.f32.mrb[0].mxu0
        %v1486 = vadd.f32 0.0, %v1485
        %v1487 = vpop.f32.mrb[0].mxu0
        %1488 = vmatprep.mubr.f32.mxu0 0.0
        %1489 = vmatmul.mubr.f32.gmra.mrb[0].mxu0 %v1348
        %v1490 = vpop.f32.mrb[0].mxu0
        %v1491 = vadd.f32 0.0, %v1490
        %v1492 = vpop.f32.mrb[0].mxu0
        %1493 = vdwg.mxu0
        %s1494 = scalar_lea.vmem [#allocation2], 64
        %v1495 = vld [vmem:[%s1494] sm:$0xff]
        %v1496 = vld [vmem:[%s1494 + $0x8] sm:$0xff]
        %v1497 = vld [vmem:[%s1494 + $0x10] sm:$0xff]
        %v1498 = vld [vmem:[%s1494 + $0x18] sm:$0xff]
        %v1500 = vsel %vm913, %v1416, 0
        %v1503 = vsel %vm913, %v1421, 0
        %v1506 = vsel %vm913, %v1426, 0
        %v1509 = vsel %vm913, %v1431, 0
        %v1512 = vsel %vm913, %v1436, 0
        %v1515 = vsel %vm913, %v1441, 0
        %v1518 = vsel %vm913, %v1446, 0
        %v1521 = vsel %vm913, %v1451, 0
        %v1524 = vsel %vm913, %v1456, 0
        %v1527 = vsel %vm913, %v1461, 0
        %v1530 = vsel %vm913, %v1466, 0
        %v1533 = vsel %vm913, %v1471, 0
        %v1536 = vsel %vm913, %v1476, 0
        %v1539 = vsel %vm913, %v1481, 0
        %v1542 = vsel %vm913, %v1486, 0
        %v1545 = vsel %vm913, %v1491, 0
        %1547 = vmatprep.subr.mxu0 %v1496
        %1548 = vmatpush1.msra.mxu0 %v1495
        %1549 = vmatprep.subr.mxu0 %v1498
        %1550 = vmatpush1.msra.mxu0 %v1497
        %1551 = vmatprep.subr.mxu0 0.0
        %1552 = vmatpush1.msra.mxu0 0.0
        %1553 = vmatprep.subr.mxu0 0.0
        %1554 = vmatpush1.msra.mxu0 0.0
        %1555 = vmatprep.subr.mxu0 0.0
        %1556 = vmatpush1.msra.mxu0 0.0
        %1557 = vmatprep.subr.mxu0 0.0
        %1558 = vmatpush1.msra.mxu0 0.0
        %1559 = vmatprep.subr.mxu0 0.0
        %1560 = vmatpush1.msra.mxu0 0.0
        %1561 = vmatprep.subr.mxu0 0.0
        %1562 = vmatpush1.msra.mxu0 0.0
        %1563 = vmatprep.subr.mxu0 0.0
        %1564 = vmatpush1.msra.mxu0 0.0
        %1565 = vmatprep.subr.mxu0 0.0
        %1566 = vmatpush1.msra.mxu0 0.0
        %1567 = vmatprep.subr.mxu0 0.0
        %1568 = vmatpush1.msra.mxu0 0.0
        %1569 = vmatprep.subr.mxu0 0.0
        %1570 = vmatpush1.msra.mxu0 0.0
        %1571 = vmatprep.subr.mxu0 0.0
        %1572 = vmatpush1.msra.mxu0 0.0
        %1573 = vmatprep.subr.mxu0 0.0
        %1574 = vmatpush1.msra.mxu0 0.0
        %1575 = vmatprep.subr.mxu0 0.0
        %1576 = vmatpush1.msra.mxu0 0.0
        %1577 = vmatprep.subr.mxu0 0.0
        %1578 = vmatpush1.msra.mxu0 0.0
        %1579 = vmatprep.subr.mxu0 0.0
        %1580 = vmatpush1.msra.mxu0 0.0
        %1581 = vmatprep.subr.mxu0 0.0
        %1582 = vmatpush1.msra.mxu0 0.0
        %1583 = vmatprep.subr.mxu0 0.0
        %1584 = vmatpush1.msra.mxu0 0.0
        %1585 = vmatprep.subr.mxu0 0.0
        %1586 = vmatpush1.msra.mxu0 0.0
        %1587 = vmatprep.subr.mxu0 0.0
        %1588 = vmatpush1.msra.mxu0 0.0
        %1589 = vmatprep.subr.mxu0 0.0
        %1590 = vmatpush1.msra.mxu0 0.0
        %1591 = vmatprep.subr.mxu0 0.0
        %1592 = vmatpush1.msra.mxu0 0.0
        %1593 = vmatprep.subr.mxu0 0.0
        %1594 = vmatpush1.msra.mxu0 0.0
        %1595 = vmatprep.subr.mxu0 0.0
        %1596 = vmatpush1.msra.mxu0 0.0
        %1597 = vmatprep.subr.mxu0 0.0
        %1598 = vmatpush1.msra.mxu0 0.0
        %1599 = vmatprep.subr.mxu0 0.0
        %1600 = vmatpush1.msra.mxu0 0.0
        %1601 = vmatprep.subr.mxu0 0.0
        %1602 = vmatpush1.msra.mxu0 0.0
        %1603 = vmatprep.subr.mxu0 0.0
        %1604 = vmatpush1.msra.mxu0 0.0
        %1605 = vmatprep.subr.mxu0 0.0
        %1606 = vmatpush1.msra.mxu0 0.0
        %1607 = vmatprep.subr.mxu0 0.0
        %1608 = vmatpush1.msra.mxu0 0.0
        %1609 = vmatprep.subr.mxu0 0.0
        %1610 = vmatpush1.msra.mxu0 0.0
        %1611 = vmatprep.mubr.f32.mxu0 0.0
        %1612 = vmatmul.mubr.f32.gmra.mrb[0].mxu0 %v1500
        %v1613 = vpop.f32.mrb[0].mxu0
        %v1614 = vadd.f32 0.0, %v1613
        %v1615 = vpop.f32.mrb[0].mxu0
        %v1616 = vadd.f32 0.0, %v1615
        %1617 = vmatprep.mubr.f32.mxu0 0.0
        %1618 = vmatmul.mubr.f32.gmra.mrb[0].mxu0 %v1503
        %v1619 = vpop.f32.mrb[0].mxu0
        %v1620 = vadd.f32 0.0, %v1619
        %v1621 = vpop.f32.mrb[0].mxu0
        %v1622 = vadd.f32 0.0, %v1621
        %1623 = vmatprep.mubr.f32.mxu0 0.0
        %1624 = vmatmul.mubr.f32.gmra.mrb[0].mxu0 %v1506
        %v1625 = vpop.f32.mrb[0].mxu0
        %v1626 = vadd.f32 0.0, %v1625
        %v1627 = vpop.f32.mrb[0].mxu0
        %v1628 = vadd.f32 0.0, %v1627
        %1629 = vmatprep.mubr.f32.mxu0 0.0
        %1630 = vmatmul.mubr.f32.gmra.mrb[0].mxu0 %v1509
        %v1631 = vpop.f32.mrb[0].mxu0
        %v1632 = vadd.f32 0.0, %v1631
        %v1633 = vpop.f32.mrb[0].mxu0
        %v1634 = vadd.f32 0.0, %v1633
        %1635 = vmatprep.mubr.f32.mxu0 0.0
        %1636 = vmatmul.mubr.f32.gmra.mrb[0].mxu0 %v1512
        %v1637 = vpop.f32.mrb[0].mxu0
        %v1638 = vadd.f32 0.0, %v1637
        %v1639 = vpop.f32.mrb[0].mxu0
        %v1640 = vadd.f32 0.0, %v1639
        %1641 = vmatprep.mubr.f32.mxu0 0.0
        %1642 = vmatmul.mubr.f32.gmra.mrb[0].mxu0 %v1515
        %v1643 = vpop.f32.mrb[0].mxu0
        %v1644 = vadd.f32 0.0, %v1643
        %v1645 = vpop.f32.mrb[0].mxu0
        %v1646 = vadd.f32 0.0, %v1645
        %1647 = vmatprep.mubr.f32.mxu0 0.0
        %1648 = vmatmul.mubr.f32.gmra.mrb[0].mxu0 %v1518
        %v1649 = vpop.f32.mrb[0].mxu0
        %v1650 = vadd.f32 0.0, %v1649
        %v1651 = vpop.f32.mrb[0].mxu0
        %v1652 = vadd.f32 0.0, %v1651
        %1653 = vmatprep.mubr.f32.mxu0 0.0
        %1654 = vmatmul.mubr.f32.gmra.mrb[0].mxu0 %v1521
        %v1655 = vpop.f32.mrb[0].mxu0
        %v1656 = vadd.f32 0.0, %v1655
        %v1657 = vpop.f32.mrb[0].mxu0
        %v1658 = vadd.f32 0.0, %v1657
        %1659 = vmatprep.mubr.f32.mxu0 0.0
        %1660 = vmatmul.mubr.f32.gmra.mrb[0].mxu0 %v1524
        %v1661 = vpop.f32.mrb[0].mxu0
        %v1662 = vadd.f32 0.0, %v1661
        %v1663 = vpop.f32.mrb[0].mxu0
        %v1664 = vadd.f32 0.0, %v1663
        %1665 = vmatprep.mubr.f32.mxu0 0.0
        %1666 = vmatmul.mubr.f32.gmra.mrb[0].mxu0 %v1527
        %v1667 = vpop.f32.mrb[0].mxu0
        %v1668 = vadd.f32 0.0, %v1667
        %v1669 = vpop.f32.mrb[0].mxu0
        %v1670 = vadd.f32 0.0, %v1669
        %1671 = vmatprep.mubr.f32.mxu0 0.0
        %1672 = vmatmul.mubr.f32.gmra.mrb[0].mxu0 %v1530
        %v1673 = vpop.f32.mrb[0].mxu0
        %v1674 = vadd.f32 0.0, %v1673
        %v1675 = vpop.f32.mrb[0].mxu0
        %v1676 = vadd.f32 0.0, %v1675
        %1677 = vmatprep.mubr.f32.mxu0 0.0
        %1678 = vmatmul.mubr.f32.gmra.mrb[0].mxu0 %v1533
        %v1679 = vpop.f32.mrb[0].mxu0
        %v1680 = vadd.f32 0.0, %v1679
        %v1681 = vpop.f32.mrb[0].mxu0
        %v1682 = vadd.f32 0.0, %v1681
        %1683 = vmatprep.mubr.f32.mxu0 0.0
        %1684 = vmatmul.mubr.f32.gmra.mrb[0].mxu0 %v1536
        %v1685 = vpop.f32.mrb[0].mxu0
        %v1686 = vadd.f32 0.0, %v1685
        %v1687 = vpop.f32.mrb[0].mxu0
        %v1688 = vadd.f32 0.0, %v1687
        %1689 = vmatprep.mubr.f32.mxu0 0.0
        %1690 = vmatmul.mubr.f32.gmra.mrb[0].mxu0 %v1539
        %v1691 = vpop.f32.mrb[0].mxu0
        %v1692 = vadd.f32 0.0, %v1691
        %v1693 = vpop.f32.mrb[0].mxu0
        %v1694 = vadd.f32 0.0, %v1693
        %1695 = vmatprep.mubr.f32.mxu0 0.0
        %1696 = vmatmul.mubr.f32.gmra.mrb[0].mxu0 %v1542
        %v1697 = vpop.f32.mrb[0].mxu0
        %v1698 = vadd.f32 0.0, %v1697
        %v1699 = vpop.f32.mrb[0].mxu0
        %v1700 = vadd.f32 0.0, %v1699
        %1701 = vmatprep.mubr.f32.mxu0 0.0
        %1702 = vmatmul.mubr.f32.gmra.mrb[0].mxu0 %v1545
        %v1703 = vpop.f32.mrb[0].mxu0
        %v1704 = vadd.f32 0.0, %v1703
        %v1705 = vpop.f32.mrb[0].mxu0
        %v1706 = vadd.f32 0.0, %v1705
        %1707 = vdwg.mxu0
        %v1708 = vadd.f32 %v1238, %v1614
        %v1709 = vadd.f32 %v1240, %v1616
        %v1710 = vadd.f32 %v1244, %v1620
        %v1711 = vadd.f32 %v1246, %v1622
        %v1712 = vadd.f32 %v1250, %v1626
        %v1713 = vadd.f32 %v1252, %v1628
        %v1714 = vadd.f32 %v1256, %v1632
        %v1715 = vadd.f32 %v1258, %v1634
        %v1716 = vadd.f32 %v1262, %v1638
        %v1717 = vadd.f32 %v1264, %v1640
        %v1718 = vadd.f32 %v1268, %v1644
        %v1719 = vadd.f32 %v1270, %v1646
        %v1720 = vadd.f32 %v1274, %v1650
        %v1721 = vadd.f32 %v1276, %v1652
        %v1722 = vadd.f32 %v1280, %v1656
        %v1723 = vadd.f32 %v1282, %v1658
        %v1724 = vadd.f32 %v1286, %v1662
        %v1725 = vadd.f32 %v1288, %v1664
        %v1726 = vadd.f32 %v1292, %v1668
        %v1727 = vadd.f32 %v1294, %v1670
        %v1728 = vadd.f32 %v1298, %v1674
        %v1729 = vadd.f32 %v1300, %v1676
        %v1730 = vadd.f32 %v1304, %v1680
        %v1731 = vadd.f32 %v1306, %v1682
        %v1732 = vadd.f32 %v1310, %v1686
        %v1733 = vadd.f32 %v1312, %v1688
        %v1734 = vadd.f32 %v1316, %v1692
        %v1735 = vadd.f32 %v1318, %v1694
        %v1736 = vadd.f32 %v1322, %v1698
        %v1737 = vadd.f32 %v1324, %v1700
        %v1738 = vadd.f32 %v1328, %v1704
        %v1739 = vadd.f32 %v1330, %v1706
        %v1740 = vmax.f32 %v1708, %v1709
        %v1741 = vmax.f32 %v1710, %v1711
        %v1742 = vmax.f32 %v1712, %v1713
        %v1743 = vmax.f32 %v1714, %v1715
        %v1744 = vmax.f32 %v1716, %v1717
        %v1745 = vmax.f32 %v1718, %v1719
        %v1746 = vmax.f32 %v1720, %v1721
        %v1747 = vmax.f32 %v1722, %v1723
        %v1748 = vmax.f32 %v1724, %v1725
        %v1749 = vmax.f32 %v1726, %v1727
        %v1750 = vmax.f32 %v1728, %v1729
        %v1751 = vmax.f32 %v1730, %v1731
        %v1752 = vmax.f32 %v1732, %v1733
        %v1753 = vmax.f32 %v1734, %v1735
        %v1754 = vmax.f32 %v1736, %v1737
        %v1755 = vmax.f32 %v1738, %v1739
        %v1756 = vmax.f32 %v1740, %v1748
        %v1757 = vmax.f32 %v1741, %v1749
        %v1758 = vmax.f32 %v1742, %v1750
        %v1759 = vmax.f32 %v1743, %v1751
        %v1760 = vmax.f32 %v1744, %v1752
        %v1761 = vmax.f32 %v1745, %v1753
        %v1762 = vmax.f32 %v1746, %v1754
        %v1763 = vmax.f32 %v1747, %v1755
        %v1764 = vld [vmem:[%s3] sm:$0x1]
        %v1766 = vlaneseq
        %v1767 = vshrl.u32 %v1766, 7
        %v1768 = vsub.s32 0, %v1767
        %v1769 = vrot.slane %v1764, %v1768
        %v1771 = vadd.f32 %v1756, %v1769
        %v1772 = vadd.f32 %v1757, %v1769
        %v1773 = vadd.f32 %v1758, %v1769
        %v1774 = vadd.f32 %v1759, %v1769
        %v1775 = vadd.f32 %v1760, %v1769
        %v1776 = vadd.f32 %v1761, %v1769
        %v1777 = vadd.f32 %v1762, %v1769
        %v1778 = vadd.f32 %v1763, %v1769
        %v1779 = vmax.f32 %v1771, 0.0
        %v1780 = vmax.f32 %v1772, 0.0
        %v1781 = vmax.f32 %v1773, 0.0
        %v1782 = vmax.f32 %v1774, 0.0
        %v1783 = vmax.f32 %v1775, 0.0
        %v1784 = vmax.f32 %v1776, 0.0
        %v1785 = vmax.f32 %v1777, 0.0
        %v1786 = vmax.f32 %v1778, 0.0
        %v1787 = vld [vmem:[#allocation7] sm:$0xff]
        %v1788 = vld [vmem:[#allocation7 + $0x8] sm:$0xff]
        %v1789 = vld [vmem:[#allocation7 + $0x10] sm:$0xff]
        %v1790 = vld [vmem:[#allocation7 + $0x18] sm:$0xff]
        %v1791 = vld [vmem:[#allocation7 + $0x20] sm:$0xff]
        %v1792 = vld [vmem:[#allocation7 + $0x28] sm:$0xff]
        %v1793 = vld [vmem:[#allocation7 + $0x30] sm:$0xff]
        %v1794 = vld [vmem:[#allocation7 + $0x38] sm:$0xff]
        %vm1795 = vcmask 523264
        %v1797 = vsel %vm1795, %v1787, 0
        %v1800 = vsel %vm1795, %v1788, 0
        %v1803 = vsel %vm1795, %v1789, 0
        %v1806 = vsel %vm1795, %v1790, 0
        %v1809 = vsel %vm1795, %v1791, 0
        %v1812 = vsel %vm1795, %v1792, 0
        %v1815 = vsel %vm1795, %v1793, 0
        %v1818 = vsel %vm1795, %v1794, 0
        %1820 = vmatprep.subr.mxu0 0.0
        %1821 = vmatpush1.msra.mxu0 %v1779
        %1822 = vmatprep.subr.mxu0 0.0
        %1823 = vmatpush1.msra.mxu0 %v1780
        %1824 = vmatprep.subr.mxu0 0.0
        %1825 = vmatpush1.msra.mxu0 %v1781
        %1826 = vmatprep.subr.mxu0 0.0
        %1827 = vmatpush1.msra.mxu0 %v1782
        %1828 = vmatprep.subr.mxu0 0.0
        %1829 = vmatpush1.msra.mxu0 %v1783
        %1830 = vmatprep.subr.mxu0 0.0
        %1831 = vmatpush1.msra.mxu0 %v1784
        %1832 = vmatprep.subr.mxu0 0.0
        %1833 = vmatpush1.msra.mxu0 %v1785
        %1834 = vmatprep.subr.mxu0 0.0
        %1835 = vmatpush1.msra.mxu0 %v1786
        %1836 = vmatprep.subr.mxu0 0.0
        %1837 = vmatpush1.msra.mxu0 0.0
        %1838 = vmatprep.subr.mxu0 0.0
        %1839 = vmatpush1.msra.mxu0 0.0
        %1840 = vmatprep.subr.mxu0 0.0
        %1841 = vmatpush1.msra.mxu0 0.0
        %1842 = vmatprep.subr.mxu0 0.0
        %1843 = vmatpush1.msra.mxu0 0.0
        %1844 = vmatprep.subr.mxu0 0.0
        %1845 = vmatpush1.msra.mxu0 0.0
        %1846 = vmatprep.subr.mxu0 0.0
        %1847 = vmatpush1.msra.mxu0 0.0
        %1848 = vmatprep.subr.mxu0 0.0
        %1849 = vmatpush1.msra.mxu0 0.0
        %1850 = vmatprep.subr.mxu0 0.0
        %1851 = vmatpush1.msra.mxu0 0.0
        %1852 = vmatprep.subr.mxu0 0.0
        %1853 = vmatpush1.msra.mxu0 0.0
        %1854 = vmatprep.subr.mxu0 0.0
        %1855 = vmatpush1.msra.mxu0 0.0
        %1856 = vmatprep.subr.mxu0 0.0
        %1857 = vmatpush1.msra.mxu0 0.0
        %1858 = vmatprep.subr.mxu0 0.0
        %1859 = vmatpush1.msra.mxu0 0.0
        %1860 = vmatprep.subr.mxu0 0.0
        %1861 = vmatpush1.msra.mxu0 0.0
        %1862 = vmatprep.subr.mxu0 0.0
        %1863 = vmatpush1.msra.mxu0 0.0
        %1864 = vmatprep.subr.mxu0 0.0
        %1865 = vmatpush1.msra.mxu0 0.0
        %1866 = vmatprep.subr.mxu0 0.0
        %1867 = vmatpush1.msra.mxu0 0.0
        %1868 = vmatprep.subr.mxu0 0.0
        %1869 = vmatpush1.msra.mxu0 0.0
        %1870 = vmatprep.subr.mxu0 0.0
        %1871 = vmatpush1.msra.mxu0 0.0
        %1872 = vmatprep.subr.mxu0 0.0
        %1873 = vmatpush1.msra.mxu0 0.0
        %1874 = vmatprep.subr.mxu0 0.0
        %1875 = vmatpush1.msra.mxu0 0.0
        %1876 = vmatprep.subr.mxu0 0.0
        %1877 = vmatpush1.msra.mxu0 0.0
        %1878 = vmatprep.subr.mxu0 0.0
        %1879 = vmatpush1.msra.mxu0 0.0
        %1880 = vmatprep.subr.mxu0 0.0
        %1881 = vmatpush1.msra.mxu0 0.0
        %1882 = vmatprep.subr.mxu0 0.0
        %1883 = vmatpush1.msra.mxu0 0.0
        %1884 = vmatprep.mubr.f32.mxu0 0.0
        %1885 = vmatmul.mubr.f32.gmra.mrb[0].mxu0 %v1797
        %v1886 = vpop.f32.mrb[0].mxu0
        %v1887 = vadd.f32 0.0, %v1886
        %v1888 = vpop.f32.mrb[0].mxu0
        %1889 = vmatprep.mubr.f32.mxu0 0.0
        %1890 = vmatmul.mubr.f32.gmra.mrb[0].mxu0 %v1800
        %v1891 = vpop.f32.mrb[0].mxu0
        %v1892 = vadd.f32 0.0, %v1891
        %v1893 = vpop.f32.mrb[0].mxu0
        %1894 = vmatprep.mubr.f32.mxu0 0.0
        %1895 = vmatmul.mubr.f32.gmra.mrb[0].mxu0 %v1803
        %v1896 = vpop.f32.mrb[0].mxu0
        %v1897 = vadd.f32 0.0, %v1896
        %v1898 = vpop.f32.mrb[0].mxu0
        %1899 = vmatprep.mubr.f32.mxu0 0.0
        %1900 = vmatmul.mubr.f32.gmra.mrb[0].mxu0 %v1806
        %v1901 = vpop.f32.mrb[0].mxu0
        %v1902 = vadd.f32 0.0, %v1901
        %v1903 = vpop.f32.mrb[0].mxu0
        %1904 = vmatprep.mubr.f32.mxu0 0.0
        %1905 = vmatmul.mubr.f32.gmra.mrb[0].mxu0 %v1809
        %v1906 = vpop.f32.mrb[0].mxu0
        %v1907 = vadd.f32 0.0, %v1906
        %v1908 = vpop.f32.mrb[0].mxu0
        %1909 = vmatprep.mubr.f32.mxu0 0.0
        %1910 = vmatmul.mubr.f32.gmra.mrb[0].mxu0 %v1812
        %v1911 = vpop.f32.mrb[0].mxu0
        %v1912 = vadd.f32 0.0, %v1911
        %v1913 = vpop.f32.mrb[0].mxu0
        %1914 = vmatprep.mubr.f32.mxu0 0.0
        %1915 = vmatmul.mubr.f32.gmra.mrb[0].mxu0 %v1815
        %v1916 = vpop.f32.mrb[0].mxu0
        %v1917 = vadd.f32 0.0, %v1916
        %v1918 = vpop.f32.mrb[0].mxu0
        %1919 = vmatprep.mubr.f32.mxu0 0.0
        %1920 = vmatmul.mubr.f32.gmra.mrb[0].mxu0 %v1818
        %v1921 = vpop.f32.mrb[0].mxu0
        %v1922 = vadd.f32 0.0, %v1921
        %v1923 = vpop.f32.mrb[0].mxu0
        %1924 = vdwg.mxu0
        %v1925 = vld [vmem:[#allocation5] sm:$0xff]
        %v1926 = vld [vmem:[#allocation5 + $0x8] sm:$0xff]
        %v1927 = vld [vmem:[#allocation5 + $0x10] sm:$0xff]
        %v1928 = vld [vmem:[#allocation5 + $0x18] sm:$0xff]
        %v1929 = vld [vmem:[#allocation5 + $0x20] sm:$0xff]
        %v1930 = vld [vmem:[#allocation5 + $0x28] sm:$0xff]
        %v1931 = vld [vmem:[#allocation5 + $0x30] sm:$0xff]
        %v1932 = vld [vmem:[#allocation5 + $0x38] sm:$0xff]
        %v1933 = vld [vmem:[#allocation5 + $0x40] sm:$0xff]
        %v1934 = vld [vmem:[#allocation5 + $0x48] sm:$0xff]
        %v1935 = vld [vmem:[#allocation5 + $0x50] sm:$0xff]
        %v1936 = vld [vmem:[#allocation5 + $0x58] sm:$0xff]
        %v1937 = vld [vmem:[#allocation5 + $0x60] sm:$0xff]
        %v1938 = vld [vmem:[#allocation5 + $0x68] sm:$0xff]
        %v1939 = vld [vmem:[#allocation5 + $0x70] sm:$0xff]
        %v1940 = vld [vmem:[#allocation5 + $0x78] sm:$0xff]
        %v1941 = vld [vmem:[#allocation5 + $0x80] sm:$0xff]
        %v1942 = vld [vmem:[#allocation5 + $0x88] sm:$0xff]
        %v1943 = vld [vmem:[#allocation5 + $0x90] sm:$0xff]
        %v1944 = vld [vmem:[#allocation5 + $0x98] sm:$0xff]
        %v1945 = vld [vmem:[#allocation5 + $0xa0] sm:$0xff]
        %v1946 = vld [vmem:[#allocation5 + $0xa8] sm:$0xff]
        %v1947 = vld [vmem:[#allocation5 + $0xb0] sm:$0xff]
        %v1948 = vld [vmem:[#allocation5 + $0xb8] sm:$0xff]
        %v1949 = vld [vmem:[#allocation5 + $0xc0] sm:$0xff]
        %v1950 = vld [vmem:[#allocation5 + $0xc8] sm:$0xff]
        %v1951 = vld [vmem:[#allocation5 + $0xd0] sm:$0xff]
        %v1952 = vld [vmem:[#allocation5 + $0xd8] sm:$0xff]
        %v1953 = vld [vmem:[#allocation5 + $0xe0] sm:$0xff]
        %v1954 = vld [vmem:[#allocation5 + $0xe8] sm:$0xff]
        %v1955 = vld [vmem:[#allocation5 + $0xf0] sm:$0xff]
        %v1956 = vld [vmem:[#allocation5 + $0xf8] sm:$0xff]
        %s1957 = scalar_lea.vmem [#allocation7], 64
        %v1958 = vld [vmem:[%s1957] sm:$0xff]
        %v1959 = vld [vmem:[%s1957 + $0x8] sm:$0xff]
        %v1960 = vld [vmem:[%s1957 + $0x10] sm:$0xff]
        %v1961 = vld [vmem:[%s1957 + $0x18] sm:$0xff]
        %v1962 = vld [vmem:[%s1957 + $0x20] sm:$0xff]
        %v1963 = vld [vmem:[%s1957 + $0x28] sm:$0xff]
        %v1964 = vld [vmem:[%s1957 + $0x30] sm:$0xff]
        %v1965 = vld [vmem:[%s1957 + $0x38] sm:$0xff]
        %v1967 = vsel %vm1795, %v1958, 0
        %v1970 = vsel %vm1795, %v1959, 0
        %v1973 = vsel %vm1795, %v1960, 0
        %v1976 = vsel %vm1795, %v1961, 0
        %v1979 = vsel %vm1795, %v1962, 0
        %v1982 = vsel %vm1795, %v1963, 0
        %v1985 = vsel %vm1795, %v1964, 0
        %v1988 = vsel %vm1795, %v1965, 0
        %1990 = vmatprep.subr.mxu0 0.0
        %1991 = vmatpush1.msra.mxu0 %v1779
        %1992 = vmatprep.subr.mxu0 0.0
        %1993 = vmatpush1.msra.mxu0 %v1780
        %1994 = vmatprep.subr.mxu0 0.0
        %1995 = vmatpush1.msra.mxu0 %v1781
        %1996 = vmatprep.subr.mxu0 0.0
        %1997 = vmatpush1.msra.mxu0 %v1782
        %1998 = vmatprep.subr.mxu0 0.0
        %1999 = vmatpush1.msra.mxu0 %v1783
        %2000 = vmatprep.subr.mxu0 0.0
        %2001 = vmatpush1.msra.mxu0 %v1784
        %2002 = vmatprep.subr.mxu0 0.0
        %2003 = vmatpush1.msra.mxu0 %v1785
        %2004 = vmatprep.subr.mxu0 0.0
        %2005 = vmatpush1.msra.mxu0 %v1786
        %2006 = vmatprep.subr.mxu0 0.0
        %2007 = vmatpush1.msra.mxu0 0.0
        %2008 = vmatprep.subr.mxu0 0.0
        %2009 = vmatpush1.msra.mxu0 0.0
        %2010 = vmatprep.subr.mxu0 0.0
        %2011 = vmatpush1.msra.mxu0 0.0
        %2012 = vmatprep.subr.mxu0 0.0
        %2013 = vmatpush1.msra.mxu0 0.0
        %2014 = vmatprep.subr.mxu0 0.0
        %2015 = vmatpush1.msra.mxu0 0.0
        %2016 = vmatprep.subr.mxu0 0.0
        %2017 = vmatpush1.msra.mxu0 0.0
        %2018 = vmatprep.subr.mxu0 0.0
        %2019 = vmatpush1.msra.mxu0 0.0
        %2020 = vmatprep.subr.mxu0 0.0
        %2021 = vmatpush1.msra.mxu0 0.0
        %2022 = vmatprep.subr.mxu0 0.0
        %2023 = vmatpush1.msra.mxu0 0.0
        %2024 = vmatprep.subr.mxu0 0.0
        %2025 = vmatpush1.msra.mxu0 0.0
        %2026 = vmatprep.subr.mxu0 0.0
        %2027 = vmatpush1.msra.mxu0 0.0
        %2028 = vmatprep.subr.mxu0 0.0
        %2029 = vmatpush1.msra.mxu0 0.0
        %2030 = vmatprep.subr.mxu0 0.0
        %2031 = vmatpush1.msra.mxu0 0.0
        %2032 = vmatprep.subr.mxu0 0.0
        %2033 = vmatpush1.msra.mxu0 0.0
        %2034 = vmatprep.subr.mxu0 0.0
        %2035 = vmatpush1.msra.mxu0 0.0
        %2036 = vmatprep.subr.mxu0 0.0
        %2037 = vmatpush1.msra.mxu0 0.0
        %2038 = vmatprep.subr.mxu0 0.0
        %2039 = vmatpush1.msra.mxu0 0.0
        %2040 = vmatprep.subr.mxu0 0.0
        %2041 = vmatpush1.msra.mxu0 0.0
        %2042 = vmatprep.subr.mxu0 0.0
        %2043 = vmatpush1.msra.mxu0 0.0
        %2044 = vmatprep.subr.mxu0 0.0
        %2045 = vmatpush1.msra.mxu0 0.0
        %2046 = vmatprep.subr.mxu0 0.0
        %2047 = vmatpush1.msra.mxu0 0.0
        %2048 = vmatprep.subr.mxu0 0.0
        %2049 = vmatpush1.msra.mxu0 0.0
        %2050 = vmatprep.subr.mxu0 0.0
        %2051 = vmatpush1.msra.mxu0 0.0
        %2052 = vmatprep.subr.mxu0 0.0
        %2053 = vmatpush1.msra.mxu0 0.0
        %2054 = vmatprep.mubr.f32.mxu0 0.0
        %2055 = vmatmul.mubr.f32.gmra.mrb[0].mxu0 %v1967
        %v2056 = vpop.f32.mrb[0].mxu0
        %v2057 = vadd.f32 0.0, %v2056
        %v2058 = vpop.f32.mrb[0].mxu0
        %2059 = vmatprep.mubr.f32.mxu0 0.0
        %2060 = vmatmul.mubr.f32.gmra.mrb[0].mxu0 %v1970
        %v2061 = vpop.f32.mrb[0].mxu0
        %v2062 = vadd.f32 0.0, %v2061
        %v2063 = vpop.f32.mrb[0].mxu0
        %2064 = vmatprep.mubr.f32.mxu0 0.0
        %2065 = vmatmul.mubr.f32.gmra.mrb[0].mxu0 %v1973
        %v2066 = vpop.f32.mrb[0].mxu0
        %v2067 = vadd.f32 0.0, %v2066
        %v2068 = vpop.f32.mrb[0].mxu0
        %2069 = vmatprep.mubr.f32.mxu0 0.0
        %2070 = vmatmul.mubr.f32.gmra.mrb[0].mxu0 %v1976
        %v2071 = vpop.f32.mrb[0].mxu0
        %v2072 = vadd.f32 0.0, %v2071
        %v2073 = vpop.f32.mrb[0].mxu0
        %2074 = vmatprep.mubr.f32.mxu0 0.0
        %2075 = vmatmul.mubr.f32.gmra.mrb[0].mxu0 %v1979
        %v2076 = vpop.f32.mrb[0].mxu0
        %v2077 = vadd.f32 0.0, %v2076
        %v2078 = vpop.f32.mrb[0].mxu0
        %2079 = vmatprep.mubr.f32.mxu0 0.0
        %2080 = vmatmul.mubr.f32.gmra.mrb[0].mxu0 %v1982
        %v2081 = vpop.f32.mrb[0].mxu0
        %v2082 = vadd.f32 0.0, %v2081
        %v2083 = vpop.f32.mrb[0].mxu0
        %2084 = vmatprep.mubr.f32.mxu0 0.0
        %2085 = vmatmul.mubr.f32.gmra.mrb[0].mxu0 %v1985
        %v2086 = vpop.f32.mrb[0].mxu0
        %v2087 = vadd.f32 0.0, %v2086
        %v2088 = vpop.f32.mrb[0].mxu0
        %2089 = vmatprep.mubr.f32.mxu0 0.0
        %2090 = vmatmul.mubr.f32.gmra.mrb[0].mxu0 %v1988
        %v2091 = vpop.f32.mrb[0].mxu0
        %v2092 = vadd.f32 0.0, %v2091
        %v2093 = vpop.f32.mrb[0].mxu0
        %2094 = vdwg.mxu0
        %s2095 = scalar_lea.vmem [#allocation5], 256
        %v2096 = vld [vmem:[%s2095] sm:$0xff]
        %v2097 = vld [vmem:[%s2095 + $0x8] sm:$0xff]
        %v2098 = vld [vmem:[%s2095 + $0x10] sm:$0xff]
        %v2099 = vld [vmem:[%s2095 + $0x18] sm:$0xff]
        %v2100 = vld [vmem:[%s2095 + $0x20] sm:$0xff]
        %v2101 = vld [vmem:[%s2095 + $0x28] sm:$0xff]
        %v2102 = vld [vmem:[%s2095 + $0x30] sm:$0xff]
        %v2103 = vld [vmem:[%s2095 + $0x38] sm:$0xff]
        %v2104 = vld [vmem:[%s2095 + $0x40] sm:$0xff]
        %v2105 = vld [vmem:[%s2095 + $0x48] sm:$0xff]
        %v2106 = vld [vmem:[%s2095 + $0x50] sm:$0xff]
        %v2107 = vld [vmem:[%s2095 + $0x58] sm:$0xff]
        %v2108 = vld [vmem:[%s2095 + $0x60] sm:$0xff]
        %v2109 = vld [vmem:[%s2095 + $0x68] sm:$0xff]
        %v2110 = vld [vmem:[%s2095 + $0x70] sm:$0xff]
        %v2111 = vld [vmem:[%s2095 + $0x78] sm:$0xff]
        %v2112 = vld [vmem:[%s2095 + $0x80] sm:$0xff]
        %v2113 = vld [vmem:[%s2095 + $0x88] sm:$0xff]
        %v2114 = vld [vmem:[%s2095 + $0x90] sm:$0xff]
        %v2115 = vld [vmem:[%s2095 + $0x98] sm:$0xff]
        %v2116 = vld [vmem:[%s2095 + $0xa0] sm:$0xff]
        %v2117 = vld [vmem:[%s2095 + $0xa8] sm:$0xff]
        %v2118 = vld [vmem:[%s2095 + $0xb0] sm:$0xff]
        %v2119 = vld [vmem:[%s2095 + $0xb8] sm:$0xff]
        %v2120 = vld [vmem:[%s2095 + $0xc0] sm:$0xff]
        %v2121 = vld [vmem:[%s2095 + $0xc8] sm:$0xff]
        %v2122 = vld [vmem:[%s2095 + $0xd0] sm:$0xff]
        %v2123 = vld [vmem:[%s2095 + $0xd8] sm:$0xff]
        %v2124 = vld [vmem:[%s2095 + $0xe0] sm:$0xff]
        %v2125 = vld [vmem:[%s2095 + $0xe8] sm:$0xff]
        %v2126 = vld [vmem:[%s2095 + $0xf0] sm:$0xff]
        %v2127 = vld [vmem:[%s2095 + $0xf8] sm:$0xff]
        %2128 = vmatprep.subr.mxu0 %v2097
        %2129 = vmatpush1.msra.mxu0 %v2096
        %2130 = vmatprep.subr.mxu0 %v2099
        %2131 = vmatpush1.msra.mxu0 %v2098
        %2132 = vmatprep.subr.mxu0 %v2101
        %2133 = vmatpush1.msra.mxu0 %v2100
        %2134 = vmatprep.subr.mxu0 %v2103
        %2135 = vmatpush1.msra.mxu0 %v2102
        %2136 = vmatprep.subr.mxu0 %v2105
        %2137 = vmatpush1.msra.mxu0 %v2104
        %2138 = vmatprep.subr.mxu0 %v2107
        %2139 = vmatpush1.msra.mxu0 %v2106
        %2140 = vmatprep.subr.mxu0 %v2109
        %2141 = vmatpush1.msra.mxu0 %v2108
        %2142 = vmatprep.subr.mxu0 %v2111
        %2143 = vmatpush1.msra.mxu0 %v2110
        %2144 = vmatprep.subr.mxu0 %v2113
        %2145 = vmatpush1.msra.mxu0 %v2112
        %2146 = vmatprep.subr.mxu0 %v2115
        %2147 = vmatpush1.msra.mxu0 %v2114
        %2148 = vmatprep.subr.mxu0 %v2117
        %2149 = vmatpush1.msra.mxu0 %v2116
        %2150 = vmatprep.subr.mxu0 %v2119
        %2151 = vmatpush1.msra.mxu0 %v2118
        %2152 = vmatprep.subr.mxu0 %v2121
        %2153 = vmatpush1.msra.mxu0 %v2120
        %2154 = vmatprep.subr.mxu0 %v2123
        %2155 = vmatpush1.msra.mxu0 %v2122
        %2156 = vmatprep.subr.mxu0 %v2125
        %2157 = vmatpush1.msra.mxu0 %v2124
        %2158 = vmatprep.subr.mxu0 %v2127
        %2159 = vmatpush1.msra.mxu0 %v2126
        %2160 = vmatprep.subr.mxu0 0.0
        %2161 = vmatpush1.msra.mxu0 0.0
        %2162 = vmatprep.subr.mxu0 0.0
        %2163 = vmatpush1.msra.mxu0 0.0
        %2164 = vmatprep.subr.mxu0 0.0
        %2165 = vmatpush1.msra.mxu0 0.0
        %2166 = vmatprep.subr.mxu0 0.0
        %2167 = vmatpush1.msra.mxu0 0.0
        %2168 = vmatprep.subr.mxu0 0.0
        %2169 = vmatpush1.msra.mxu0 0.0
        %2170 = vmatprep.subr.mxu0 0.0
        %2171 = vmatpush1.msra.mxu0 0.0
        %2172 = vmatprep.subr.mxu0 0.0
        %2173 = vmatpush1.msra.mxu0 0.0
        %2174 = vmatprep.subr.mxu0 0.0
        %2175 = vmatpush1.msra.mxu0 0.0
        %2176 = vmatprep.subr.mxu0 0.0
        %2177 = vmatpush1.msra.mxu0 0.0
        %2178 = vmatprep.subr.mxu0 0.0
        %2179 = vmatpush1.msra.mxu0 0.0
        %2180 = vmatprep.subr.mxu0 0.0
        %2181 = vmatpush1.msra.mxu0 0.0
        %2182 = vmatprep.subr.mxu0 0.0
        %2183 = vmatpush1.msra.mxu0 0.0
        %2184 = vmatprep.subr.mxu0 0.0
        %2185 = vmatpush1.msra.mxu0 0.0
        %2186 = vmatprep.subr.mxu0 0.0
        %2187 = vmatpush1.msra.mxu0 0.0
        %2188 = vmatprep.subr.mxu0 0.0
        %2189 = vmatpush1.msra.mxu0 0.0
        %2190 = vmatprep.subr.mxu0 0.0
        %2191 = vmatpush1.msra.mxu0 0.0
        %2192 = vmatprep.mubr.f32.mxu0 0.0
        %2193 = vmatmul.mubr.f32.gmra.mrb[0].mxu0 %v2057
        %v2194 = vpop.f32.mrb[0].mxu0
        %v2195 = vadd.f32 0.0, %v2194
        %v2196 = vpop.f32.mrb[0].mxu0
        %v2197 = vadd.f32 0.0, %v2196
        %2198 = vmatprep.mubr.f32.mxu0 0.0
        %2199 = vmatmul.mubr.f32.gmra.mrb[0].mxu0 %v2062
        %v2200 = vpop.f32.mrb[0].mxu0
        %v2201 = vadd.f32 0.0, %v2200
        %v2202 = vpop.f32.mrb[0].mxu0
        %v2203 = vadd.f32 0.0, %v2202
        %2204 = vmatprep.mubr.f32.mxu0 0.0
        %2205 = vmatmul.mubr.f32.gmra.mrb[0].mxu0 %v2067
        %v2206 = vpop.f32.mrb[0].mxu0
        %v2207 = vadd.f32 0.0, %v2206
        %v2208 = vpop.f32.mrb[0].mxu0
        %v2209 = vadd.f32 0.0, %v2208
        %2210 = vmatprep.mubr.f32.mxu0 0.0
        %2211 = vmatmul.mubr.f32.gmra.mrb[0].mxu0 %v2072
        %v2212 = vpop.f32.mrb[0].mxu0
        %v2213 = vadd.f32 0.0, %v2212
        %v2214 = vpop.f32.mrb[0].mxu0
        %v2215 = vadd.f32 0.0, %v2214
        %2216 = vmatprep.mubr.f32.mxu0 0.0
        %2217 = vmatmul.mubr.f32.gmra.mrb[0].mxu0 %v2077
        %v2218 = vpop.f32.mrb[0].mxu0
        %v2219 = vadd.f32 0.0, %v2218
        %v2220 = vpop.f32.mrb[0].mxu0
        %v2221 = vadd.f32 0.0, %v2220
        %2222 = vmatprep.mubr.f32.mxu0 0.0
        %2223 = vmatmul.mubr.f32.gmra.mrb[0].mxu0 %v2082
        %v2224 = vpop.f32.mrb[0].mxu0
        %v2225 = vadd.f32 0.0, %v2224
        %v2226 = vpop.f32.mrb[0].mxu0
        %v2227 = vadd.f32 0.0, %v2226
        %2228 = vmatprep.mubr.f32.mxu0 0.0
        %2229 = vmatmul.mubr.f32.gmra.mrb[0].mxu0 %v2087
        %v2230 = vpop.f32.mrb[0].mxu0
        %v2231 = vadd.f32 0.0, %v2230
        %v2232 = vpop.f32.mrb[0].mxu0
        %v2233 = vadd.f32 0.0, %v2232
        %2234 = vmatprep.mubr.f32.mxu0 0.0
        %2235 = vmatmul.mubr.f32.gmra.mrb[0].mxu0 %v2092
        %v2236 = vpop.f32.mrb[0].mxu0
        %v2237 = vadd.f32 0.0, %v2236
        %v2238 = vpop.f32.mrb[0].mxu0
        %v2239 = vadd.f32 0.0, %v2238
        %2240 = vdwg.mxu0
        %2241 = vmatprep.subr.mxu0 %v1926
        %2242 = vmatpush1.msra.mxu0 %v1925
        %2243 = vmatprep.subr.mxu0 %v1928
        %2244 = vmatpush1.msra.mxu0 %v1927
        %2245 = vmatprep.subr.mxu0 %v1930
        %2246 = vmatpush1.msra.mxu0 %v1929
        %2247 = vmatprep.subr.mxu0 %v1932
        %2248 = vmatpush1.msra.mxu0 %v1931
        %2249 = vmatprep.subr.mxu0 %v1934
        %2250 = vmatpush1.msra.mxu0 %v1933
        %2251 = vmatprep.subr.mxu0 %v1936
        %2252 = vmatpush1.msra.mxu0 %v1935
        %2253 = vmatprep.subr.mxu0 %v1938
        %2254 = vmatpush1.msra.mxu0 %v1937
        %2255 = vmatprep.subr.mxu0 %v1940
        %2256 = vmatpush1.msra.mxu0 %v1939
        %2257 = vmatprep.subr.mxu0 %v1942
        %2258 = vmatpush1.msra.mxu0 %v1941
        %2259 = vmatprep.subr.mxu0 %v1944
        %2260 = vmatpush1.msra.mxu0 %v1943
        %2261 = vmatprep.subr.mxu0 %v1946
        %2262 = vmatpush1.msra.mxu0 %v1945
        %2263 = vmatprep.subr.mxu0 %v1948
        %2264 = vmatpush1.msra.mxu0 %v1947
        %2265 = vmatprep.subr.mxu0 %v1950
        %2266 = vmatpush1.msra.mxu0 %v1949
        %2267 = vmatprep.subr.mxu0 %v1952
        %2268 = vmatpush1.msra.mxu0 %v1951
        %2269 = vmatprep.subr.mxu0 %v1954
        %2270 = vmatpush1.msra.mxu0 %v1953
        %2271 = vmatprep.subr.mxu0 %v1956
        %2272 = vmatpush1.msra.mxu0 %v1955
        %2273 = vmatprep.subr.mxu0 0.0
        %2274 = vmatpush1.msra.mxu0 0.0
        %2275 = vmatprep.subr.mxu0 0.0
        %2276 = vmatpush1.msra.mxu0 0.0
        %2277 = vmatprep.subr.mxu0 0.0
        %2278 = vmatpush1.msra.mxu0 0.0
        %2279 = vmatprep.subr.mxu0 0.0
        %2280 = vmatpush1.msra.mxu0 0.0
        %2281 = vmatprep.subr.mxu0 0.0
        %2282 = vmatpush1.msra.mxu0 0.0
        %2283 = vmatprep.subr.mxu0 0.0
        %2284 = vmatpush1.msra.mxu0 0.0
        %2285 = vmatprep.subr.mxu0 0.0
        %2286 = vmatpush1.msra.mxu0 0.0
        %2287 = vmatprep.subr.mxu0 0.0
        %2288 = vmatpush1.msra.mxu0 0.0
        %2289 = vmatprep.subr.mxu0 0.0
        %2290 = vmatpush1.msra.mxu0 0.0
        %2291 = vmatprep.subr.mxu0 0.0
        %2292 = vmatpush1.msra.mxu0 0.0
        %2293 = vmatprep.subr.mxu0 0.0
        %2294 = vmatpush1.msra.mxu0 0.0
        %2295 = vmatprep.subr.mxu0 0.0
        %2296 = vmatpush1.msra.mxu0 0.0
        %2297 = vmatprep.subr.mxu0 0.0
        %2298 = vmatpush1.msra.mxu0 0.0
        %2299 = vmatprep.subr.mxu0 0.0
        %2300 = vmatpush1.msra.mxu0 0.0
        %2301 = vmatprep.subr.mxu0 0.0
        %2302 = vmatpush1.msra.mxu0 0.0
        %2303 = vmatprep.subr.mxu0 0.0
        %2304 = vmatpush1.msra.mxu0 0.0
        %2305 = vmatprep.mubr.f32.mxu0 0.0
        %2306 = vmatmul.mubr.f32.gmra.mrb[0].mxu0 %v1887
        %v2307 = vpop.f32.mrb[0].mxu0
        %v2308 = vadd.f32 %v2195, %v2307
        %v2309 = vpop.f32.mrb[0].mxu0
        %v2310 = vadd.f32 %v2197, %v2309
        %2311 = vmatprep.mubr.f32.mxu0 0.0
        %2312 = vmatmul.mubr.f32.gmra.mrb[0].mxu0 %v1892
        %v2313 = vpop.f32.mrb[0].mxu0
        %v2314 = vadd.f32 %v2201, %v2313
        %v2315 = vpop.f32.mrb[0].mxu0
        %v2316 = vadd.f32 %v2203, %v2315
        %2317 = vmatprep.mubr.f32.mxu0 0.0
        %2318 = vmatmul.mubr.f32.gmra.mrb[0].mxu0 %v1897
        %v2319 = vpop.f32.mrb[0].mxu0
        %v2320 = vadd.f32 %v2207, %v2319
        %v2321 = vpop.f32.mrb[0].mxu0
        %v2322 = vadd.f32 %v2209, %v2321
        %2323 = vmatprep.mubr.f32.mxu0 0.0
        %2324 = vmatmul.mubr.f32.gmra.mrb[0].mxu0 %v1902
        %v2325 = vpop.f32.mrb[0].mxu0
        %v2326 = vadd.f32 %v2213, %v2325
        %v2327 = vpop.f32.mrb[0].mxu0
        %v2328 = vadd.f32 %v2215, %v2327
        %2329 = vmatprep.mubr.f32.mxu0 0.0
        %2330 = vmatmul.mubr.f32.gmra.mrb[0].mxu0 %v1907
        %v2331 = vpop.f32.mrb[0].mxu0
        %v2332 = vadd.f32 %v2219, %v2331
        %v2333 = vpop.f32.mrb[0].mxu0
        %v2334 = vadd.f32 %v2221, %v2333
        %2335 = vmatprep.mubr.f32.mxu0 0.0
        %2336 = vmatmul.mubr.f32.gmra.mrb[0].mxu0 %v1912
        %v2337 = vpop.f32.mrb[0].mxu0
        %v2338 = vadd.f32 %v2225, %v2337
        %v2339 = vpop.f32.mrb[0].mxu0
        %v2340 = vadd.f32 %v2227, %v2339
        %2341 = vmatprep.mubr.f32.mxu0 0.0
        %2342 = vmatmul.mubr.f32.gmra.mrb[0].mxu0 %v1917
        %v2343 = vpop.f32.mrb[0].mxu0
        %v2344 = vadd.f32 %v2231, %v2343
        %v2345 = vpop.f32.mrb[0].mxu0
        %v2346 = vadd.f32 %v2233, %v2345
        %2347 = vmatprep.mubr.f32.mxu0 0.0
        %2348 = vmatmul.mubr.f32.gmra.mrb[0].mxu0 %v1922
        %v2349 = vpop.f32.mrb[0].mxu0
        %v2350 = vadd.f32 %v2237, %v2349
        %v2351 = vpop.f32.mrb[0].mxu0
        %v2352 = vadd.f32 %v2239, %v2351
        %2353 = vdwg.mxu0
        %s2354 = scalar_lea.vmem [#allocation7], 128
        %v2355 = vld [vmem:[%s2354] sm:$0xff]
        %v2356 = vld [vmem:[%s2354 + $0x8] sm:$0xff]
        %v2357 = vld [vmem:[%s2354 + $0x10] sm:$0xff]
        %v2358 = vld [vmem:[%s2354 + $0x18] sm:$0xff]
        %v2359 = vld [vmem:[%s2354 + $0x20] sm:$0xff]
        %v2360 = vld [vmem:[%s2354 + $0x28] sm:$0xff]
        %v2361 = vld [vmem:[%s2354 + $0x30] sm:$0xff]
        %v2362 = vld [vmem:[%s2354 + $0x38] sm:$0xff]
        %v2364 = vsel %vm1795, %v2355, 0
        %v2367 = vsel %vm1795, %v2356, 0
        %v2370 = vsel %vm1795, %v2357, 0
        %v2373 = vsel %vm1795, %v2358, 0
        %v2376 = vsel %vm1795, %v2359, 0
        %v2379 = vsel %vm1795, %v2360, 0
        %v2382 = vsel %vm1795, %v2361, 0
        %v2385 = vsel %vm1795, %v2362, 0
        %2387 = vmatprep.subr.mxu0 0.0
        %2388 = vmatpush1.msra.mxu0 %v1779
        %2389 = vmatprep.subr.mxu0 0.0
        %2390 = vmatpush1.msra.mxu0 %v1780
        %2391 = vmatprep.subr.mxu0 0.0
        %2392 = vmatpush1.msra.mxu0 %v1781
        %2393 = vmatprep.subr.mxu0 0.0
        %2394 = vmatpush1.msra.mxu0 %v1782
        %2395 = vmatprep.subr.mxu0 0.0
        %2396 = vmatpush1.msra.mxu0 %v1783
        %2397 = vmatprep.subr.mxu0 0.0
        %2398 = vmatpush1.msra.mxu0 %v1784
        %2399 = vmatprep.subr.mxu0 0.0
        %2400 = vmatpush1.msra.mxu0 %v1785
        %2401 = vmatprep.subr.mxu0 0.0
        %2402 = vmatpush1.msra.mxu0 %v1786
        %2403 = vmatprep.subr.mxu0 0.0
        %2404 = vmatpush1.msra.mxu0 0.0
        %2405 = vmatprep.subr.mxu0 0.0
        %2406 = vmatpush1.msra.mxu0 0.0
        %2407 = vmatprep.subr.mxu0 0.0
        %2408 = vmatpush1.msra.mxu0 0.0
        %2409 = vmatprep.subr.mxu0 0.0
        %2410 = vmatpush1.msra.mxu0 0.0
        %2411 = vmatprep.subr.mxu0 0.0
        %2412 = vmatpush1.msra.mxu0 0.0
        %2413 = vmatprep.subr.mxu0 0.0
        %2414 = vmatpush1.msra.mxu0 0.0
        %2415 = vmatprep.subr.mxu0 0.0
        %2416 = vmatpush1.msra.mxu0 0.0
        %2417 = vmatprep.subr.mxu0 0.0
        %2418 = vmatpush1.msra.mxu0 0.0
        %2419 = vmatprep.subr.mxu0 0.0
        %2420 = vmatpush1.msra.mxu0 0.0
        %2421 = vmatprep.subr.mxu0 0.0
        %2422 = vmatpush1.msra.mxu0 0.0
        %2423 = vmatprep.subr.mxu0 0.0
        %2424 = vmatpush1.msra.mxu0 0.0
        %2425 = vmatprep.subr.mxu0 0.0
        %2426 = vmatpush1.msra.mxu0 0.0
        %2427 = vmatprep.subr.mxu0 0.0
        %2428 = vmatpush1.msra.mxu0 0.0
        %2429 = vmatprep.subr.mxu0 0.0
        %2430 = vmatpush1.msra.mxu0 0.0
        %2431 = vmatprep.subr.mxu0 0.0
        %2432 = vmatpush1.msra.mxu0 0.0
        %2433 = vmatprep.subr.mxu0 0.0
        %2434 = vmatpush1.msra.mxu0 0.0
        %2435 = vmatprep.subr.mxu0 0.0
        %2436 = vmatpush1.msra.mxu0 0.0
        %2437 = vmatprep.subr.mxu0 0.0
        %2438 = vmatpush1.msra.mxu0 0.0
        %2439 = vmatprep.subr.mxu0 0.0
        %2440 = vmatpush1.msra.mxu0 0.0
        %2441 = vmatprep.subr.mxu0 0.0
        %2442 = vmatpush1.msra.mxu0 0.0
        %2443 = vmatprep.subr.mxu0 0.0
        %2444 = vmatpush1.msra.mxu0 0.0
        %2445 = vmatprep.subr.mxu0 0.0
        %2446 = vmatpush1.msra.mxu0 0.0
        %2447 = vmatprep.subr.mxu0 0.0
        %2448 = vmatpush1.msra.mxu0 0.0
        %2449 = vmatprep.subr.mxu0 0.0
        %2450 = vmatpush1.msra.mxu0 0.0
        %2451 = vmatprep.mubr.f32.mxu0 0.0
        %2452 = vmatmul.mubr.f32.gmra.mrb[0].mxu0 %v2364
        %v2453 = vpop.f32.mrb[0].mxu0
        %v2454 = vadd.f32 0.0, %v2453
        %v2455 = vpop.f32.mrb[0].mxu0
        %2456 = vmatprep.mubr.f32.mxu0 0.0
        %2457 = vmatmul.mubr.f32.gmra.mrb[0].mxu0 %v2367
        %v2458 = vpop.f32.mrb[0].mxu0
        %v2459 = vadd.f32 0.0, %v2458
        %v2460 = vpop.f32.mrb[0].mxu0
        %2461 = vmatprep.mubr.f32.mxu0 0.0
        %2462 = vmatmul.mubr.f32.gmra.mrb[0].mxu0 %v2370
        %v2463 = vpop.f32.mrb[0].mxu0
        %v2464 = vadd.f32 0.0, %v2463
        %v2465 = vpop.f32.mrb[0].mxu0
        %2466 = vmatprep.mubr.f32.mxu0 0.0
        %2467 = vmatmul.mubr.f32.gmra.mrb[0].mxu0 %v2373
        %v2468 = vpop.f32.mrb[0].mxu0
        %v2469 = vadd.f32 0.0, %v2468
        %v2470 = vpop.f32.mrb[0].mxu0
        %2471 = vmatprep.mubr.f32.mxu0 0.0
        %2472 = vmatmul.mubr.f32.gmra.mrb[0].mxu0 %v2376
        %v2473 = vpop.f32.mrb[0].mxu0
        %v2474 = vadd.f32 0.0, %v2473
        %v2475 = vpop.f32.mrb[0].mxu0
        %2476 = vmatprep.mubr.f32.mxu0 0.0
        %2477 = vmatmul.mubr.f32.gmra.mrb[0].mxu0 %v2379
        %v2478 = vpop.f32.mrb[0].mxu0
        %v2479 = vadd.f32 0.0, %v2478
        %v2480 = vpop.f32.mrb[0].mxu0
        %2481 = vmatprep.mubr.f32.mxu0 0.0
        %2482 = vmatmul.mubr.f32.gmra.mrb[0].mxu0 %v2382
        %v2483 = vpop.f32.mrb[0].mxu0
        %v2484 = vadd.f32 0.0, %v2483
        %v2485 = vpop.f32.mrb[0].mxu0
        %2486 = vmatprep.mubr.f32.mxu0 0.0
        %2487 = vmatmul.mubr.f32.gmra.mrb[0].mxu0 %v2385
        %v2488 = vpop.f32.mrb[0].mxu0
        %v2489 = vadd.f32 0.0, %v2488
        %v2490 = vpop.f32.mrb[0].mxu0
        %2491 = vdwg.mxu0
        %s2492 = scalar_lea.vmem [#allocation5], 512
        %v2493 = vld [vmem:[%s2492] sm:$0xff]
        %v2494 = vld [vmem:[%s2492 + $0x8] sm:$0xff]
        %v2495 = vld [vmem:[%s2492 + $0x10] sm:$0xff]
        %v2496 = vld [vmem:[%s2492 + $0x18] sm:$0xff]
        %v2497 = vld [vmem:[%s2492 + $0x20] sm:$0xff]
        %v2498 = vld [vmem:[%s2492 + $0x28] sm:$0xff]
        %v2499 = vld [vmem:[%s2492 + $0x30] sm:$0xff]
        %v2500 = vld [vmem:[%s2492 + $0x38] sm:$0xff]
        %v2501 = vld [vmem:[%s2492 + $0x40] sm:$0xff]
        %v2502 = vld [vmem:[%s2492 + $0x48] sm:$0xff]
        %v2503 = vld [vmem:[%s2492 + $0x50] sm:$0xff]
        %v2504 = vld [vmem:[%s2492 + $0x58] sm:$0xff]
        %v2505 = vld [vmem:[%s2492 + $0x60] sm:$0xff]
        %v2506 = vld [vmem:[%s2492 + $0x68] sm:$0xff]
        %v2507 = vld [vmem:[%s2492 + $0x70] sm:$0xff]
        %v2508 = vld [vmem:[%s2492 + $0x78] sm:$0xff]
        %v2509 = vld [vmem:[%s2492 + $0x80] sm:$0xff]
        %v2510 = vld [vmem:[%s2492 + $0x88] sm:$0xff]
        %v2511 = vld [vmem:[%s2492 + $0x90] sm:$0xff]
        %v2512 = vld [vmem:[%s2492 + $0x98] sm:$0xff]
        %v2513 = vld [vmem:[%s2492 + $0xa0] sm:$0xff]
        %v2514 = vld [vmem:[%s2492 + $0xa8] sm:$0xff]
        %v2515 = vld [vmem:[%s2492 + $0xb0] sm:$0xff]
        %v2516 = vld [vmem:[%s2492 + $0xb8] sm:$0xff]
        %v2517 = vld [vmem:[%s2492 + $0xc0] sm:$0xff]
        %v2518 = vld [vmem:[%s2492 + $0xc8] sm:$0xff]
        %v2519 = vld [vmem:[%s2492 + $0xd0] sm:$0xff]
        %v2520 = vld [vmem:[%s2492 + $0xd8] sm:$0xff]
        %v2521 = vld [vmem:[%s2492 + $0xe0] sm:$0xff]
        %v2522 = vld [vmem:[%s2492 + $0xe8] sm:$0xff]
        %v2523 = vld [vmem:[%s2492 + $0xf0] sm:$0xff]
        %v2524 = vld [vmem:[%s2492 + $0xf8] sm:$0xff]
        %2525 = vmatprep.subr.mxu0 %v2494
        %2526 = vmatpush1.msra.mxu0 %v2493
        %2527 = vmatprep.subr.mxu0 %v2496
        %2528 = vmatpush1.msra.mxu0 %v2495
        %2529 = vmatprep.subr.mxu0 %v2498
        %2530 = vmatpush1.msra.mxu0 %v2497
        %2531 = vmatprep.subr.mxu0 %v2500
        %2532 = vmatpush1.msra.mxu0 %v2499
        %2533 = vmatprep.subr.mxu0 %v2502
        %2534 = vmatpush1.msra.mxu0 %v2501
        %2535 = vmatprep.subr.mxu0 %v2504
        %2536 = vmatpush1.msra.mxu0 %v2503
        %2537 = vmatprep.subr.mxu0 %v2506
        %2538 = vmatpush1.msra.mxu0 %v2505
        %2539 = vmatprep.subr.mxu0 %v2508
        %2540 = vmatpush1.msra.mxu0 %v2507
        %2541 = vmatprep.subr.mxu0 %v2510
        %2542 = vmatpush1.msra.mxu0 %v2509
        %2543 = vmatprep.subr.mxu0 %v2512
        %2544 = vmatpush1.msra.mxu0 %v2511
        %2545 = vmatprep.subr.mxu0 %v2514
        %2546 = vmatpush1.msra.mxu0 %v2513
        %2547 = vmatprep.subr.mxu0 %v2516
        %2548 = vmatpush1.msra.mxu0 %v2515
        %2549 = vmatprep.subr.mxu0 %v2518
        %2550 = vmatpush1.msra.mxu0 %v2517
        %2551 = vmatprep.subr.mxu0 %v2520
        %2552 = vmatpush1.msra.mxu0 %v2519
        %2553 = vmatprep.subr.mxu0 %v2522
        %2554 = vmatpush1.msra.mxu0 %v2521
        %2555 = vmatprep.subr.mxu0 %v2524
        %2556 = vmatpush1.msra.mxu0 %v2523
        %2557 = vmatprep.subr.mxu0 0.0
        %2558 = vmatpush1.msra.mxu0 0.0
        %2559 = vmatprep.subr.mxu0 0.0
        %2560 = vmatpush1.msra.mxu0 0.0
        %2561 = vmatprep.subr.mxu0 0.0
        %2562 = vmatpush1.msra.mxu0 0.0
        %2563 = vmatprep.subr.mxu0 0.0
        %2564 = vmatpush1.msra.mxu0 0.0
        %2565 = vmatprep.subr.mxu0 0.0
        %2566 = vmatpush1.msra.mxu0 0.0
        %2567 = vmatprep.subr.mxu0 0.0
        %2568 = vmatpush1.msra.mxu0 0.0
        %2569 = vmatprep.subr.mxu0 0.0
        %2570 = vmatpush1.msra.mxu0 0.0
        %2571 = vmatprep.subr.mxu0 0.0
        %2572 = vmatpush1.msra.mxu0 0.0
        %2573 = vmatprep.subr.mxu0 0.0
        %2574 = vmatpush1.msra.mxu0 0.0
        %2575 = vmatprep.subr.mxu0 0.0
        %2576 = vmatpush1.msra.mxu0 0.0
        %2577 = vmatprep.subr.mxu0 0.0
        %2578 = vmatpush1.msra.mxu0 0.0
        %2579 = vmatprep.subr.mxu0 0.0
        %2580 = vmatpush1.msra.mxu0 0.0
        %2581 = vmatprep.subr.mxu0 0.0
        %2582 = vmatpush1.msra.mxu0 0.0
        %2583 = vmatprep.subr.mxu0 0.0
        %2584 = vmatpush1.msra.mxu0 0.0
        %2585 = vmatprep.subr.mxu0 0.0
        %2586 = vmatpush1.msra.mxu0 0.0
        %2587 = vmatprep.subr.mxu0 0.0
        %2588 = vmatpush1.msra.mxu0 0.0
        %2589 = vmatprep.mubr.f32.mxu0 0.0
        %2590 = vmatmul.mubr.f32.gmra.mrb[0].mxu0 %v2454
        %v2591 = vpop.f32.mrb[0].mxu0
        %v2592 = vadd.f32 0.0, %v2591
        %v2593 = vpop.f32.mrb[0].mxu0
        %v2594 = vadd.f32 0.0, %v2593
        %2595 = vmatprep.mubr.f32.mxu0 0.0
        %2596 = vmatmul.mubr.f32.gmra.mrb[0].mxu0 %v2459
        %v2597 = vpop.f32.mrb[0].mxu0
        %v2598 = vadd.f32 0.0, %v2597
        %v2599 = vpop.f32.mrb[0].mxu0
        %v2600 = vadd.f32 0.0, %v2599
        %2601 = vmatprep.mubr.f32.mxu0 0.0
        %2602 = vmatmul.mubr.f32.gmra.mrb[0].mxu0 %v2464
        %v2603 = vpop.f32.mrb[0].mxu0
        %v2604 = vadd.f32 0.0, %v2603
        %v2605 = vpop.f32.mrb[0].mxu0
        %v2606 = vadd.f32 0.0, %v2605
        %2607 = vmatprep.mubr.f32.mxu0 0.0
        %2608 = vmatmul.mubr.f32.gmra.mrb[0].mxu0 %v2469
        %v2609 = vpop.f32.mrb[0].mxu0
        %v2610 = vadd.f32 0.0, %v2609
        %v2611 = vpop.f32.mrb[0].mxu0
        %v2612 = vadd.f32 0.0, %v2611
        %2613 = vmatprep.mubr.f32.mxu0 0.0
        %2614 = vmatmul.mubr.f32.gmra.mrb[0].mxu0 %v2474
        %v2615 = vpop.f32.mrb[0].mxu0
        %v2616 = vadd.f32 0.0, %v2615
        %v2617 = vpop.f32.mrb[0].mxu0
        %v2618 = vadd.f32 0.0, %v2617
        %2619 = vmatprep.mubr.f32.mxu0 0.0
        %2620 = vmatmul.mubr.f32.gmra.mrb[0].mxu0 %v2479
        %v2621 = vpop.f32.mrb[0].mxu0
        %v2622 = vadd.f32 0.0, %v2621
        %v2623 = vpop.f32.mrb[0].mxu0
        %v2624 = vadd.f32 0.0, %v2623
        %2625 = vmatprep.mubr.f32.mxu0 0.0
        %2626 = vmatmul.mubr.f32.gmra.mrb[0].mxu0 %v2484
        %v2627 = vpop.f32.mrb[0].mxu0
        %v2628 = vadd.f32 0.0, %v2627
        %v2629 = vpop.f32.mrb[0].mxu0
        %v2630 = vadd.f32 0.0, %v2629
        %2631 = vmatprep.mubr.f32.mxu0 0.0
        %2632 = vmatmul.mubr.f32.gmra.mrb[0].mxu0 %v2489
        %v2633 = vpop.f32.mrb[0].mxu0
        %v2634 = vadd.f32 0.0, %v2633
        %v2635 = vpop.f32.mrb[0].mxu0
        %v2636 = vadd.f32 0.0, %v2635
        %2637 = vdwg.mxu0
        %v2638 = vadd.f32 %v2308, %v2592
        %v2639 = vadd.f32 %v2310, %v2594
        %v2640 = vadd.f32 %v2314, %v2598
        %v2641 = vadd.f32 %v2316, %v2600
        %v2642 = vadd.f32 %v2320, %v2604
        %v2643 = vadd.f32 %v2322, %v2606
        %v2644 = vadd.f32 %v2326, %v2610
        %v2645 = vadd.f32 %v2328, %v2612
        %v2646 = vadd.f32 %v2332, %v2616
        %v2647 = vadd.f32 %v2334, %v2618
        %v2648 = vadd.f32 %v2338, %v2622
        %v2649 = vadd.f32 %v2340, %v2624
        %v2650 = vadd.f32 %v2344, %v2628
        %v2651 = vadd.f32 %v2346, %v2630
        %v2652 = vadd.f32 %v2350, %v2634
        %v2653 = vadd.f32 %v2352, %v2636
        %v2654 = vmax.f32 %v2638, %v2639
        %v2655 = vmax.f32 %v2640, %v2641
        %v2656 = vmax.f32 %v2642, %v2643
        %v2657 = vmax.f32 %v2644, %v2645
        %v2658 = vmax.f32 %v2646, %v2647
        %v2659 = vmax.f32 %v2648, %v2649
        %v2660 = vmax.f32 %v2650, %v2651
        %v2661 = vmax.f32 %v2652, %v2653
        %v2662 = vmax.f32 %v2654, %v2658
        %v2663 = vmax.f32 %v2655, %v2659
        %v2664 = vmax.f32 %v2656, %v2660
        %v2665 = vmax.f32 %v2657, %v2661
        %v2666 = vld [vmem:[%s6] sm:$0x1]
        %v2668 = vlaneseq
        %v2669 = vshrl.u32 %v2668, 7
        %v2670 = vsub.s32 0, %v2669
        %v2671 = vrot.slane %v2666, %v2670
        %v2673 = vadd.f32 %v2662, %v2671
        %v2674 = vadd.f32 %v2663, %v2671
        %v2675 = vadd.f32 %v2664, %v2671
        %v2676 = vadd.f32 %v2665, %v2671
        %v2677 = vmax.f32 %v2673, 0.0
        %v2678 = vmax.f32 %v2674, 0.0
        %v2679 = vmax.f32 %v2675, 0.0
        %v2680 = vmax.f32 %v2676, 0.0
        %v2681 = vld [vmem:[%s8] sm:$0xf]
        %vm2682 = vcmask 261120
        %v2684 = vsel %vm2682, %v2681, 0
        %2686 = vmatprep.subr.mxu0 0.0
        %2687 = vmatpush1.msra.mxu0 %v2677
        %2688 = vmatprep.subr.mxu0 0.0
        %2689 = vmatpush1.msra.mxu0 %v2678
        %2690 = vmatprep.subr.mxu0 0.0
        %2691 = vmatpush1.msra.mxu0 %v2679
        %2692 = vmatprep.subr.mxu0 0.0
        %2693 = vmatpush1.msra.mxu0 %v2680
        %2694 = vmatprep.subr.mxu0 0.0
        %2695 = vmatpush1.msra.mxu0 0.0
        %2696 = vmatprep.subr.mxu0 0.0
        %2697 = vmatpush1.msra.mxu0 0.0
        %2698 = vmatprep.subr.mxu0 0.0
        %2699 = vmatpush1.msra.mxu0 0.0
        %2700 = vmatprep.subr.mxu0 0.0
        %2701 = vmatpush1.msra.mxu0 0.0
        %2702 = vmatprep.subr.mxu0 0.0
        %2703 = vmatpush1.msra.mxu0 0.0
        %2704 = vmatprep.subr.mxu0 0.0
        %2705 = vmatpush1.msra.mxu0 0.0
        %2706 = vmatprep.subr.mxu0 0.0
        %2707 = vmatpush1.msra.mxu0 0.0
        %2708 = vmatprep.subr.mxu0 0.0
        %2709 = vmatpush1.msra.mxu0 0.0
        %2710 = vmatprep.subr.mxu0 0.0
        %2711 = vmatpush1.msra.mxu0 0.0
        %2712 = vmatprep.subr.mxu0 0.0
        %2713 = vmatpush1.msra.mxu0 0.0
        %2714 = vmatprep.subr.mxu0 0.0
        %2715 = vmatpush1.msra.mxu0 0.0
        %2716 = vmatprep.subr.mxu0 0.0
        %2717 = vmatpush1.msra.mxu0 0.0
        %2718 = vmatprep.subr.mxu0 0.0
        %2719 = vmatpush1.msra.mxu0 0.0
        %2720 = vmatprep.subr.mxu0 0.0
        %2721 = vmatpush1.msra.mxu0 0.0
        %2722 = vmatprep.subr.mxu0 0.0
        %2723 = vmatpush1.msra.mxu0 0.0
        %2724 = vmatprep.subr.mxu0 0.0
        %2725 = vmatpush1.msra.mxu0 0.0
        %2726 = vmatprep.subr.mxu0 0.0
        %2727 = vmatpush1.msra.mxu0 0.0
        %2728 = vmatprep.subr.mxu0 0.0
        %2729 = vmatpush1.msra.mxu0 0.0
        %2730 = vmatprep.subr.mxu0 0.0
        %2731 = vmatpush1.msra.mxu0 0.0
        %2732 = vmatprep.subr.mxu0 0.0
        %2733 = vmatpush1.msra.mxu0 0.0
        %2734 = vmatprep.subr.mxu0 0.0
        %2735 = vmatpush1.msra.mxu0 0.0
        %2736 = vmatprep.subr.mxu0 0.0
        %2737 = vmatpush1.msra.mxu0 0.0
        %2738 = vmatprep.subr.mxu0 0.0
        %2739 = vmatpush1.msra.mxu0 0.0
        %2740 = vmatprep.subr.mxu0 0.0
        %2741 = vmatpush1.msra.mxu0 0.0
        %2742 = vmatprep.subr.mxu0 0.0
        %2743 = vmatpush1.msra.mxu0 0.0
        %2744 = vmatprep.subr.mxu0 0.0
        %2745 = vmatpush1.msra.mxu0 0.0
        %2746 = vmatprep.subr.mxu0 0.0
        %2747 = vmatpush1.msra.mxu0 0.0
        %2748 = vmatprep.subr.mxu0 0.0
        %2749 = vmatpush1.msra.mxu0 0.0
        %2750 = vmatprep.mubr.f32.mxu0 0.0
        %2751 = vmatmul.mubr.f32.gmra.mrb[0].mxu0 %v2684
        %v2752 = vpop.f32.mrb[0].mxu0
        %v2753 = vadd.f32 0.0, %v2752
        %v2754 = vpop.f32.mrb[0].mxu0
        %2755 = vdwg.mxu0
        %v2756 = vld [vmem:[#allocation8] sm:$0xff]
        %v2757 = vld [vmem:[#allocation8 + $0x8] sm:$0xff]
        %v2758 = vld [vmem:[#allocation8 + $0x10] sm:$0xff]
        %v2759 = vld [vmem:[#allocation8 + $0x18] sm:$0xff]
        %v2760 = vld [vmem:[#allocation8 + $0x20] sm:$0xff]
        %v2761 = vld [vmem:[#allocation8 + $0x28] sm:$0xff]
        %v2762 = vld [vmem:[#allocation8 + $0x30] sm:$0xff]
        %v2763 = vld [vmem:[#allocation8 + $0x38] sm:$0xff]
        %v2764 = vld [vmem:[#allocation8 + $0x40] sm:$0xff]
        %v2765 = vld [vmem:[#allocation8 + $0x48] sm:$0xff]
        %v2766 = vld [vmem:[#allocation8 + $0x50] sm:$0xff]
        %v2767 = vld [vmem:[#allocation8 + $0x58] sm:$0xff]
        %v2768 = vld [vmem:[#allocation8 + $0x60] sm:$0xff]
        %v2769 = vld [vmem:[#allocation8 + $0x68] sm:$0xff]
        %v2770 = vld [vmem:[#allocation8 + $0x70] sm:$0xff]
        %v2771 = vld [vmem:[#allocation8 + $0x78] sm:$0xff]
        %v2772 = vld [vmem:[#allocation8 + $0x80] sm:$0xff]
        %v2773 = vld [vmem:[#allocation8 + $0x88] sm:$0xff]
        %v2774 = vld [vmem:[#allocation8 + $0x90] sm:$0xff]
        %v2775 = vld [vmem:[#allocation8 + $0x98] sm:$0xff]
        %v2776 = vld [vmem:[#allocation8 + $0xa0] sm:$0xff]
        %v2777 = vld [vmem:[#allocation8 + $0xa8] sm:$0xff]
        %v2778 = vld [vmem:[#allocation8 + $0xb0] sm:$0xff]
        %v2779 = vld [vmem:[#allocation8 + $0xb8] sm:$0xff]
        %v2780 = vld [vmem:[#allocation8 + $0xc0] sm:$0xff]
        %v2781 = vld [vmem:[#allocation8 + $0xc8] sm:$0xff]
        %v2782 = vld [vmem:[#allocation8 + $0xd0] sm:$0xff]
        %v2783 = vld [vmem:[#allocation8 + $0xd8] sm:$0xff]
        %v2784 = vld [vmem:[#allocation8 + $0xe0] sm:$0xff]
        %v2785 = vld [vmem:[#allocation8 + $0xe8] sm:$0xff]
        %v2786 = vld [vmem:[#allocation8 + $0xf0] sm:$0xff]
        %v2787 = vld [vmem:[#allocation8 + $0xf8] sm:$0xff]
        %s2788 = scalar_lea.vmem %s8, 4
        %v2789 = vld [vmem:[%s2788] sm:$0xf]
        %v2791 = vsel %vm2682, %v2789, 0
        %2793 = vmatprep.subr.mxu0 0.0
        %2794 = vmatpush1.msra.mxu0 %v2677
        %2795 = vmatprep.subr.mxu0 0.0
        %2796 = vmatpush1.msra.mxu0 %v2678
        %2797 = vmatprep.subr.mxu0 0.0
        %2798 = vmatpush1.msra.mxu0 %v2679
        %2799 = vmatprep.subr.mxu0 0.0
        %2800 = vmatpush1.msra.mxu0 %v2680
        %2801 = vmatprep.subr.mxu0 0.0
        %2802 = vmatpush1.msra.mxu0 0.0
        %2803 = vmatprep.subr.mxu0 0.0
        %2804 = vmatpush1.msra.mxu0 0.0
        %2805 = vmatprep.subr.mxu0 0.0
        %2806 = vmatpush1.msra.mxu0 0.0
        %2807 = vmatprep.subr.mxu0 0.0
        %2808 = vmatpush1.msra.mxu0 0.0
        %2809 = vmatprep.subr.mxu0 0.0
        %2810 = vmatpush1.msra.mxu0 0.0
        %2811 = vmatprep.subr.mxu0 0.0
        %2812 = vmatpush1.msra.mxu0 0.0
        %2813 = vmatprep.subr.mxu0 0.0
        %2814 = vmatpush1.msra.mxu0 0.0
        %2815 = vmatprep.subr.mxu0 0.0
        %2816 = vmatpush1.msra.mxu0 0.0
        %2817 = vmatprep.subr.mxu0 0.0
        %2818 = vmatpush1.msra.mxu0 0.0
        %2819 = vmatprep.subr.mxu0 0.0
        %2820 = vmatpush1.msra.mxu0 0.0
        %2821 = vmatprep.subr.mxu0 0.0
        %2822 = vmatpush1.msra.mxu0 0.0
        %2823 = vmatprep.subr.mxu0 0.0
        %2824 = vmatpush1.msra.mxu0 0.0
        %2825 = vmatprep.subr.mxu0 0.0
        %2826 = vmatpush1.msra.mxu0 0.0
        %2827 = vmatprep.subr.mxu0 0.0
        %2828 = vmatpush1.msra.mxu0 0.0
        %2829 = vmatprep.subr.mxu0 0.0
        %2830 = vmatpush1.msra.mxu0 0.0
        %2831 = vmatprep.subr.mxu0 0.0
        %2832 = vmatpush1.msra.mxu0 0.0
        %2833 = vmatprep.subr.mxu0 0.0
        %2834 = vmatpush1.msra.mxu0 0.0
        %2835 = vmatprep.subr.mxu0 0.0
        %2836 = vmatpush1.msra.mxu0 0.0
        %2837 = vmatprep.subr.mxu0 0.0
        %2838 = vmatpush1.msra.mxu0 0.0
        %2839 = vmatprep.subr.mxu0 0.0
        %2840 = vmatpush1.msra.mxu0 0.0
        %2841 = vmatprep.subr.mxu0 0.0
        %2842 = vmatpush1.msra.mxu0 0.0
        %2843 = vmatprep.subr.mxu0 0.0
        %2844 = vmatpush1.msra.mxu0 0.0
        %2845 = vmatprep.subr.mxu0 0.0
        %2846 = vmatpush1.msra.mxu0 0.0
        %2847 = vmatprep.subr.mxu0 0.0
        %2848 = vmatpush1.msra.mxu0 0.0
        %2849 = vmatprep.subr.mxu0 0.0
        %2850 = vmatpush1.msra.mxu0 0.0
        %2851 = vmatprep.subr.mxu0 0.0
        %2852 = vmatpush1.msra.mxu0 0.0
        %2853 = vmatprep.subr.mxu0 0.0
        %2854 = vmatpush1.msra.mxu0 0.0
        %2855 = vmatprep.subr.mxu0 0.0
        %2856 = vmatpush1.msra.mxu0 0.0
        %2857 = vmatprep.mubr.f32.mxu0 0.0
        %2858 = vmatmul.mubr.f32.gmra.mrb[0].mxu0 %v2791
        %v2859 = vpop.f32.mrb[0].mxu0
        %v2860 = vadd.f32 0.0, %v2859
        %v2861 = vpop.f32.mrb[0].mxu0
        %2862 = vdwg.mxu0
        %s2863 = scalar_lea.vmem [#allocation8], 256
        %v2864 = vld [vmem:[%s2863] sm:$0xff]
        %v2865 = vld [vmem:[%s2863 + $0x8] sm:$0xff]
        %v2866 = vld [vmem:[%s2863 + $0x10] sm:$0xff]
        %v2867 = vld [vmem:[%s2863 + $0x18] sm:$0xff]
        %v2868 = vld [vmem:[%s2863 + $0x20] sm:$0xff]
        %v2869 = vld [vmem:[%s2863 + $0x28] sm:$0xff]
        %v2870 = vld [vmem:[%s2863 + $0x30] sm:$0xff]
        %v2871 = vld [vmem:[%s2863 + $0x38] sm:$0xff]
        %v2872 = vld [vmem:[%s2863 + $0x40] sm:$0xff]
        %v2873 = vld [vmem:[%s2863 + $0x48] sm:$0xff]
        %v2874 = vld [vmem:[%s2863 + $0x50] sm:$0xff]
        %v2875 = vld [vmem:[%s2863 + $0x58] sm:$0xff]
        %v2876 = vld [vmem:[%s2863 + $0x60] sm:$0xff]
        %v2877 = vld [vmem:[%s2863 + $0x68] sm:$0xff]
        %v2878 = vld [vmem:[%s2863 + $0x70] sm:$0xff]
        %v2879 = vld [vmem:[%s2863 + $0x78] sm:$0xff]
        %v2880 = vld [vmem:[%s2863 + $0x80] sm:$0xff]
        %v2881 = vld [vmem:[%s2863 + $0x88] sm:$0xff]
        %v2882 = vld [vmem:[%s2863 + $0x90] sm:$0xff]
        %v2883 = vld [vmem:[%s2863 + $0x98] sm:$0xff]
        %v2884 = vld [vmem:[%s2863 + $0xa0] sm:$0xff]
        %v2885 = vld [vmem:[%s2863 + $0xa8] sm:$0xff]
        %v2886 = vld [vmem:[%s2863 + $0xb0] sm:$0xff]
        %v2887 = vld [vmem:[%s2863 + $0xb8] sm:$0xff]
        %v2888 = vld [vmem:[%s2863 + $0xc0] sm:$0xff]
        %v2889 = vld [vmem:[%s2863 + $0xc8] sm:$0xff]
        %v2890 = vld [vmem:[%s2863 + $0xd0] sm:$0xff]
        %v2891 = vld [vmem:[%s2863 + $0xd8] sm:$0xff]
        %v2892 = vld [vmem:[%s2863 + $0xe0] sm:$0xff]
        %v2893 = vld [vmem:[%s2863 + $0xe8] sm:$0xff]
        %v2894 = vld [vmem:[%s2863 + $0xf0] sm:$0xff]
        %v2895 = vld [vmem:[%s2863 + $0xf8] sm:$0xff]
        %2896 = vmatprep.subr.mxu0 %v2865
        %2897 = vmatpush1.msra.mxu0 %v2864
        %2898 = vmatprep.subr.mxu0 %v2867
        %2899 = vmatpush1.msra.mxu0 %v2866
        %2900 = vmatprep.subr.mxu0 %v2869
        %2901 = vmatpush1.msra.mxu0 %v2868
        %2902 = vmatprep.subr.mxu0 %v2871
        %2903 = vmatpush1.msra.mxu0 %v2870
        %2904 = vmatprep.subr.mxu0 %v2873
        %2905 = vmatpush1.msra.mxu0 %v2872
        %2906 = vmatprep.subr.mxu0 %v2875
        %2907 = vmatpush1.msra.mxu0 %v2874
        %2908 = vmatprep.subr.mxu0 %v2877
        %2909 = vmatpush1.msra.mxu0 %v2876
        %2910 = vmatprep.subr.mxu0 %v2879
        %2911 = vmatpush1.msra.mxu0 %v2878
        %2912 = vmatprep.subr.mxu0 %v2881
        %2913 = vmatpush1.msra.mxu0 %v2880
        %2914 = vmatprep.subr.mxu0 %v2883
        %2915 = vmatpush1.msra.mxu0 %v2882
        %2916 = vmatprep.subr.mxu0 %v2885
        %2917 = vmatpush1.msra.mxu0 %v2884
        %2918 = vmatprep.subr.mxu0 %v2887
        %2919 = vmatpush1.msra.mxu0 %v2886
        %2920 = vmatprep.subr.mxu0 %v2889
        %2921 = vmatpush1.msra.mxu0 %v2888
        %2922 = vmatprep.subr.mxu0 %v2891
        %2923 = vmatpush1.msra.mxu0 %v2890
        %2924 = vmatprep.subr.mxu0 %v2893
        %2925 = vmatpush1.msra.mxu0 %v2892
        %2926 = vmatprep.subr.mxu0 %v2895
        %2927 = vmatpush1.msra.mxu0 %v2894
        %2928 = vmatprep.subr.mxu0 0.0
        %2929 = vmatpush1.msra.mxu0 0.0
        %2930 = vmatprep.subr.mxu0 0.0
        %2931 = vmatpush1.msra.mxu0 0.0
        %2932 = vmatprep.subr.mxu0 0.0
        %2933 = vmatpush1.msra.mxu0 0.0
        %2934 = vmatprep.subr.mxu0 0.0
        %2935 = vmatpush1.msra.mxu0 0.0
        %2936 = vmatprep.subr.mxu0 0.0
        %2937 = vmatpush1.msra.mxu0 0.0
        %2938 = vmatprep.subr.mxu0 0.0
        %2939 = vmatpush1.msra.mxu0 0.0
        %2940 = vmatprep.subr.mxu0 0.0
        %2941 = vmatpush1.msra.mxu0 0.0
        %2942 = vmatprep.subr.mxu0 0.0
        %2943 = vmatpush1.msra.mxu0 0.0
        %2944 = vmatprep.subr.mxu0 0.0
        %2945 = vmatpush1.msra.mxu0 0.0
        %2946 = vmatprep.subr.mxu0 0.0
        %2947 = vmatpush1.msra.mxu0 0.0
        %2948 = vmatprep.subr.mxu0 0.0
        %2949 = vmatpush1.msra.mxu0 0.0
        %2950 = vmatprep.subr.mxu0 0.0
        %2951 = vmatpush1.msra.mxu0 0.0
        %2952 = vmatprep.subr.mxu0 0.0
        %2953 = vmatpush1.msra.mxu0 0.0
        %2954 = vmatprep.subr.mxu0 0.0
        %2955 = vmatpush1.msra.mxu0 0.0
        %2956 = vmatprep.subr.mxu0 0.0
        %2957 = vmatpush1.msra.mxu0 0.0
        %2958 = vmatprep.subr.mxu0 0.0
        %2959 = vmatpush1.msra.mxu0 0.0
        %2960 = vmatprep.mubr.f32.mxu0 0.0
        %2961 = vmatmul.mubr.f32.gmra.mrb[0].mxu0 %v2860
        %v2962 = vpop.f32.mrb[0].mxu0
        %v2963 = vadd.f32 0.0, %v2962
        %v2964 = vpop.f32.mrb[0].mxu0
        %v2965 = vadd.f32 0.0, %v2964
        %2966 = vdwg.mxu0
        %2967 = vmatprep.subr.mxu0 %v2757
        %2968 = vmatpush1.msra.mxu0 %v2756
        %2969 = vmatprep.subr.mxu0 %v2759
        %2970 = vmatpush1.msra.mxu0 %v2758
        %2971 = vmatprep.subr.mxu0 %v2761
        %2972 = vmatpush1.msra.mxu0 %v2760
        %2973 = vmatprep.subr.mxu0 %v2763
        %2974 = vmatpush1.msra.mxu0 %v2762
        %2975 = vmatprep.subr.mxu0 %v2765
        %2976 = vmatpush1.msra.mxu0 %v2764
        %2977 = vmatprep.subr.mxu0 %v2767
        %2978 = vmatpush1.msra.mxu0 %v2766
        %2979 = vmatprep.subr.mxu0 %v2769
        %2980 = vmatpush1.msra.mxu0 %v2768
        %2981 = vmatprep.subr.mxu0 %v2771
        %2982 = vmatpush1.msra.mxu0 %v2770
        %2983 = vmatprep.subr.mxu0 %v2773
        %2984 = vmatpush1.msra.mxu0 %v2772
        %2985 = vmatprep.subr.mxu0 %v2775
        %2986 = vmatpush1.msra.mxu0 %v2774
        %2987 = vmatprep.subr.mxu0 %v2777
        %2988 = vmatpush1.msra.mxu0 %v2776
        %2989 = vmatprep.subr.mxu0 %v2779
        %2990 = vmatpush1.msra.mxu0 %v2778
        %2991 = vmatprep.subr.mxu0 %v2781
        %2992 = vmatpush1.msra.mxu0 %v2780
        %2993 = vmatprep.subr.mxu0 %v2783
        %2994 = vmatpush1.msra.mxu0 %v2782
        %2995 = vmatprep.subr.mxu0 %v2785
        %2996 = vmatpush1.msra.mxu0 %v2784
        %2997 = vmatprep.subr.mxu0 %v2787
        %2998 = vmatpush1.msra.mxu0 %v2786
        %2999 = vmatprep.subr.mxu0 0.0
        %3000 = vmatpush1.msra.mxu0 0.0
        %3001 = vmatprep.subr.mxu0 0.0
        %3002 = vmatpush1.msra.mxu0 0.0
        %3003 = vmatprep.subr.mxu0 0.0
        %3004 = vmatpush1.msra.mxu0 0.0
        %3005 = vmatprep.subr.mxu0 0.0
        %3006 = vmatpush1.msra.mxu0 0.0
        %3007 = vmatprep.subr.mxu0 0.0
        %3008 = vmatpush1.msra.mxu0 0.0
        %3009 = vmatprep.subr.mxu0 0.0
        %3010 = vmatpush1.msra.mxu0 0.0
        %3011 = vmatprep.subr.mxu0 0.0
        %3012 = vmatpush1.msra.mxu0 0.0
        %3013 = vmatprep.subr.mxu0 0.0
        %3014 = vmatpush1.msra.mxu0 0.0
        %3015 = vmatprep.subr.mxu0 0.0
        %3016 = vmatpush1.msra.mxu0 0.0
        %3017 = vmatprep.subr.mxu0 0.0
        %3018 = vmatpush1.msra.mxu0 0.0
        %3019 = vmatprep.subr.mxu0 0.0
        %3020 = vmatpush1.msra.mxu0 0.0
        %3021 = vmatprep.subr.mxu0 0.0
        %3022 = vmatpush1.msra.mxu0 0.0
        %3023 = vmatprep.subr.mxu0 0.0
        %3024 = vmatpush1.msra.mxu0 0.0
        %3025 = vmatprep.subr.mxu0 0.0
        %3026 = vmatpush1.msra.mxu0 0.0
        %3027 = vmatprep.subr.mxu0 0.0
        %3028 = vmatpush1.msra.mxu0 0.0
        %3029 = vmatprep.subr.mxu0 0.0
        %3030 = vmatpush1.msra.mxu0 0.0
        %3031 = vmatprep.mubr.f32.mxu0 0.0
        %3032 = vmatmul.mubr.f32.gmra.mrb[0].mxu0 %v2753
        %v3033 = vpop.f32.mrb[0].mxu0
        %v3034 = vadd.f32 %v2963, %v3033
        %v3035 = vpop.f32.mrb[0].mxu0
        %v3036 = vadd.f32 %v2965, %v3035
        %3037 = vdwg.mxu0
        %s3038 = scalar_lea.vmem %s8, 8
        %v3039 = vld [vmem:[%s3038] sm:$0xf]
        %v3041 = vsel %vm2682, %v3039, 0
        %3043 = vmatprep.subr.mxu0 0.0
        %3044 = vmatpush1.msra.mxu0 %v2677
        %3045 = vmatprep.subr.mxu0 0.0
        %3046 = vmatpush1.msra.mxu0 %v2678
        %3047 = vmatprep.subr.mxu0 0.0
        %3048 = vmatpush1.msra.mxu0 %v2679
        %3049 = vmatprep.subr.mxu0 0.0
        %3050 = vmatpush1.msra.mxu0 %v2680
        %3051 = vmatprep.subr.mxu0 0.0
        %3052 = vmatpush1.msra.mxu0 0.0
        %3053 = vmatprep.subr.mxu0 0.0
        %3054 = vmatpush1.msra.mxu0 0.0
        %3055 = vmatprep.subr.mxu0 0.0
        %3056 = vmatpush1.msra.mxu0 0.0
        %3057 = vmatprep.subr.mxu0 0.0
        %3058 = vmatpush1.msra.mxu0 0.0
        %3059 = vmatprep.subr.mxu0 0.0
        %3060 = vmatpush1.msra.mxu0 0.0
        %3061 = vmatprep.subr.mxu0 0.0
        %3062 = vmatpush1.msra.mxu0 0.0
        %3063 = vmatprep.subr.mxu0 0.0
        %3064 = vmatpush1.msra.mxu0 0.0
        %3065 = vmatprep.subr.mxu0 0.0
        %3066 = vmatpush1.msra.mxu0 0.0
        %3067 = vmatprep.subr.mxu0 0.0
        %3068 = vmatpush1.msra.mxu0 0.0
        %3069 = vmatprep.subr.mxu0 0.0
        %3070 = vmatpush1.msra.mxu0 0.0
        %3071 = vmatprep.subr.mxu0 0.0
        %3072 = vmatpush1.msra.mxu0 0.0
        %3073 = vmatprep.subr.mxu0 0.0
        %3074 = vmatpush1.msra.mxu0 0.0
        %3075 = vmatprep.subr.mxu0 0.0
        %3076 = vmatpush1.msra.mxu0 0.0
        %3077 = vmatprep.subr.mxu0 0.0
        %3078 = vmatpush1.msra.mxu0 0.0
        %3079 = vmatprep.subr.mxu0 0.0
        %3080 = vmatpush1.msra.mxu0 0.0
        %3081 = vmatprep.subr.mxu0 0.0
        %3082 = vmatpush1.msra.mxu0 0.0
        %3083 = vmatprep.subr.mxu0 0.0
        %3084 = vmatpush1.msra.mxu0 0.0
        %3085 = vmatprep.subr.mxu0 0.0
        %3086 = vmatpush1.msra.mxu0 0.0
        %3087 = vmatprep.subr.mxu0 0.0
        %3088 = vmatpush1.msra.mxu0 0.0
        %3089 = vmatprep.subr.mxu0 0.0
        %3090 = vmatpush1.msra.mxu0 0.0
        %3091 = vmatprep.subr.mxu0 0.0
        %3092 = vmatpush1.msra.mxu0 0.0
        %3093 = vmatprep.subr.mxu0 0.0
        %3094 = vmatpush1.msra.mxu0 0.0
        %3095 = vmatprep.subr.mxu0 0.0
        %3096 = vmatpush1.msra.mxu0 0.0
        %3097 = vmatprep.subr.mxu0 0.0
        %3098 = vmatpush1.msra.mxu0 0.0
        %3099 = vmatprep.subr.mxu0 0.0
        %3100 = vmatpush1.msra.mxu0 0.0
        %3101 = vmatprep.subr.mxu0 0.0
        %3102 = vmatpush1.msra.mxu0 0.0
        %3103 = vmatprep.subr.mxu0 0.0
        %3104 = vmatpush1.msra.mxu0 0.0
        %3105 = vmatprep.subr.mxu0 0.0
        %3106 = vmatpush1.msra.mxu0 0.0
        %3107 = vmatprep.mubr.f32.mxu0 0.0
        %3108 = vmatmul.mubr.f32.gmra.mrb[0].mxu0 %v3041
        %v3109 = vpop.f32.mrb[0].mxu0
        %v3110 = vadd.f32 0.0, %v3109
        %v3111 = vpop.f32.mrb[0].mxu0
        %3112 = vdwg.mxu0
        %s3113 = scalar_lea.vmem [#allocation8], 512
        %v3114 = vld [vmem:[%s3113] sm:$0xff]
        %v3115 = vld [vmem:[%s3113 + $0x8] sm:$0xff]
        %v3116 = vld [vmem:[%s3113 + $0x10] sm:$0xff]
        %v3117 = vld [vmem:[%s3113 + $0x18] sm:$0xff]
        %v3118 = vld [vmem:[%s3113 + $0x20] sm:$0xff]
        %v3119 = vld [vmem:[%s3113 + $0x28] sm:$0xff]
        %v3120 = vld [vmem:[%s3113 + $0x30] sm:$0xff]
        %v3121 = vld [vmem:[%s3113 + $0x38] sm:$0xff]
        %v3122 = vld [vmem:[%s3113 + $0x40] sm:$0xff]
        %v3123 = vld [vmem:[%s3113 + $0x48] sm:$0xff]
        %v3124 = vld [vmem:[%s3113 + $0x50] sm:$0xff]
        %v3125 = vld [vmem:[%s3113 + $0x58] sm:$0xff]
        %v3126 = vld [vmem:[%s3113 + $0x60] sm:$0xff]
        %v3127 = vld [vmem:[%s3113 + $0x68] sm:$0xff]
        %v3128 = vld [vmem:[%s3113 + $0x70] sm:$0xff]
        %v3129 = vld [vmem:[%s3113 + $0x78] sm:$0xff]
        %v3130 = vld [vmem:[%s3113 + $0x80] sm:$0xff]
        %v3131 = vld [vmem:[%s3113 + $0x88] sm:$0xff]
        %v3132 = vld [vmem:[%s3113 + $0x90] sm:$0xff]
        %v3133 = vld [vmem:[%s3113 + $0x98] sm:$0xff]
        %v3134 = vld [vmem:[%s3113 + $0xa0] sm:$0xff]
        %v3135 = vld [vmem:[%s3113 + $0xa8] sm:$0xff]
        %v3136 = vld [vmem:[%s3113 + $0xb0] sm:$0xff]
        %v3137 = vld [vmem:[%s3113 + $0xb8] sm:$0xff]
        %v3138 = vld [vmem:[%s3113 + $0xc0] sm:$0xff]
        %v3139 = vld [vmem:[%s3113 + $0xc8] sm:$0xff]
        %v3140 = vld [vmem:[%s3113 + $0xd0] sm:$0xff]
        %v3141 = vld [vmem:[%s3113 + $0xd8] sm:$0xff]
        %v3142 = vld [vmem:[%s3113 + $0xe0] sm:$0xff]
        %v3143 = vld [vmem:[%s3113 + $0xe8] sm:$0xff]
        %v3144 = vld [vmem:[%s3113 + $0xf0] sm:$0xff]
        %v3145 = vld [vmem:[%s3113 + $0xf8] sm:$0xff]
        %3146 = vmatprep.subr.mxu0 %v3115
        %3147 = vmatpush1.msra.mxu0 %v3114
        %3148 = vmatprep.subr.mxu0 %v3117
        %3149 = vmatpush1.msra.mxu0 %v3116
        %3150 = vmatprep.subr.mxu0 %v3119
        %3151 = vmatpush1.msra.mxu0 %v3118
        %3152 = vmatprep.subr.mxu0 %v3121
        %3153 = vmatpush1.msra.mxu0 %v3120
        %3154 = vmatprep.subr.mxu0 %v3123
        %3155 = vmatpush1.msra.mxu0 %v3122
        %3156 = vmatprep.subr.mxu0 %v3125
        %3157 = vmatpush1.msra.mxu0 %v3124
        %3158 = vmatprep.subr.mxu0 %v3127
        %3159 = vmatpush1.msra.mxu0 %v3126
        %3160 = vmatprep.subr.mxu0 %v3129
        %3161 = vmatpush1.msra.mxu0 %v3128
        %3162 = vmatprep.subr.mxu0 %v3131
        %3163 = vmatpush1.msra.mxu0 %v3130
        %3164 = vmatprep.subr.mxu0 %v3133
        %3165 = vmatpush1.msra.mxu0 %v3132
        %3166 = vmatprep.subr.mxu0 %v3135
        %3167 = vmatpush1.msra.mxu0 %v3134
        %3168 = vmatprep.subr.mxu0 %v3137
        %3169 = vmatpush1.msra.mxu0 %v3136
        %3170 = vmatprep.subr.mxu0 %v3139
        %3171 = vmatpush1.msra.mxu0 %v3138
        %3172 = vmatprep.subr.mxu0 %v3141
        %3173 = vmatpush1.msra.mxu0 %v3140
        %3174 = vmatprep.subr.mxu0 %v3143
        %3175 = vmatpush1.msra.mxu0 %v3142
        %3176 = vmatprep.subr.mxu0 %v3145
        %3177 = vmatpush1.msra.mxu0 %v3144
        %3178 = vmatprep.subr.mxu0 0.0
        %3179 = vmatpush1.msra.mxu0 0.0
        %3180 = vmatprep.subr.mxu0 0.0
        %3181 = vmatpush1.msra.mxu0 0.0
        %3182 = vmatprep.subr.mxu0 0.0
        %3183 = vmatpush1.msra.mxu0 0.0
        %3184 = vmatprep.subr.mxu0 0.0
        %3185 = vmatpush1.msra.mxu0 0.0
        %3186 = vmatprep.subr.mxu0 0.0
        %3187 = vmatpush1.msra.mxu0 0.0
        %3188 = vmatprep.subr.mxu0 0.0
        %3189 = vmatpush1.msra.mxu0 0.0
        %3190 = vmatprep.subr.mxu0 0.0
        %3191 = vmatpush1.msra.mxu0 0.0
        %3192 = vmatprep.subr.mxu0 0.0
        %3193 = vmatpush1.msra.mxu0 0.0
        %3194 = vmatprep.subr.mxu0 0.0
        %3195 = vmatpush1.msra.mxu0 0.0
        %3196 = vmatprep.subr.mxu0 0.0
        %3197 = vmatpush1.msra.mxu0 0.0
        %3198 = vmatprep.subr.mxu0 0.0
        %3199 = vmatpush1.msra.mxu0 0.0
        %3200 = vmatprep.subr.mxu0 0.0
        %3201 = vmatpush1.msra.mxu0 0.0
        %3202 = vmatprep.subr.mxu0 0.0
        %3203 = vmatpush1.msra.mxu0 0.0
        %3204 = vmatprep.subr.mxu0 0.0
        %3205 = vmatpush1.msra.mxu0 0.0
        %3206 = vmatprep.subr.mxu0 0.0
        %3207 = vmatpush1.msra.mxu0 0.0
        %3208 = vmatprep.subr.mxu0 0.0
        %3209 = vmatpush1.msra.mxu0 0.0
        %3210 = vmatprep.mubr.f32.mxu0 0.0
        %3211 = vmatmul.mubr.f32.gmra.mrb[0].mxu0 %v3110
        %v3212 = vpop.f32.mrb[0].mxu0
        %v3213 = vadd.f32 0.0, %v3212
        %v3214 = vpop.f32.mrb[0].mxu0
        %v3215 = vadd.f32 0.0, %v3214
        %3216 = vdwg.mxu0
        %v3217 = vadd.f32 %v3034, %v3213
        %v3218 = vadd.f32 %v3036, %v3215
        %v3219 = vld [vmem:[%s9] sm:$0x3]
        %v3221 = vlaneseq
        %v3222 = vshrl.u32 %v3221, 7
        %v3223 = vsub.s32 0, %v3222
        %v3224 = vrot.slane %v3219, %v3223
        %v3225 = vlaneseq
        %v3226 = vshrl.u32 %v3225, 7
        %v3227 = vsub.s32 1, %v3226
        %v3228 = vrot.slane %v3219, %v3227
        %v3231 = vadd.f32 %v3217, %v3224
        %v3232 = vadd.f32 %v3218, %v3228
        %v3233 = vmax.f32 %v3231, 0.0
        %v3234 = vmax.f32 %v3232, 0.0
        %v3235 = vld [vmem:[%s12] sm:$0x1]
        %v3236 = vld [vmem:[%s10] sm:$0x1]
        %vm3237 = vcmask 31744
        %v3239 = vsel %vm3237, %v3236, 0
        %vm3241 = vcmask 1043456
        %v3243 = vsel %vm3241, %v3233, 0
        %v3246 = vsel %vm3241, %v3234, 0
        %3248 = vmatprep.subr.mxu0 %v3246
        %3249 = vmatpush1.msra.mxu0 %v3243
        %3250 = vmatprep.subr.mxu0 0.0
        %3251 = vmatpush1.msra.mxu0 0.0
        %3252 = vmatprep.subr.mxu0 0.0
        %3253 = vmatpush1.msra.mxu0 0.0
        %3254 = vmatprep.subr.mxu0 0.0
        %3255 = vmatpush1.msra.mxu0 0.0
        %3256 = vmatprep.subr.mxu0 0.0
        %3257 = vmatpush1.msra.mxu0 0.0
        %3258 = vmatprep.subr.mxu0 0.0
        %3259 = vmatpush1.msra.mxu0 0.0
        %3260 = vmatprep.subr.mxu0 0.0
        %3261 = vmatpush1.msra.mxu0 0.0
        %3262 = vmatprep.subr.mxu0 0.0
        %3263 = vmatpush1.msra.mxu0 0.0
        %3264 = vmatprep.subr.mxu0 0.0
        %3265 = vmatpush1.msra.mxu0 0.0
        %3266 = vmatprep.subr.mxu0 0.0
        %3267 = vmatpush1.msra.mxu0 0.0
        %3268 = vmatprep.subr.mxu0 0.0
        %3269 = vmatpush1.msra.mxu0 0.0
        %3270 = vmatprep.subr.mxu0 0.0
        %3271 = vmatpush1.msra.mxu0 0.0
        %3272 = vmatprep.subr.mxu0 0.0
        %3273 = vmatpush1.msra.mxu0 0.0
        %3274 = vmatprep.subr.mxu0 0.0
        %3275 = vmatpush1.msra.mxu0 0.0
        %3276 = vmatprep.subr.mxu0 0.0
        %3277 = vmatpush1.msra.mxu0 0.0
        %3278 = vmatprep.subr.mxu0 0.0
        %3279 = vmatpush1.msra.mxu0 0.0
        %3280 = vmatprep.subr.mxu0 0.0
        %3281 = vmatpush1.msra.mxu0 0.0
        %3282 = vmatprep.subr.mxu0 0.0
        %3283 = vmatpush1.msra.mxu0 0.0
        %3284 = vmatprep.subr.mxu0 0.0
        %3285 = vmatpush1.msra.mxu0 0.0
        %3286 = vmatprep.subr.mxu0 0.0
        %3287 = vmatpush1.msra.mxu0 0.0
        %3288 = vmatprep.subr.mxu0 0.0
        %3289 = vmatpush1.msra.mxu0 0.0
        %3290 = vmatprep.subr.mxu0 0.0
        %3291 = vmatpush1.msra.mxu0 0.0
        %3292 = vmatprep.subr.mxu0 0.0
        %3293 = vmatpush1.msra.mxu0 0.0
        %3294 = vmatprep.subr.mxu0 0.0
        %3295 = vmatpush1.msra.mxu0 0.0
        %3296 = vmatprep.subr.mxu0 0.0
        %3297 = vmatpush1.msra.mxu0 0.0
        %3298 = vmatprep.subr.mxu0 0.0
        %3299 = vmatpush1.msra.mxu0 0.0
        %3300 = vmatprep.subr.mxu0 0.0
        %3301 = vmatpush1.msra.mxu0 0.0
        %3302 = vmatprep.subr.mxu0 0.0
        %3303 = vmatpush1.msra.mxu0 0.0
        %3304 = vmatprep.subr.mxu0 0.0
        %3305 = vmatpush1.msra.mxu0 0.0
        %3306 = vmatprep.subr.mxu0 0.0
        %3307 = vmatpush1.msra.mxu0 0.0
        %3308 = vmatprep.subr.mxu0 0.0
        %3309 = vmatpush1.msra.mxu0 0.0
        %3310 = vmatprep.subr.mxu0 0.0
        %3311 = vmatpush1.msra.mxu0 0.0
        %3312 = vmatprep.mubr.f32.mxu0 0.0
        %3313 = vmatmul.mubr.f32.gmra.mrb[0].mxu0 %v3239
        %v3314 = vpop.f32.mrb[0].mxu0
        %v3315 = vadd.f32 0.0, %v3314
        %v3316 = vpop.f32.mrb[0].mxu0
        %v3317 = vadd.f32 0.0, %v3316
        %3318 = vdwg.mxu0
        %v3319 = vld [vmem:[#allocation10] sm:$0xff]
        %v3320 = vld [vmem:[#allocation10 + $0x8] sm:$0xff]
        %v3321 = vld [vmem:[#allocation10 + $0x10] sm:$0xff]
        %v3322 = vld [vmem:[#allocation10 + $0x18] sm:$0xff]
        %v3323 = vld [vmem:[#allocation10 + $0x20] sm:$0xff]
        %v3324 = vld [vmem:[#allocation10 + $0x28] sm:$0xff]
        %v3325 = vld [vmem:[#allocation10 + $0x30] sm:$0xff]
        %v3326 = vld [vmem:[#allocation10 + $0x38] sm:$0xff]
        %v3327 = vld [vmem:[#allocation10 + $0x40] sm:$0xff]
        %v3328 = vld [vmem:[#allocation10 + $0x48] sm:$0xff]
        %v3329 = vld [vmem:[#allocation10 + $0x50] sm:$0xff]
        %v3330 = vld [vmem:[#allocation10 + $0x58] sm:$0xff]
        %v3331 = vld [vmem:[#allocation10 + $0x60] sm:$0xff]
        %v3332 = vld [vmem:[#allocation10 + $0x68] sm:$0xff]
        %v3333 = vld [vmem:[#allocation10 + $0x70] sm:$0xff]
        %v3334 = vld [vmem:[#allocation10 + $0x78] sm:$0xff]
        %v3335 = vld [vmem:[#allocation10 + $0x80] sm:$0xff]
        %v3336 = vld [vmem:[#allocation10 + $0x88] sm:$0xff]
        %v3337 = vld [vmem:[#allocation10 + $0x90] sm:$0xff]
        %v3338 = vld [vmem:[#allocation10 + $0x98] sm:$0xff]
        %v3339 = vld [vmem:[#allocation10 + $0xa0] sm:$0xff]
        %v3340 = vld [vmem:[#allocation10 + $0xa8] sm:$0xff]
        %v3341 = vld [vmem:[#allocation10 + $0xb0] sm:$0xff]
        %v3342 = vld [vmem:[#allocation10 + $0xb8] sm:$0xff]
        %v3343 = vld [vmem:[#allocation10 + $0xc0] sm:$0xff]
        %v3344 = vld [vmem:[#allocation10 + $0xc8] sm:$0xff]
        %v3345 = vld [vmem:[#allocation10 + $0xd0] sm:$0xff]
        %v3346 = vld [vmem:[#allocation10 + $0xd8] sm:$0xff]
        %v3347 = vld [vmem:[#allocation10 + $0xe0] sm:$0xff]
        %v3348 = vld [vmem:[#allocation10 + $0xe8] sm:$0xff]
        %v3349 = vld [vmem:[#allocation10 + $0xf0] sm:$0xff]
        %v3350 = vld [vmem:[#allocation10 + $0xf8] sm:$0xff]
        %3351 = vmatprep.subr.mxu0 0.0
        %3352 = vmatpush1.msra.mxu0 %v3319
        %3353 = vmatprep.subr.mxu0 0.0
        %3354 = vmatpush1.msra.mxu0 %v3320
        %3355 = vmatprep.subr.mxu0 0.0
        %3356 = vmatpush1.msra.mxu0 %v3321
        %3357 = vmatprep.subr.mxu0 0.0
        %3358 = vmatpush1.msra.mxu0 %v3322
        %3359 = vmatprep.subr.mxu0 0.0
        %3360 = vmatpush1.msra.mxu0 %v3323
        %3361 = vmatprep.subr.mxu0 0.0
        %3362 = vmatpush1.msra.mxu0 %v3324
        %3363 = vmatprep.subr.mxu0 0.0
        %3364 = vmatpush1.msra.mxu0 %v3325
        %3365 = vmatprep.subr.mxu0 0.0
        %3366 = vmatpush1.msra.mxu0 %v3326
        %3367 = vmatprep.subr.mxu0 0.0
        %3368 = vmatpush1.msra.mxu0 %v3327
        %3369 = vmatprep.subr.mxu0 0.0
        %3370 = vmatpush1.msra.mxu0 %v3328
        %3371 = vmatprep.subr.mxu0 0.0
        %3372 = vmatpush1.msra.mxu0 %v3329
        %3373 = vmatprep.subr.mxu0 0.0
        %3374 = vmatpush1.msra.mxu0 %v3330
        %3375 = vmatprep.subr.mxu0 0.0
        %3376 = vmatpush1.msra.mxu0 %v3331
        %3377 = vmatprep.subr.mxu0 0.0
        %3378 = vmatpush1.msra.mxu0 %v3332
        %3379 = vmatprep.subr.mxu0 0.0
        %3380 = vmatpush1.msra.mxu0 %v3333
        %3381 = vmatprep.subr.mxu0 0.0
        %3382 = vmatpush1.msra.mxu0 %v3334
        %3383 = vmatprep.subr.mxu0 0.0
        %3384 = vmatpush1.msra.mxu0 %v3335
        %3385 = vmatprep.subr.mxu0 0.0
        %3386 = vmatpush1.msra.mxu0 %v3336
        %3387 = vmatprep.subr.mxu0 0.0
        %3388 = vmatpush1.msra.mxu0 %v3337
        %3389 = vmatprep.subr.mxu0 0.0
        %3390 = vmatpush1.msra.mxu0 %v3338
        %3391 = vmatprep.subr.mxu0 0.0
        %3392 = vmatpush1.msra.mxu0 %v3339
        %3393 = vmatprep.subr.mxu0 0.0
        %3394 = vmatpush1.msra.mxu0 %v3340
        %3395 = vmatprep.subr.mxu0 0.0
        %3396 = vmatpush1.msra.mxu0 %v3341
        %3397 = vmatprep.subr.mxu0 0.0
        %3398 = vmatpush1.msra.mxu0 %v3342
        %3399 = vmatprep.subr.mxu0 0.0
        %3400 = vmatpush1.msra.mxu0 %v3343
        %3401 = vmatprep.subr.mxu0 0.0
        %3402 = vmatpush1.msra.mxu0 %v3344
        %3403 = vmatprep.subr.mxu0 0.0
        %3404 = vmatpush1.msra.mxu0 %v3345
        %3405 = vmatprep.subr.mxu0 0.0
        %3406 = vmatpush1.msra.mxu0 %v3346
        %3407 = vmatprep.subr.mxu0 0.0
        %3408 = vmatpush1.msra.mxu0 %v3347
        %3409 = vmatprep.subr.mxu0 0.0
        %3410 = vmatpush1.msra.mxu0 %v3348
        %3411 = vmatprep.subr.mxu0 0.0
        %3412 = vmatpush1.msra.mxu0 %v3349
        %3413 = vmatprep.subr.mxu0 0.0
        %3414 = vmatpush1.msra.mxu0 %v3350
        %3415 = vmatprep.mubr.f32.mxu0 %v3317
        %3416 = vmatmul.mubr.f32.gmra.mrb[0].mxu0 %v3315
        %v3417 = vpop.f32.mrb[0].mxu0
        %v3418 = vadd.f32 0.0, %v3417
        %v3419 = vpop.f32.mrb[0].mxu0
        %3420 = vdwg.mxu0
        %v3421 = vadd.f32 %v3235, %v3418
        %s3422 = scalar_lea.vmem %s10, 1
        %v3423 = vld [vmem:[%s3422] sm:$0x1]
        %v3425 = vsel %vm3237, %v3423, 0
        %3427 = vmatprep.subr.mxu0 %v3246
        %3428 = vmatpush1.msra.mxu0 %v3243
        %3429 = vmatprep.subr.mxu0 0.0
        %3430 = vmatpush1.msra.mxu0 0.0
        %3431 = vmatprep.subr.mxu0 0.0
        %3432 = vmatpush1.msra.mxu0 0.0
        %3433 = vmatprep.subr.mxu0 0.0
        %3434 = vmatpush1.msra.mxu0 0.0
        %3435 = vmatprep.subr.mxu0 0.0
        %3436 = vmatpush1.msra.mxu0 0.0
        %3437 = vmatprep.subr.mxu0 0.0
        %3438 = vmatpush1.msra.mxu0 0.0
        %3439 = vmatprep.subr.mxu0 0.0
        %3440 = vmatpush1.msra.mxu0 0.0
        %3441 = vmatprep.subr.mxu0 0.0
        %3442 = vmatpush1.msra.mxu0 0.0
        %3443 = vmatprep.subr.mxu0 0.0
        %3444 = vmatpush1.msra.mxu0 0.0
        %3445 = vmatprep.subr.mxu0 0.0
        %3446 = vmatpush1.msra.mxu0 0.0
        %3447 = vmatprep.subr.mxu0 0.0
        %3448 = vmatpush1.msra.mxu0 0.0
        %3449 = vmatprep.subr.mxu0 0.0
        %3450 = vmatpush1.msra.mxu0 0.0
        %3451 = vmatprep.subr.mxu0 0.0
        %3452 = vmatpush1.msra.mxu0 0.0
        %3453 = vmatprep.subr.mxu0 0.0
        %3454 = vmatpush1.msra.mxu0 0.0
        %3455 = vmatprep.subr.mxu0 0.0
        %3456 = vmatpush1.msra.mxu0 0.0
        %3457 = vmatprep.subr.mxu0 0.0
        %3458 = vmatpush1.msra.mxu0 0.0
        %3459 = vmatprep.subr.mxu0 0.0
        %3460 = vmatpush1.msra.mxu0 0.0
        %3461 = vmatprep.subr.mxu0 0.0
        %3462 = vmatpush1.msra.mxu0 0.0
        %3463 = vmatprep.subr.mxu0 0.0
        %3464 = vmatpush1.msra.mxu0 0.0
        %3465 = vmatprep.subr.mxu0 0.0
        %3466 = vmatpush1.msra.mxu0 0.0
        %3467 = vmatprep.subr.mxu0 0.0
        %3468 = vmatpush1.msra.mxu0 0.0
        %3469 = vmatprep.subr.mxu0 0.0
        %3470 = vmatpush1.msra.mxu0 0.0
        %3471 = vmatprep.subr.mxu0 0.0
        %3472 = vmatpush1.msra.mxu0 0.0
        %3473 = vmatprep.subr.mxu0 0.0
        %3474 = vmatpush1.msra.mxu0 0.0
        %3475 = vmatprep.subr.mxu0 0.0
        %3476 = vmatpush1.msra.mxu0 0.0
        %3477 = vmatprep.subr.mxu0 0.0
        %3478 = vmatpush1.msra.mxu0 0.0
        %3479 = vmatprep.subr.mxu0 0.0
        %3480 = vmatpush1.msra.mxu0 0.0
        %3481 = vmatprep.subr.mxu0 0.0
        %3482 = vmatpush1.msra.mxu0 0.0
        %3483 = vmatprep.subr.mxu0 0.0
        %3484 = vmatpush1.msra.mxu0 0.0
        %3485 = vmatprep.subr.mxu0 0.0
        %3486 = vmatpush1.msra.mxu0 0.0
        %3487 = vmatprep.subr.mxu0 0.0
        %3488 = vmatpush1.msra.mxu0 0.0
        %3489 = vmatprep.subr.mxu0 0.0
        %3490 = vmatpush1.msra.mxu0 0.0
        %3491 = vmatprep.mubr.f32.mxu0 0.0
        %3492 = vmatmul.mubr.f32.gmra.mrb[0].mxu0 %v3425
        %v3493 = vpop.f32.mrb[0].mxu0
        %v3494 = vadd.f32 0.0, %v3493
        %v3495 = vpop.f32.mrb[0].mxu0
        %v3496 = vadd.f32 0.0, %v3495
        %3497 = vdwg.mxu0
        %s3498 = scalar_lea.vmem [#allocation10], 256
        %v3499 = vld [vmem:[%s3498] sm:$0xff]
        %v3500 = vld [vmem:[%s3498 + $0x8] sm:$0xff]
        %v3501 = vld [vmem:[%s3498 + $0x10] sm:$0xff]
        %v3502 = vld [vmem:[%s3498 + $0x18] sm:$0xff]
        %v3503 = vld [vmem:[%s3498 + $0x20] sm:$0xff]
        %v3504 = vld [vmem:[%s3498 + $0x28] sm:$0xff]
        %v3505 = vld [vmem:[%s3498 + $0x30] sm:$0xff]
        %v3506 = vld [vmem:[%s3498 + $0x38] sm:$0xff]
        %v3507 = vld [vmem:[%s3498 + $0x40] sm:$0xff]
        %v3508 = vld [vmem:[%s3498 + $0x48] sm:$0xff]
        %v3509 = vld [vmem:[%s3498 + $0x50] sm:$0xff]
        %v3510 = vld [vmem:[%s3498 + $0x58] sm:$0xff]
        %v3511 = vld [vmem:[%s3498 + $0x60] sm:$0xff]
        %v3512 = vld [vmem:[%s3498 + $0x68] sm:$0xff]
        %v3513 = vld [vmem:[%s3498 + $0x70] sm:$0xff]
        %v3514 = vld [vmem:[%s3498 + $0x78] sm:$0xff]
        %v3515 = vld [vmem:[%s3498 + $0x80] sm:$0xff]
        %v3516 = vld [vmem:[%s3498 + $0x88] sm:$0xff]
        %v3517 = vld [vmem:[%s3498 + $0x90] sm:$0xff]
        %v3518 = vld [vmem:[%s3498 + $0x98] sm:$0xff]
        %v3519 = vld [vmem:[%s3498 + $0xa0] sm:$0xff]
        %v3520 = vld [vmem:[%s3498 + $0xa8] sm:$0xff]
        %v3521 = vld [vmem:[%s3498 + $0xb0] sm:$0xff]
        %v3522 = vld [vmem:[%s3498 + $0xb8] sm:$0xff]
        %v3523 = vld [vmem:[%s3498 + $0xc0] sm:$0xff]
        %v3524 = vld [vmem:[%s3498 + $0xc8] sm:$0xff]
        %v3525 = vld [vmem:[%s3498 + $0xd0] sm:$0xff]
        %v3526 = vld [vmem:[%s3498 + $0xd8] sm:$0xff]
        %v3527 = vld [vmem:[%s3498 + $0xe0] sm:$0xff]
        %v3528 = vld [vmem:[%s3498 + $0xe8] sm:$0xff]
        %v3529 = vld [vmem:[%s3498 + $0xf0] sm:$0xff]
        %v3530 = vld [vmem:[%s3498 + $0xf8] sm:$0xff]
        %3531 = vmatprep.subr.mxu0 0.0
        %3532 = vmatpush1.msra.mxu0 %v3499
        %3533 = vmatprep.subr.mxu0 0.0
        %3534 = vmatpush1.msra.mxu0 %v3500
        %3535 = vmatprep.subr.mxu0 0.0
        %3536 = vmatpush1.msra.mxu0 %v3501
        %3537 = vmatprep.subr.mxu0 0.0
        %3538 = vmatpush1.msra.mxu0 %v3502
        %3539 = vmatprep.subr.mxu0 0.0
        %3540 = vmatpush1.msra.mxu0 %v3503
        %3541 = vmatprep.subr.mxu0 0.0
        %3542 = vmatpush1.msra.mxu0 %v3504
        %3543 = vmatprep.subr.mxu0 0.0
        %3544 = vmatpush1.msra.mxu0 %v3505
        %3545 = vmatprep.subr.mxu0 0.0
        %3546 = vmatpush1.msra.mxu0 %v3506
        %3547 = vmatprep.subr.mxu0 0.0
        %3548 = vmatpush1.msra.mxu0 %v3507
        %3549 = vmatprep.subr.mxu0 0.0
        %3550 = vmatpush1.msra.mxu0 %v3508
        %3551 = vmatprep.subr.mxu0 0.0
        %3552 = vmatpush1.msra.mxu0 %v3509
        %3553 = vmatprep.subr.mxu0 0.0
        %3554 = vmatpush1.msra.mxu0 %v3510
        %3555 = vmatprep.subr.mxu0 0.0
        %3556 = vmatpush1.msra.mxu0 %v3511
        %3557 = vmatprep.subr.mxu0 0.0
        %3558 = vmatpush1.msra.mxu0 %v3512
        %3559 = vmatprep.subr.mxu0 0.0
        %3560 = vmatpush1.msra.mxu0 %v3513
        %3561 = vmatprep.subr.mxu0 0.0
        %3562 = vmatpush1.msra.mxu0 %v3514
        %3563 = vmatprep.subr.mxu0 0.0
        %3564 = vmatpush1.msra.mxu0 %v3515
        %3565 = vmatprep.subr.mxu0 0.0
        %3566 = vmatpush1.msra.mxu0 %v3516
        %3567 = vmatprep.subr.mxu0 0.0
        %3568 = vmatpush1.msra.mxu0 %v3517
        %3569 = vmatprep.subr.mxu0 0.0
        %3570 = vmatpush1.msra.mxu0 %v3518
        %3571 = vmatprep.subr.mxu0 0.0
        %3572 = vmatpush1.msra.mxu0 %v3519
        %3573 = vmatprep.subr.mxu0 0.0
        %3574 = vmatpush1.msra.mxu0 %v3520
        %3575 = vmatprep.subr.mxu0 0.0
        %3576 = vmatpush1.msra.mxu0 %v3521
        %3577 = vmatprep.subr.mxu0 0.0
        %3578 = vmatpush1.msra.mxu0 %v3522
        %3579 = vmatprep.subr.mxu0 0.0
        %3580 = vmatpush1.msra.mxu0 %v3523
        %3581 = vmatprep.subr.mxu0 0.0
        %3582 = vmatpush1.msra.mxu0 %v3524
        %3583 = vmatprep.subr.mxu0 0.0
        %3584 = vmatpush1.msra.mxu0 %v3525
        %3585 = vmatprep.subr.mxu0 0.0
        %3586 = vmatpush1.msra.mxu0 %v3526
        %3587 = vmatprep.subr.mxu0 0.0
        %3588 = vmatpush1.msra.mxu0 %v3527
        %3589 = vmatprep.subr.mxu0 0.0
        %3590 = vmatpush1.msra.mxu0 %v3528
        %3591 = vmatprep.subr.mxu0 0.0
        %3592 = vmatpush1.msra.mxu0 %v3529
        %3593 = vmatprep.subr.mxu0 0.0
        %3594 = vmatpush1.msra.mxu0 %v3530
        %3595 = vmatprep.mubr.f32.mxu0 %v3496
        %3596 = vmatmul.mubr.f32.gmra.mrb[0].mxu0 %v3494
        %v3597 = vpop.f32.mrb[0].mxu0
        %v3598 = vadd.f32 0.0, %v3597
        %v3599 = vpop.f32.mrb[0].mxu0
        %3600 = vdwg.mxu0
        %v3601 = vadd.f32 %v3421, %v3598
        %s3602 = scalar_lea.vmem %s10, 2
        %v3603 = vld [vmem:[%s3602] sm:$0x1]
        %v3605 = vsel %vm3237, %v3603, 0
        %3607 = vmatprep.subr.mxu0 %v3246
        %3608 = vmatpush1.msra.mxu0 %v3243
        %3609 = vmatprep.subr.mxu0 0.0
        %3610 = vmatpush1.msra.mxu0 0.0
        %3611 = vmatprep.subr.mxu0 0.0
        %3612 = vmatpush1.msra.mxu0 0.0
        %3613 = vmatprep.subr.mxu0 0.0
        %3614 = vmatpush1.msra.mxu0 0.0
        %3615 = vmatprep.subr.mxu0 0.0
        %3616 = vmatpush1.msra.mxu0 0.0
        %3617 = vmatprep.subr.mxu0 0.0
        %3618 = vmatpush1.msra.mxu0 0.0
        %3619 = vmatprep.subr.mxu0 0.0
        %3620 = vmatpush1.msra.mxu0 0.0
        %3621 = vmatprep.subr.mxu0 0.0
        %3622 = vmatpush1.msra.mxu0 0.0
        %3623 = vmatprep.subr.mxu0 0.0
        %3624 = vmatpush1.msra.mxu0 0.0
        %3625 = vmatprep.subr.mxu0 0.0
        %3626 = vmatpush1.msra.mxu0 0.0
        %3627 = vmatprep.subr.mxu0 0.0
        %3628 = vmatpush1.msra.mxu0 0.0
        %3629 = vmatprep.subr.mxu0 0.0
        %3630 = vmatpush1.msra.mxu0 0.0
        %3631 = vmatprep.subr.mxu0 0.0
        %3632 = vmatpush1.msra.mxu0 0.0
        %3633 = vmatprep.subr.mxu0 0.0
        %3634 = vmatpush1.msra.mxu0 0.0
        %3635 = vmatprep.subr.mxu0 0.0
        %3636 = vmatpush1.msra.mxu0 0.0
        %3637 = vmatprep.subr.mxu0 0.0
        %3638 = vmatpush1.msra.mxu0 0.0
        %3639 = vmatprep.subr.mxu0 0.0
        %3640 = vmatpush1.msra.mxu0 0.0
        %3641 = vmatprep.subr.mxu0 0.0
        %3642 = vmatpush1.msra.mxu0 0.0
        %3643 = vmatprep.subr.mxu0 0.0
        %3644 = vmatpush1.msra.mxu0 0.0
        %3645 = vmatprep.subr.mxu0 0.0
        %3646 = vmatpush1.msra.mxu0 0.0
        %3647 = vmatprep.subr.mxu0 0.0
        %3648 = vmatpush1.msra.mxu0 0.0
        %3649 = vmatprep.subr.mxu0 0.0
        %3650 = vmatpush1.msra.mxu0 0.0
        %3651 = vmatprep.subr.mxu0 0.0
        %3652 = vmatpush1.msra.mxu0 0.0
        %3653 = vmatprep.subr.mxu0 0.0
        %3654 = vmatpush1.msra.mxu0 0.0
        %3655 = vmatprep.subr.mxu0 0.0
        %3656 = vmatpush1.msra.mxu0 0.0
        %3657 = vmatprep.subr.mxu0 0.0
        %3658 = vmatpush1.msra.mxu0 0.0
        %3659 = vmatprep.subr.mxu0 0.0
        %3660 = vmatpush1.msra.mxu0 0.0
        %3661 = vmatprep.subr.mxu0 0.0
        %3662 = vmatpush1.msra.mxu0 0.0
        %3663 = vmatprep.subr.mxu0 0.0
        %3664 = vmatpush1.msra.mxu0 0.0
        %3665 = vmatprep.subr.mxu0 0.0
        %3666 = vmatpush1.msra.mxu0 0.0
        %3667 = vmatprep.subr.mxu0 0.0
        %3668 = vmatpush1.msra.mxu0 0.0
        %3669 = vmatprep.subr.mxu0 0.0
        %3670 = vmatpush1.msra.mxu0 0.0
        %3671 = vmatprep.mubr.f32.mxu0 0.0
        %3672 = vmatmul.mubr.f32.gmra.mrb[0].mxu0 %v3605
        %v3673 = vpop.f32.mrb[0].mxu0
        %v3674 = vadd.f32 0.0, %v3673
        %v3675 = vpop.f32.mrb[0].mxu0
        %v3676 = vadd.f32 0.0, %v3675
        %3677 = vdwg.mxu0
        %s3678 = scalar_lea.vmem [#allocation10], 512
        %v3679 = vld [vmem:[%s3678] sm:$0xff]
        %v3680 = vld [vmem:[%s3678 + $0x8] sm:$0xff]
        %v3681 = vld [vmem:[%s3678 + $0x10] sm:$0xff]
        %v3682 = vld [vmem:[%s3678 + $0x18] sm:$0xff]
        %v3683 = vld [vmem:[%s3678 + $0x20] sm:$0xff]
        %v3684 = vld [vmem:[%s3678 + $0x28] sm:$0xff]
        %v3685 = vld [vmem:[%s3678 + $0x30] sm:$0xff]
        %v3686 = vld [vmem:[%s3678 + $0x38] sm:$0xff]
        %v3687 = vld [vmem:[%s3678 + $0x40] sm:$0xff]
        %v3688 = vld [vmem:[%s3678 + $0x48] sm:$0xff]
        %v3689 = vld [vmem:[%s3678 + $0x50] sm:$0xff]
        %v3690 = vld [vmem:[%s3678 + $0x58] sm:$0xff]
        %v3691 = vld [vmem:[%s3678 + $0x60] sm:$0xff]
        %v3692 = vld [vmem:[%s3678 + $0x68] sm:$0xff]
        %v3693 = vld [vmem:[%s3678 + $0x70] sm:$0xff]
        %v3694 = vld [vmem:[%s3678 + $0x78] sm:$0xff]
        %v3695 = vld [vmem:[%s3678 + $0x80] sm:$0xff]
        %v3696 = vld [vmem:[%s3678 + $0x88] sm:$0xff]
        %v3697 = vld [vmem:[%s3678 + $0x90] sm:$0xff]
        %v3698 = vld [vmem:[%s3678 + $0x98] sm:$0xff]
        %v3699 = vld [vmem:[%s3678 + $0xa0] sm:$0xff]
        %v3700 = vld [vmem:[%s3678 + $0xa8] sm:$0xff]
        %v3701 = vld [vmem:[%s3678 + $0xb0] sm:$0xff]
        %v3702 = vld [vmem:[%s3678 + $0xb8] sm:$0xff]
        %v3703 = vld [vmem:[%s3678 + $0xc0] sm:$0xff]
        %v3704 = vld [vmem:[%s3678 + $0xc8] sm:$0xff]
        %v3705 = vld [vmem:[%s3678 + $0xd0] sm:$0xff]
        %v3706 = vld [vmem:[%s3678 + $0xd8] sm:$0xff]
        %v3707 = vld [vmem:[%s3678 + $0xe0] sm:$0xff]
        %v3708 = vld [vmem:[%s3678 + $0xe8] sm:$0xff]
        %v3709 = vld [vmem:[%s3678 + $0xf0] sm:$0xff]
        %v3710 = vld [vmem:[%s3678 + $0xf8] sm:$0xff]
        %3711 = vmatprep.subr.mxu0 0.0
        %3712 = vmatpush1.msra.mxu0 %v3679
        %3713 = vmatprep.subr.mxu0 0.0
        %3714 = vmatpush1.msra.mxu0 %v3680
        %3715 = vmatprep.subr.mxu0 0.0
        %3716 = vmatpush1.msra.mxu0 %v3681
        %3717 = vmatprep.subr.mxu0 0.0
        %3718 = vmatpush1.msra.mxu0 %v3682
        %3719 = vmatprep.subr.mxu0 0.0
        %3720 = vmatpush1.msra.mxu0 %v3683
        %3721 = vmatprep.subr.mxu0 0.0
        %3722 = vmatpush1.msra.mxu0 %v3684
        %3723 = vmatprep.subr.mxu0 0.0
        %3724 = vmatpush1.msra.mxu0 %v3685
        %3725 = vmatprep.subr.mxu0 0.0
        %3726 = vmatpush1.msra.mxu0 %v3686
        %3727 = vmatprep.subr.mxu0 0.0
        %3728 = vmatpush1.msra.mxu0 %v3687
        %3729 = vmatprep.subr.mxu0 0.0
        %3730 = vmatpush1.msra.mxu0 %v3688
        %3731 = vmatprep.subr.mxu0 0.0
        %3732 = vmatpush1.msra.mxu0 %v3689
        %3733 = vmatprep.subr.mxu0 0.0
        %3734 = vmatpush1.msra.mxu0 %v3690
        %3735 = vmatprep.subr.mxu0 0.0
        %3736 = vmatpush1.msra.mxu0 %v3691
        %3737 = vmatprep.subr.mxu0 0.0
        %3738 = vmatpush1.msra.mxu0 %v3692
        %3739 = vmatprep.subr.mxu0 0.0
        %3740 = vmatpush1.msra.mxu0 %v3693
        %3741 = vmatprep.subr.mxu0 0.0
        %3742 = vmatpush1.msra.mxu0 %v3694
        %3743 = vmatprep.subr.mxu0 0.0
        %3744 = vmatpush1.msra.mxu0 %v3695
        %3745 = vmatprep.subr.mxu0 0.0
        %3746 = vmatpush1.msra.mxu0 %v3696
        %3747 = vmatprep.subr.mxu0 0.0
        %3748 = vmatpush1.msra.mxu0 %v3697
        %3749 = vmatprep.subr.mxu0 0.0
        %3750 = vmatpush1.msra.mxu0 %v3698
        %3751 = vmatprep.subr.mxu0 0.0
        %3752 = vmatpush1.msra.mxu0 %v3699
        %3753 = vmatprep.subr.mxu0 0.0
        %3754 = vmatpush1.msra.mxu0 %v3700
        %3755 = vmatprep.subr.mxu0 0.0
        %3756 = vmatpush1.msra.mxu0 %v3701
        %3757 = vmatprep.subr.mxu0 0.0
        %3758 = vmatpush1.msra.mxu0 %v3702
        %3759 = vmatprep.subr.mxu0 0.0
        %3760 = vmatpush1.msra.mxu0 %v3703
        %3761 = vmatprep.subr.mxu0 0.0
        %3762 = vmatpush1.msra.mxu0 %v3704
        %3763 = vmatprep.subr.mxu0 0.0
        %3764 = vmatpush1.msra.mxu0 %v3705
        %3765 = vmatprep.subr.mxu0 0.0
        %3766 = vmatpush1.msra.mxu0 %v3706
        %3767 = vmatprep.subr.mxu0 0.0
        %3768 = vmatpush1.msra.mxu0 %v3707
        %3769 = vmatprep.subr.mxu0 0.0
        %3770 = vmatpush1.msra.mxu0 %v3708
        %3771 = vmatprep.subr.mxu0 0.0
        %3772 = vmatpush1.msra.mxu0 %v3709
        %3773 = vmatprep.subr.mxu0 0.0
        %3774 = vmatpush1.msra.mxu0 %v3710
        %3775 = vmatprep.mubr.f32.mxu0 %v3676
        %3776 = vmatmul.mubr.f32.gmra.mrb[0].mxu0 %v3674
        %v3777 = vpop.f32.mrb[0].mxu0
        %v3778 = vadd.f32 0.0, %v3777
        %v3779 = vpop.f32.mrb[0].mxu0
        %3780 = vdwg.mxu0
        %v3781 = vadd.f32 %v3601, %v3778
        %s3782 = scalar_lea.vmem %s10, 3
        %v3783 = vld [vmem:[%s3782] sm:$0x1]
        %v3785 = vsel %vm3237, %v3783, 0
        %3787 = vmatprep.subr.mxu0 %v3246
        %3788 = vmatpush1.msra.mxu0 %v3243
        %3789 = vmatprep.subr.mxu0 0.0
        %3790 = vmatpush1.msra.mxu0 0.0
        %3791 = vmatprep.subr.mxu0 0.0
        %3792 = vmatpush1.msra.mxu0 0.0
        %3793 = vmatprep.subr.mxu0 0.0
        %3794 = vmatpush1.msra.mxu0 0.0
        %3795 = vmatprep.subr.mxu0 0.0
        %3796 = vmatpush1.msra.mxu0 0.0
        %3797 = vmatprep.subr.mxu0 0.0
        %3798 = vmatpush1.msra.mxu0 0.0
        %3799 = vmatprep.subr.mxu0 0.0
        %3800 = vmatpush1.msra.mxu0 0.0
        %3801 = vmatprep.subr.mxu0 0.0
        %3802 = vmatpush1.msra.mxu0 0.0
        %3803 = vmatprep.subr.mxu0 0.0
        %3804 = vmatpush1.msra.mxu0 0.0
        %3805 = vmatprep.subr.mxu0 0.0
        %3806 = vmatpush1.msra.mxu0 0.0
        %3807 = vmatprep.subr.mxu0 0.0
        %3808 = vmatpush1.msra.mxu0 0.0
        %3809 = vmatprep.subr.mxu0 0.0
        %3810 = vmatpush1.msra.mxu0 0.0
        %3811 = vmatprep.subr.mxu0 0.0
        %3812 = vmatpush1.msra.mxu0 0.0
        %3813 = vmatprep.subr.mxu0 0.0
        %3814 = vmatpush1.msra.mxu0 0.0
        %3815 = vmatprep.subr.mxu0 0.0
        %3816 = vmatpush1.msra.mxu0 0.0
        %3817 = vmatprep.subr.mxu0 0.0
        %3818 = vmatpush1.msra.mxu0 0.0
        %3819 = vmatprep.subr.mxu0 0.0
        %3820 = vmatpush1.msra.mxu0 0.0
        %3821 = vmatprep.subr.mxu0 0.0
        %3822 = vmatpush1.msra.mxu0 0.0
        %3823 = vmatprep.subr.mxu0 0.0
        %3824 = vmatpush1.msra.mxu0 0.0
        %3825 = vmatprep.subr.mxu0 0.0
        %3826 = vmatpush1.msra.mxu0 0.0
        %3827 = vmatprep.subr.mxu0 0.0
        %3828 = vmatpush1.msra.mxu0 0.0
        %3829 = vmatprep.subr.mxu0 0.0
        %3830 = vmatpush1.msra.mxu0 0.0
        %3831 = vmatprep.subr.mxu0 0.0
        %3832 = vmatpush1.msra.mxu0 0.0
        %3833 = vmatprep.subr.mxu0 0.0
        %3834 = vmatpush1.msra.mxu0 0.0
        %3835 = vmatprep.subr.mxu0 0.0
        %3836 = vmatpush1.msra.mxu0 0.0
        %3837 = vmatprep.subr.mxu0 0.0
        %3838 = vmatpush1.msra.mxu0 0.0
        %3839 = vmatprep.subr.mxu0 0.0
        %3840 = vmatpush1.msra.mxu0 0.0
        %3841 = vmatprep.subr.mxu0 0.0
        %3842 = vmatpush1.msra.mxu0 0.0
        %3843 = vmatprep.subr.mxu0 0.0
        %3844 = vmatpush1.msra.mxu0 0.0
        %3845 = vmatprep.subr.mxu0 0.0
        %3846 = vmatpush1.msra.mxu0 0.0
        %3847 = vmatprep.subr.mxu0 0.0
        %3848 = vmatpush1.msra.mxu0 0.0
        %3849 = vmatprep.subr.mxu0 0.0
        %3850 = vmatpush1.msra.mxu0 0.0
        %3851 = vmatprep.mubr.f32.mxu0 0.0
        %3852 = vmatmul.mubr.f32.gmra.mrb[0].mxu0 %v3785
        %v3853 = vpop.f32.mrb[0].mxu0
        %v3854 = vadd.f32 0.0, %v3853
        %v3855 = vpop.f32.mrb[0].mxu0
        %v3856 = vadd.f32 0.0, %v3855
        %3857 = vdwg.mxu0
        %s3858 = scalar_lea.vmem [#allocation10], 768
        %v3859 = vld [vmem:[%s3858] sm:$0xff]
        %v3860 = vld [vmem:[%s3858 + $0x8] sm:$0xff]
        %v3861 = vld [vmem:[%s3858 + $0x10] sm:$0xff]
        %v3862 = vld [vmem:[%s3858 + $0x18] sm:$0xff]
        %v3863 = vld [vmem:[%s3858 + $0x20] sm:$0xff]
        %v3864 = vld [vmem:[%s3858 + $0x28] sm:$0xff]
        %v3865 = vld [vmem:[%s3858 + $0x30] sm:$0xff]
        %v3866 = vld [vmem:[%s3858 + $0x38] sm:$0xff]
        %v3867 = vld [vmem:[%s3858 + $0x40] sm:$0xff]
        %v3868 = vld [vmem:[%s3858 + $0x48] sm:$0xff]
        %v3869 = vld [vmem:[%s3858 + $0x50] sm:$0xff]
        %v3870 = vld [vmem:[%s3858 + $0x58] sm:$0xff]
        %v3871 = vld [vmem:[%s3858 + $0x60] sm:$0xff]
        %v3872 = vld [vmem:[%s3858 + $0x68] sm:$0xff]
        %v3873 = vld [vmem:[%s3858 + $0x70] sm:$0xff]
        %v3874 = vld [vmem:[%s3858 + $0x78] sm:$0xff]
        %v3875 = vld [vmem:[%s3858 + $0x80] sm:$0xff]
        %v3876 = vld [vmem:[%s3858 + $0x88] sm:$0xff]
        %v3877 = vld [vmem:[%s3858 + $0x90] sm:$0xff]
        %v3878 = vld [vmem:[%s3858 + $0x98] sm:$0xff]
        %v3879 = vld [vmem:[%s3858 + $0xa0] sm:$0xff]
        %v3880 = vld [vmem:[%s3858 + $0xa8] sm:$0xff]
        %v3881 = vld [vmem:[%s3858 + $0xb0] sm:$0xff]
        %v3882 = vld [vmem:[%s3858 + $0xb8] sm:$0xff]
        %v3883 = vld [vmem:[%s3858 + $0xc0] sm:$0xff]
        %v3884 = vld [vmem:[%s3858 + $0xc8] sm:$0xff]
        %v3885 = vld [vmem:[%s3858 + $0xd0] sm:$0xff]
        %v3886 = vld [vmem:[%s3858 + $0xd8] sm:$0xff]
        %v3887 = vld [vmem:[%s3858 + $0xe0] sm:$0xff]
        %v3888 = vld [vmem:[%s3858 + $0xe8] sm:$0xff]
        %v3889 = vld [vmem:[%s3858 + $0xf0] sm:$0xff]
        %v3890 = vld [vmem:[%s3858 + $0xf8] sm:$0xff]
        %3891 = vmatprep.subr.mxu0 0.0
        %3892 = vmatpush1.msra.mxu0 %v3859
        %3893 = vmatprep.subr.mxu0 0.0
        %3894 = vmatpush1.msra.mxu0 %v3860
        %3895 = vmatprep.subr.mxu0 0.0
        %3896 = vmatpush1.msra.mxu0 %v3861
        %3897 = vmatprep.subr.mxu0 0.0
        %3898 = vmatpush1.msra.mxu0 %v3862
        %3899 = vmatprep.subr.mxu0 0.0
        %3900 = vmatpush1.msra.mxu0 %v3863
        %3901 = vmatprep.subr.mxu0 0.0
        %3902 = vmatpush1.msra.mxu0 %v3864
        %3903 = vmatprep.subr.mxu0 0.0
        %3904 = vmatpush1.msra.mxu0 %v3865
        %3905 = vmatprep.subr.mxu0 0.0
        %3906 = vmatpush1.msra.mxu0 %v3866
        %3907 = vmatprep.subr.mxu0 0.0
        %3908 = vmatpush1.msra.mxu0 %v3867
        %3909 = vmatprep.subr.mxu0 0.0
        %3910 = vmatpush1.msra.mxu0 %v3868
        %3911 = vmatprep.subr.mxu0 0.0
        %3912 = vmatpush1.msra.mxu0 %v3869
        %3913 = vmatprep.subr.mxu0 0.0
        %3914 = vmatpush1.msra.mxu0 %v3870
        %3915 = vmatprep.subr.mxu0 0.0
        %3916 = vmatpush1.msra.mxu0 %v3871
        %3917 = vmatprep.subr.mxu0 0.0
        %3918 = vmatpush1.msra.mxu0 %v3872
        %3919 = vmatprep.subr.mxu0 0.0
        %3920 = vmatpush1.msra.mxu0 %v3873
        %3921 = vmatprep.subr.mxu0 0.0
        %3922 = vmatpush1.msra.mxu0 %v3874
        %3923 = vmatprep.subr.mxu0 0.0
        %3924 = vmatpush1.msra.mxu0 %v3875
        %3925 = vmatprep.subr.mxu0 0.0
        %3926 = vmatpush1.msra.mxu0 %v3876
        %3927 = vmatprep.subr.mxu0 0.0
        %3928 = vmatpush1.msra.mxu0 %v3877
        %3929 = vmatprep.subr.mxu0 0.0
        %3930 = vmatpush1.msra.mxu0 %v3878
        %3931 = vmatprep.subr.mxu0 0.0
        %3932 = vmatpush1.msra.mxu0 %v3879
        %3933 = vmatprep.subr.mxu0 0.0
        %3934 = vmatpush1.msra.mxu0 %v3880
        %3935 = vmatprep.subr.mxu0 0.0
        %3936 = vmatpush1.msra.mxu0 %v3881
        %3937 = vmatprep.subr.mxu0 0.0
        %3938 = vmatpush1.msra.mxu0 %v3882
        %3939 = vmatprep.subr.mxu0 0.0
        %3940 = vmatpush1.msra.mxu0 %v3883
        %3941 = vmatprep.subr.mxu0 0.0
        %3942 = vmatpush1.msra.mxu0 %v3884
        %3943 = vmatprep.subr.mxu0 0.0
        %3944 = vmatpush1.msra.mxu0 %v3885
        %3945 = vmatprep.subr.mxu0 0.0
        %3946 = vmatpush1.msra.mxu0 %v3886
        %3947 = vmatprep.subr.mxu0 0.0
        %3948 = vmatpush1.msra.mxu0 %v3887
        %3949 = vmatprep.subr.mxu0 0.0
        %3950 = vmatpush1.msra.mxu0 %v3888
        %3951 = vmatprep.subr.mxu0 0.0
        %3952 = vmatpush1.msra.mxu0 %v3889
        %3953 = vmatprep.subr.mxu0 0.0
        %3954 = vmatpush1.msra.mxu0 %v3890
        %3955 = vmatprep.mubr.f32.mxu0 %v3856
        %3956 = vmatmul.mubr.f32.gmra.mrb[0].mxu0 %v3854
        %v3957 = vpop.f32.mrb[0].mxu0
        %v3958 = vadd.f32 0.0, %v3957
        %v3959 = vpop.f32.mrb[0].mxu0
        %3960 = vdwg.mxu0
        %v3961 = vadd.f32 %v3781, %v3958
        %v3962 = vmax.f32 %v3961, 0.0
        %v3963 = vld [vmem:[%s13] sm:$0xff]
        %v3964 = vld [vmem:[%s13 + $0x8] sm:$0xff]
        %v3965 = vld [vmem:[%s13 + $0x10] sm:$0xff]
        %v3966 = vld [vmem:[%s13 + $0x18] sm:$0xff]
        %v3967 = vld [vmem:[%s13 + $0x20] sm:$0xff]
        %v3968 = vld [vmem:[%s13 + $0x28] sm:$0xff]
        %v3969 = vld [vmem:[%s13 + $0x30] sm:$0xff]
        %v3970 = vld [vmem:[%s13 + $0x38] sm:$0xff]
        %v3971 = vld [vmem:[%s13 + $0x40] sm:$0xff]
        %v3972 = vld [vmem:[%s13 + $0x48] sm:$0xff]
        %v3973 = vld [vmem:[%s13 + $0x50] sm:$0xff]
        %v3974 = vld [vmem:[%s13 + $0x58] sm:$0xff]
        %v3975 = vld [vmem:[%s13 + $0x60] sm:$0xff]
        %v3976 = vld [vmem:[%s13 + $0x68] sm:$0xff]
        %v3977 = vld [vmem:[%s13 + $0x70] sm:$0xff]
        %v3978 = vld [vmem:[%s13 + $0x78] sm:$0xff]
        %v3979 = vld [vmem:[%s14] sm:$0x1]
        %3980 = vmatprep.subr.mxu0 0.0
        %3981 = vmatpush1.msra.mxu0 %v3963
        %3982 = vmatprep.subr.mxu0 0.0
        %3983 = vmatpush1.msra.mxu0 %v3964
        %3984 = vmatprep.subr.mxu0 0.0
        %3985 = vmatpush1.msra.mxu0 %v3965
        %3986 = vmatprep.subr.mxu0 0.0
        %3987 = vmatpush1.msra.mxu0 %v3966
        %3988 = vmatprep.subr.mxu0 0.0
        %3989 = vmatpush1.msra.mxu0 %v3967
        %3990 = vmatprep.subr.mxu0 0.0
        %3991 = vmatpush1.msra.mxu0 %v3968
        %3992 = vmatprep.subr.mxu0 0.0
        %3993 = vmatpush1.msra.mxu0 %v3969
        %3994 = vmatprep.subr.mxu0 0.0
        %3995 = vmatpush1.msra.mxu0 %v3970
        %3996 = vmatprep.subr.mxu0 0.0
        %3997 = vmatpush1.msra.mxu0 %v3971
        %3998 = vmatprep.subr.mxu0 0.0
        %3999 = vmatpush1.msra.mxu0 %v3972
        %4000 = vmatprep.subr.mxu0 0.0
        %4001 = vmatpush1.msra.mxu0 %v3973
        %4002 = vmatprep.subr.mxu0 0.0
        %4003 = vmatpush1.msra.mxu0 %v3974
        %4004 = vmatprep.subr.mxu0 0.0
        %4005 = vmatpush1.msra.mxu0 %v3975
        %4006 = vmatprep.subr.mxu0 0.0
        %4007 = vmatpush1.msra.mxu0 %v3976
        %4008 = vmatprep.subr.mxu0 0.0
        %4009 = vmatpush1.msra.mxu0 %v3977
        %4010 = vmatprep.subr.mxu0 0.0
        %4011 = vmatpush1.msra.mxu0 %v3978
        %4012 = vmatprep.subr.mxu0 0.0
        %4013 = vmatpush1.msra.mxu0 0.0
        %4014 = vmatprep.subr.mxu0 0.0
        %4015 = vmatpush1.msra.mxu0 0.0
        %4016 = vmatprep.subr.mxu0 0.0
        %4017 = vmatpush1.msra.mxu0 0.0
        %4018 = vmatprep.subr.mxu0 0.0
        %4019 = vmatpush1.msra.mxu0 0.0
        %4020 = vmatprep.subr.mxu0 0.0
        %4021 = vmatpush1.msra.mxu0 0.0
        %4022 = vmatprep.subr.mxu0 0.0
        %4023 = vmatpush1.msra.mxu0 0.0
        %4024 = vmatprep.subr.mxu0 0.0
        %4025 = vmatpush1.msra.mxu0 0.0
        %4026 = vmatprep.subr.mxu0 0.0
        %4027 = vmatpush1.msra.mxu0 0.0
        %4028 = vmatprep.subr.mxu0 0.0
        %4029 = vmatpush1.msra.mxu0 0.0
        %4030 = vmatprep.subr.mxu0 0.0
        %4031 = vmatpush1.msra.mxu0 0.0
        %4032 = vmatprep.subr.mxu0 0.0
        %4033 = vmatpush1.msra.mxu0 0.0
        %4034 = vmatprep.subr.mxu0 0.0
        %4035 = vmatpush1.msra.mxu0 0.0
        %4036 = vmatprep.subr.mxu0 0.0
        %4037 = vmatpush1.msra.mxu0 0.0
        %4038 = vmatprep.subr.mxu0 0.0
        %4039 = vmatpush1.msra.mxu0 0.0
        %4040 = vmatprep.subr.mxu0 0.0
        %4041 = vmatpush1.msra.mxu0 0.0
        %4042 = vmatprep.subr.mxu0 0.0
        %4043 = vmatpush1.msra.mxu0 0.0
        %4044 = vmatprep.mubr.f32.mxu0 0.0
        %4045 = vmatmul.mubr.f32.gmra.mrb[0].mxu0 %v3962
        %v4046 = vpop.f32.mrb[0].mxu0
        %v4047 = vadd.f32 %v3979, %v4046
        %v4048 = vpop.f32.mrb[0].mxu0
        %4049 = vdwg.mxu0
        %vm4050 = vcmask 122880
        %4051 = vst.msk [vmem:[%s559] sm:$0x1] %vm4050, %v4047
        %s4052 = sand.u32 %s360, 1
        %s4053 = scalar_lea.sflag [#allocation4], %s4052
        %s4054 = sand.u32 %s360, 1
        %s4055 = scalar_lea.vmem [#allocation11], %s4054
        // Predicated region
        $region101: #{tpu_custom_call.1} parent=79 // pred_check
          %p4056 = pneg %p370
        $region102: #{tpu_custom_call.1} parent=79 // pred_check_branch
          %4058 = sbr.rel (%p4056) target = $region104
        $region103: #{tpu_custom_call.1} parent=79 // pred_region
          %s4060 = ssub.s32 16, 16
          %4061 = vsyncadd %s4053, %s4060
          %s4062 = smul.addr %s32, 16
          %s4063 = scalar_lea.hbm %s15, %s4062
          %s4065 = sshll.u32 %s4055, 4
          %s4066 = int_to_ptr.vmem [resolvable:$true] %s4065
          %4068 = dma.vmem_to_hbm [thread:$0]  %s4066, 16, %s4063, %s4053
        $region104: #{tpu_custom_call.1} parent=79 // pred_fallthru
          _
      $region80: #{tpu_custom_call.1} parent=5 // pred_fallthru
        _
      %p4069 = scmp.le.s32.totalorder 2, %s27
      // Predicated region
      $region105: #{tpu_custom_call.1} parent=5 // pred_check
        %p4070 = pneg %p4069
      $region106: #{tpu_custom_call.1} parent=5 // pred_check_branch
        %4072 = sbr.rel (%p4070) target = $region108
      $region107: #{tpu_custom_call.1} parent=5 // pred_region
        %s4073 = ssub.s32 %s27, 2
        // Predicated region
        $region109: #{tpu_custom_call.1} parent=107 // pred_check
          %p4074 = pneg %p376
        $region110: #{tpu_custom_call.1} parent=107 // pred_check_branch
          %4076 = sbr.rel (%p4074) target = $region112
        $region111: #{tpu_custom_call.1} parent=107 // pred_region
          %s4077 = sand.u32 %s361, 1
          %s4078 = scalar_lea.sflag [#allocation4], %s4077
          %s4079 = sand.u32 %s361, 1
          %s4080 = scalar_lea.vmem [#allocation11], %s4079
          %4081 = dma.done %s4078, 16
        $region112: #{tpu_custom_call.1} parent=107 // pred_fallthru
          _
      $region108: #{tpu_custom_call.1} parent=5 // pred_fallthru
        _
    $region6: #{tpu_custom_call.1} parent=1 // loop_footer
      %s31 = sadd.s32 1, %s27
    $region7: #{tpu_custom_call.1} parent=1 // loop_footer_branch
      %26 = sbr.rel target = $region3
    $region8: #{tpu_custom_call.1} parent=1 // loop_exit
      _
    %4082 = vsyncpa [#allocation3], 1
    %s4083 = scalar_lea.sflag [#allocation3], 1
    %4084 = vsyncpa %s4083, 1
    %4085 = vsyncpa [#allocation6], 1
    %4086 = vsyncpa [#allocation9], 1
    %4087 = vsyncpa [#allocation4], 1
    %s4088 = scalar_lea.sflag [#allocation4], 1
    %4089 = vsyncpa %s4088, 1

</llo_original>
